<compile_context>
chip_gen: v7x
topology: tpu7x:2x2x1
jax: 0.10.0
libtpu: 0.0.40
codegen_flags: <defaults>
</compile_context>

<pallas_src>
import functools

import jax
import jax.numpy as jnp
from jax.experimental import pallas as pl
from jax.experimental.pallas import tpu as pltpu

# Small version shim (validated name is pltpu.CompilerParams).
_CompilerParams = getattr(pltpu, "CompilerParams", None) or getattr(
    pltpu, "TPUCompilerParams")

_LANES = 128   # vreg lane width
_CL = 8        # sublane-aligned left column offset of the valid region in the
               # padded conv2 scratch (left zero column is _CL - 1)


def _round_up(v, m):
    return (v + m - 1) // m * m


def _vmem_capacity_bytes():
    try:
        return int(pltpu.get_tpu_info().vmem_capacity_bytes)
    except Exception:
        return 64 * 1024 * 1024   # conservative: v7x per-TensorCore VMEM


_VMEM_CAPACITY = _vmem_capacity_bytes()


def _bottleneck_kernel(x_ref, w1_ref, w2_ref, w3_ref, b1_ref, b2_ref, b3_ref,
                       out_ref, pad_ref):
    """One image per grid step.  NHWC, channels on lanes.

    x_ref   : (1, H, W, C)   compute dtype, C = lane-padded in/out channels
    w1_ref  : (C, P)         BN1-folded, lane-padded, compute dtype
    w2_ref  : (3, 3, P, P)   BN2-folded, lane-padded, compute dtype
    w3_ref  : (P, C)         BN3-folded, lane-padded, compute dtype
    b*_ref  : (1, 1, P|C)    f32 folded BN biases
    out_ref : (1, H, W, C)   compute dtype
    pad_ref : (H+2, Wp, P)   compute-dtype scratch slab for the 3x3 conv
    """
    _, H, W, C = x_ref.shape
    _, Wp, P = pad_ref.shape
    cdt = w1_ref.dtype
    f32 = jnp.float32
    # Contract the channel (last) axis of the activation with dim 0 of the
    # weight; keeps (H, W) lane/sublane layout intact (no H*W reshapes).
    cn = (((2,), (0,)), ((), ()))

    # ---- conv1 (1x1, BN1 folded) + bias + relu, f32 accumulate -------------
    h1 = jax.lax.dot_general(x_ref[0], w1_ref[...], cn,
                             preferred_element_type=f32)
    h1 = jnp.maximum(h1 + b1_ref[...], 0.0)                    # (H, W, P) f32

    # ---- stage h1 into the padded scratch slab ------------------------------
    # Borders re-zeroed every step (scratch is per-core; the parallel batch
    # axis may be sharded across TensorCores, so first-iteration-only init is
    # unsafe).  All stores below are sublane-aligned blocks.
    pad_ref[0:1, :, :] = jnp.zeros((1, Wp, P), cdt)             # top pad row
    pad_ref[H + 1:H + 2, :, :] = jnp.zeros((1, Wp, P), cdt)     # bottom pad row
    pad_ref[1:H + 1, 0:_CL, :] = jnp.zeros((H, _CL, P), cdt)    # left (incl. pad col)
    pad_ref[1:H + 1, _CL + W:Wp, :] = jnp.zeros((H, Wp - _CL - W, P), cdt)
    pad_ref[1:H + 1, _CL:_CL + W, :] = h1.astype(cdt)           # interior (aligned)

    # ---- conv2 (3x3, stride=1, pad=1, BN2 folded) + bias + relu -------------
    # 9 accumulating MXU matmuls over shifted windows; first tap initializes
    # the accumulator (no zero-fill + add).
    acc = None
    for dy in range(3):
        slab = pad_ref[dy:dy + H, :, :]                         # (H, Wp, P)
        for dx in range(3):
            win = slab[:, _CL - 1 + dx:_CL - 1 + dx + W, :]     # (H, W, P)
            t = jax.lax.dot_general(win, w2_ref[dy, dx], cn,
                                    preferred_element_type=f32)
            acc = t if acc is None else acc + t
    h2 = jnp.maximum(acc + b2_ref[...], 0.0)                    # (H, W, P) f32

    # ---- conv3 (1x1, BN3 folded) + bias -------------------------------------
    h3 = jax.lax.dot_general(h2.astype(cdt), w3_ref[...], cn,
                             preferred_element_type=f32)
    h3 = h3 + b3_ref[...]                                       # (H, W, C) f32

    # ---- residual add (late re-read of x keeps live ranges short) + relu ----
    out = jnp.maximum(h3 + x_ref[0].astype(f32), 0.0)
    out_ref[0] = out.astype(out_ref.dtype)


@functools.partial(jax.jit, static_argnames=("compute_dtype",))
def bottleneck_pallas(x_nhwc, params, *, compute_dtype=jnp.bfloat16, eps=1e-5):
    """Bottleneck forward (eval-mode BN).  NHWC in / NHWC out, stride=1,
    downsample=None.  x_nhwc: (N, H, W, C) with C == planes * 4."""
    (w1, w2, w3,
     g1, be1, m1, v1,
     g2, be2, m2, v2,
     g3, be3, m3, v3) = params

    N, H, W, C = x_nhwc.shape
    P = w1.shape[0]                      # planes
    assert w3.shape[0] == C, "downsample=None requires inplanes == planes*4"

    # Lane-pad channel dims to multiples of 128 (MXU fill / lane-dense stores).
    Pp = _round_up(P, _LANES)
    Cp = _round_up(C, _LANES)

    def fold_bn(gamma, beta, mean, var):
        s = (gamma / jnp.sqrt(var + eps)).astype(jnp.float32)
        b = (beta - mean * s).astype(jnp.float32)
        return s, b

    s1, b1 = fold_bn(g1, be1, m1, v1)
    s2, b2 = fold_bn(g2, be2, m2, v2)
    s3, b3 = fold_bn(g3, be3, m3, v3)

    # Fold BN scales into conv weights in f32, zero-pad channels, cast last.
    w1_m = jnp.transpose(w1[:, :, 0, 0], (1, 0)) * s1[None, :]          # (C, P)
    w2_m = jnp.transpose(w2, (2, 3, 1, 0)) * s2[None, None, None, :]    # (3,3,P,P)
    w3_m = jnp.transpose(w3[:, :, 0, 0], (1, 0)) * s3[None, :]          # (P, C)
    w1_m = jnp.pad(w1_m, ((0, Cp - C), (0, Pp - P))).astype(compute_dtype)
    w2_m = jnp.pad(w2_m, ((0, 0), (0, 0), (0, Pp - P), (0, Pp - P))
                   ).astype(compute_dtype)
    w3_m = jnp.pad(w3_m, ((0, Pp - P), (0, Cp - C))).astype(compute_dtype)
    b1 = jnp.pad(b1, (0, Pp - P)).reshape(1, 1, Pp)
    b2 = jnp.pad(b2, (0, Pp - P)).reshape(1, 1, Pp)
    b3 = jnp.pad(b3, (0, Cp - C)).reshape(1, 1, Cp)

    # Matmul / residual operand dtype (bf16 feeds the MXU; f32 path kept for
    # tight correctness checks).  Padded channel lanes are zero everywhere, so
    # relu(0 + 0) = 0 and they are sliced off below.
    x = x_nhwc.astype(compute_dtype)
    if Cp != C:
        x = jnp.pad(x, ((0, 0), (0, 0), (0, 0), (0, Cp - C)))

    Wp = _round_up(_CL + W + 1, 8)       # padded-slab width (sublane-aligned)

    # ---- VMEM budget / cost hints -------------------------------------------
    act_item = jnp.dtype(compute_dtype).itemsize
    x_blk = H * W * Cp * act_item
    out_blk = H * W * Cp * act_item
    wt_bytes = (Cp * Pp + 9 * Pp * Pp + Pp * Cp) * act_item + (2 * Pp + Cp) * 4
    scratch_bytes = (H + 2) * Wp * Pp * act_item
    inter_bytes = 4 * H * W * max(Pp, Cp) * 4        # f32 intermediates / spill
    need = (2 * (x_blk + out_blk) + 2 * wt_bytes + scratch_bytes + inter_bytes
            + (4 << 20))
    vmem_limit = int(min(max(need, 32 << 20), _VMEM_CAPACITY - (8 << 20)))

    flops = 2 * N * H * W * (Cp * Pp + 9 * Pp * Pp + Pp * Cp)
    bytes_accessed = N * (x_blk + out_blk) + wt_bytes

    call_kwargs = {}
    if hasattr(pl, "CostEstimate"):
        call_kwargs["cost_estimate"] = pl.CostEstimate(
            flops=flops, transcendentals=0, bytes_accessed=bytes_accessed)

    out = pl.pallas_call(
        _bottleneck_kernel,
        out_shape=jax.ShapeDtypeStruct((N, H, W, Cp), compute_dtype),
        grid=(N,),
        in_specs=[
            pl.BlockSpec((1, H, W, Cp), lambda n: (n, 0, 0, 0)),    # x: per-image
            pl.BlockSpec((Cp, Pp), lambda n: (0, 0)),               # w1: resident
            pl.BlockSpec((3, 3, Pp, Pp), lambda n: (0, 0, 0, 0)),   # w2: resident
            pl.BlockSpec((Pp, Cp), lambda n: (0, 0)),               # w3: resident
            pl.BlockSpec((1, 1, Pp), lambda n: (0, 0, 0)),          # b1
            pl.BlockSpec((1, 1, Pp), lambda n: (0, 0, 0)),          # b2
            pl.BlockSpec((1, 1, Cp), lambda n: (0, 0, 0)),          # b3
        ],
        out_specs=pl.BlockSpec((1, H, W, Cp), lambda n: (n, 0, 0, 0)),
        scratch_shapes=[pltpu.VMEM((H + 2, Wp, Pp), compute_dtype)],
        compiler_params=_CompilerParams(
            dimension_semantics=("parallel",),
            vmem_limit_bytes=vmem_limit),
        **call_kwargs,
    )(x, w1_m, w2_m, w3_m, b1, b2, b3)

    if Cp != C:
        out = out[..., :C]
    return out


def bottleneck_reference(x_nchw, params):
    """Pure-JAX NCHW reference matching PyTorch semantics (eval-mode BN)."""
    (w1, w2, w3,
     g1, be1, m1, v1,
     g2, be2, m2, v2,
     g3, be3, m3, v3) = params
    eps = 1e-5

    def conv(x, w, pad):
        return jax.lax.conv_general_dilated(
            x, w, window_strides=(1, 1), padding=[(pad, pad), (pad, pad)],
            dimension_numbers=('NCHW', 'OIHW', 'NCHW'))

    def bn(x, gamma, beta, mean, var):
        s = gamma / jnp.sqrt(var + eps)
        b = beta - mean * s
        return x * s[None, :, None, None] + b[None, :, None, None]

    out = jax.nn.relu(bn(conv(x_nchw, w1, 0), g1, be1, m1, v1))
    out = jax.nn.relu(bn(conv(out, w2, 1), g2, be2, m2, v2))
    out = bn(conv(out, w3, 0), g3, be3, m3, v3)
    return jax.nn.relu(out + x_nchw)


def make_params(key, inplanes, planes):
    ks = jax.random.split(key, 4)
    w1 = 0.1 * jax.random.normal(ks[0], (planes, inplanes, 1, 1), jnp.float32)
    w2 = 0.1 * jax.random.normal(ks[1], (planes, planes, 3, 3), jnp.float32)
    w3 = 0.1 * jax.random.normal(ks[2], (planes * 4, planes, 1, 1), jnp.float32)

    def bn_params(c, off):
        gamma = 1.0 + 0.05 * jnp.arange(c, dtype=jnp.float32)
        beta = 0.01 * jnp.arange(c, dtype=jnp.float32) - off
        mean = 0.02 * jnp.arange(c, dtype=jnp.float32)
        var = 1.0 + 0.1 * jnp.arange(c, dtype=jnp.float32)
        return gamma, beta, mean, var

    g1, be1, m1, v1 = bn_params(planes, 0.01)
    g2, be2, m2, v2 = bn_params(planes, 0.02)
    g3, be3, m3, v3 = bn_params(planes * 4, 0.03)
    return (w1, w2, w3, g1, be1, m1, v1, g2, be2, m2, v2, g3, be3, m3, v3)


if __name__ == "__main__":
    key = jax.random.PRNGKey(0)
    k_x, k_p = jax.random.split(key)

    planes = 4
    inplanes = planes * 4          # 16, required by residual add (downsample=None)
    N, H, W = 2, 16, 16

    x_nchw = jax.random.normal(k_x, (N, inplanes, H, W), jnp.float32)
    params = make_params(k_p, inplanes, planes)

    ref_nchw = jax.block_until_ready(bottleneck_reference(x_nchw, params))
    ref_nhwc = jnp.transpose(ref_nchw, (0, 2, 3, 1))

    # Layout conversion happens once at the model boundary (test harness only);
    # the kernel API itself is NHWC-in / NHWC-out.
    x_nhwc = jnp.transpose(x_nchw, (0, 2, 3, 1))

    # f32 path: tight correctness check of the kernel structure.
    out_f32 = jax.block_until_ready(
        bottleneck_pallas(x_nhwc, params, compute_dtype=jnp.float32))
    assert out_f32.shape == (N, H, W, inplanes), out_f32.shape
    assert jnp.allclose(out_f32, ref_nhwc, atol=1e-4, rtol=1e-4), \
        float(jnp.max(jnp.abs(out_f32 - ref_nhwc)))

    # bf16 matmul / bf16-output path (default, fast): looser tolerance.
    out_bf16 = jax.block_until_ready(
        bottleneck_pallas(x_nhwc, params, compute_dtype=jnp.bfloat16))
    assert out_bf16.shape == (N, H, W, inplanes), out_bf16.shape
    out_bf16_f32 = out_bf16.astype(jnp.float32)
    assert jnp.allclose(out_bf16_f32, ref_nhwc, atol=5e-2, rtol=5e-2), \
        float(jnp.max(jnp.abs(out_bf16_f32 - ref_nhwc)))

    print("KERNEL_OK")
</pallas_src>

<mosaic_0001>
module attributes {stable_mosaic.version = 11 : i64} {
  func.func @_bottleneck_kernel(%arg0: i32, %arg1: memref<1x16x16x128xf32, #tpu.memory_space<vmem>>, %arg2: memref<128x128xf32, #tpu.memory_space<vmem>>, %arg3: memref<3x3x128x128xf32, #tpu.memory_space<vmem>>, %arg4: memref<128x128xf32, #tpu.memory_space<vmem>>, %arg5: memref<1x1x128xf32, #tpu.memory_space<vmem>>, %arg6: memref<1x1x128xf32, #tpu.memory_space<vmem>>, %arg7: memref<1x1x128xf32, #tpu.memory_space<vmem>>, %arg8: memref<1x16x16x128xf32, #tpu.memory_space<vmem>>, %arg9: memref<18x32x128xf32, #tpu.memory_space<vmem>>) attributes {dimension_semantics = [#tpu.dimension_semantics<parallel>], iteration_bounds = array<i64: 2>, scalar_prefetch = 0 : i64, scratch_operands = 1 : i64, tpu.core_type = #tpu.core_type<tc>, window_params = [{transform_indices = @transform_0, window_bounds = array<i64: 1, 16, 16, 128>}, {pipeline_mode = #tpu.pipeline_mode<synchronous>, transform_indices = @transform_1, window_bounds = array<i64: 128, 128>}, {pipeline_mode = #tpu.pipeline_mode<synchronous>, transform_indices = @transform_2, window_bounds = array<i64: 3, 3, 128, 128>}, {pipeline_mode = #tpu.pipeline_mode<synchronous>, transform_indices = @transform_3, window_bounds = array<i64: 128, 128>}, {pipeline_mode = #tpu.pipeline_mode<synchronous>, transform_indices = @transform_4, window_bounds = array<i64: 1, 1, 128>}, {pipeline_mode = #tpu.pipeline_mode<synchronous>, transform_indices = @transform_5, window_bounds = array<i64: 1, 1, 128>}, {pipeline_mode = #tpu.pipeline_mode<synchronous>, transform_indices = @transform_6, window_bounds = array<i64: 1, 1, 128>}, {transform_indices = @transform_7, window_bounds = array<i64: 1, 16, 16, 128>}]} {
    %c0 = arith.constant 0 : index
    %c0_0 = arith.constant 0 : index
    %c0_1 = arith.constant 0 : index
    %c0_2 = arith.constant 0 : index
    %0 = vector.load %arg1[%c0, %c0_0, %c0_1, %c0_2] : memref<1x16x16x128xf32, #tpu.memory_space<vmem>>, vector<1x16x16x128xf32>
    %1 = vector.shape_cast %0 : vector<1x16x16x128xf32> to vector<16x16x128xf32>
    %c0_3 = arith.constant 0 : index
    %c0_4 = arith.constant 0 : index
    %2 = vector.load %arg2[%c0_3, %c0_4] : memref<128x128xf32, #tpu.memory_space<vmem>>, vector<128x128xf32>
    %cst = arith.constant dense<0.000000e+00> : vector<16x16x128xf32>
    %3 = tpu.matmul %1, %2, %cst {dimension_numbers = #tpu.dot_dimension_numbers<[2], [0], [0, 1], [1], [0, 0, 0, 1, 1, 1], [], []>} : vector<16x16x128xf32>, vector<128x128xf32>, vector<16x16x128xf32> -> vector<16x16x128xf32>
    %c0_5 = arith.constant 0 : index
    %c0_6 = arith.constant 0 : index
    %c0_7 = arith.constant 0 : index
    %4 = vector.load %arg5[%c0_5, %c0_6, %c0_7] : memref<1x1x128xf32, #tpu.memory_space<vmem>>, vector<1x1x128xf32>
    %5 = vector.broadcast %4 : vector<1x1x128xf32> to vector<16x16x128xf32>
    %6 = arith.addf %3, %5 : vector<16x16x128xf32>
    %cst_8 = arith.constant 0.000000e+00 : f32
    %7 = vector.broadcast %cst_8 : f32 to vector<16x16x128xf32>
    %8 = arith.maximumf %6, %7 : vector<16x16x128xf32>
    %cst_9 = arith.constant 0.000000e+00 : f32
    %9 = vector.broadcast %cst_9 : f32 to vector<1x32x128xf32>
    %c0_10 = arith.constant 0 : index
    %c0_11 = arith.constant 0 : index
    %c0_12 = arith.constant 0 : index
    %10 = vector.load %arg9[%c0_10, %c0_11, %c0_12] : memref<18x32x128xf32, #tpu.memory_space<vmem>>, vector<1x32x128xf32>
    tpu.vector_store %arg9[%c0_10, %c0_11, %c0_12], %9 {strides = array<i32>} : memref<18x32x128xf32, #tpu.memory_space<vmem>>, vector<1x32x128xf32>,
    %cst_13 = arith.constant 0.000000e+00 : f32
    %11 = vector.broadcast %cst_13 : f32 to vector<1x32x128xf32>
    %c17 = arith.constant 17 : index
    %c0_14 = arith.constant 0 : index
    %c0_15 = arith.constant 0 : index
    %12 = vector.load %arg9[%c17, %c0_14, %c0_15] : memref<18x32x128xf32, #tpu.memory_space<vmem>>, vector<1x32x128xf32>
    tpu.vector_store %arg9[%c17, %c0_14, %c0_15], %11 {strides = array<i32>} : memref<18x32x128xf32, #tpu.memory_space<vmem>>, vector<1x32x128xf32>,
    %cst_16 = arith.constant 0.000000e+00 : f32
    %13 = vector.broadcast %cst_16 : f32 to vector<16x8x128xf32>
    %c1 = arith.constant 1 : index
    %c0_17 = arith.constant 0 : index
    %c0_18 = arith.constant 0 : index
    %14 = vector.load %arg9[%c1, %c0_17, %c0_18] : memref<18x32x128xf32, #tpu.memory_space<vmem>>, vector<16x8x128xf32>
    tpu.vector_store %arg9[%c1, %c0_17, %c0_18], %13 {strides = array<i32>} : memref<18x32x128xf32, #tpu.memory_space<vmem>>, vector<16x8x128xf32>,
    %cst_19 = arith.constant 0.000000e+00 : f32
    %15 = vector.broadcast %cst_19 : f32 to vector<16x8x128xf32>
    %c1_20 = arith.constant 1 : index
    %c24 = arith.constant 24 : index
    %c0_21 = arith.constant 0 : index
    %16 = vector.load %arg9[%c1_20, %c24, %c0_21] : memref<18x32x128xf32, #tpu.memory_space<vmem>>, vector<16x8x128xf32>
    tpu.vector_store %arg9[%c1_20, %c24, %c0_21], %15 {strides = array<i32>} : memref<18x32x128xf32, #tpu.memory_space<vmem>>, vector<16x8x128xf32>,
    %c1_22 = arith.constant 1 : index
    %c8 = arith.constant 8 : index
    %c0_23 = arith.constant 0 : index
    %17 = vector.load %arg9[%c1_22, %c8, %c0_23] : memref<18x32x128xf32, #tpu.memory_space<vmem>>, vector<16x16x128xf32>
    tpu.vector_store %arg9[%c1_22, %c8, %c0_23], %8 {strides = array<i32>} : memref<18x32x128xf32, #tpu.memory_space<vmem>>, vector<16x16x128xf32>,
    %c0_24 = arith.constant 0 : index
    %c0_25 = arith.constant 0 : index
    %c0_26 = arith.constant 0 : index
    %18 = vector.load %arg9[%c0_24, %c0_25, %c0_26] : memref<18x32x128xf32, #tpu.memory_space<vmem>>, vector<16x32x128xf32>
    %19 = vector.extract_strided_slice %18 {offsets = [0, 7, 0], sizes = [16, 16, 128], strides = [1, 1, 1]} : vector<16x32x128xf32> to vector<16x16x128xf32>
    %c0_27 = arith.constant 0 : index
    %c0_28 = arith.constant 0 : index
    %c0_29 = arith.constant 0 : index
    %c0_30 = arith.constant 0 : index
    %20 = vector.load %arg3[%c0_27, %c0_28, %c0_29, %c0_30] : memref<3x3x128x128xf32, #tpu.memory_space<vmem>>, vector<1x1x128x128xf32>
    %21 = vector.shape_cast %20 : vector<1x1x128x128xf32> to vector<128x128xf32>
    %cst_31 = arith.constant dense<0.000000e+00> : vector<16x16x128xf32>
    %22 = tpu.matmul %19, %21, %cst_31 {dimension_numbers = #tpu.dot_dimension_numbers<[2], [0], [0, 1], [1], [0, 0, 0, 1, 1, 1], [], []>} : vector<16x16x128xf32>, vector<128x128xf32>, vector<16x16x128xf32> -> vector<16x16x128xf32>
    %23 = vector.extract_strided_slice %18 {offsets = [0, 8, 0], sizes = [16, 16, 128], strides = [1, 1, 1]} : vector<16x32x128xf32> to vector<16x16x128xf32>
    %c0_32 = arith.constant 0 : index
    %c1_33 = arith.constant 1 : index
    %c0_34 = arith.constant 0 : index
    %c0_35 = arith.constant 0 : index
    %24 = vector.load %arg3[%c0_32, %c1_33, %c0_34, %c0_35] : memref<3x3x128x128xf32, #tpu.memory_space<vmem>>, vector<1x1x128x128xf32>
    %25 = vector.shape_cast %24 : vector<1x1x128x128xf32> to vector<128x128xf32>
    %cst_36 = arith.constant dense<0.000000e+00> : vector<16x16x128xf32>
    %26 = tpu.matmul %23, %25, %cst_36 {dimension_numbers = #tpu.dot_dimension_numbers<[2], [0], [0, 1], [1], [0, 0, 0, 1, 1, 1], [], []>} : vector<16x16x128xf32>, vector<128x128xf32>, vector<16x16x128xf32> -> vector<16x16x128xf32>
    %27 = arith.addf %22, %26 : vector<16x16x128xf32>
    %28 = vector.extract_strided_slice %18 {offsets = [0, 9, 0], sizes = [16, 16, 128], strides = [1, 1, 1]} : vector<16x32x128xf32> to vector<16x16x128xf32>
    %c0_37 = arith.constant 0 : index
    %c2 = arith.constant 2 : index
    %c0_38 = arith.constant 0 : index
    %c0_39 = arith.constant 0 : index
    %29 = vector.load %arg3[%c0_37, %c2, %c0_38, %c0_39] : memref<3x3x128x128xf32, #tpu.memory_space<vmem>>, vector<1x1x128x128xf32>
    %30 = vector.shape_cast %29 : vector<1x1x128x128xf32> to vector<128x128xf32>
    %cst_40 = arith.constant dense<0.000000e+00> : vector<16x16x128xf32>
    %31 = tpu.matmul %28, %30, %cst_40 {dimension_numbers = #tpu.dot_dimension_numbers<[2], [0], [0, 1], [1], [0, 0, 0, 1, 1, 1], [], []>} : vector<16x16x128xf32>, vector<128x128xf32>, vector<16x16x128xf32> -> vector<16x16x128xf32>
    %32 = arith.addf %27, %31 : vector<16x16x128xf32>
    %c1_41 = arith.constant 1 : index
    %c0_42 = arith.constant 0 : index
    %c0_43 = arith.constant 0 : index
    %33 = vector.load %arg9[%c1_41, %c0_42, %c0_43] : memref<18x32x128xf32, #tpu.memory_space<vmem>>, vector<16x32x128xf32>
    %34 = vector.extract_strided_slice %33 {offsets = [0, 7, 0], sizes = [16, 16, 128], strides = [1, 1, 1]} : vector<16x32x128xf32> to vector<16x16x128xf32>
    %c1_44 = arith.constant 1 : index
    %c0_45 = arith.constant 0 : index
    %c0_46 = arith.constant 0 : index
    %c0_47 = arith.constant 0 : index
    %35 = vector.load %arg3[%c1_44, %c0_45, %c0_46, %c0_47] : memref<3x3x128x128xf32, #tpu.memory_space<vmem>>, vector<1x1x128x128xf32>
    %36 = vector.shape_cast %35 : vector<1x1x128x128xf32> to vector<128x128xf32>
    %cst_48 = arith.constant dense<0.000000e+00> : vector<16x16x128xf32>
    %37 = tpu.matmul %34, %36, %cst_48 {dimension_numbers = #tpu.dot_dimension_numbers<[2], [0], [0, 1], [1], [0, 0, 0, 1, 1, 1], [], []>} : vector<16x16x128xf32>, vector<128x128xf32>, vector<16x16x128xf32> -> vector<16x16x128xf32>
    %38 = arith.addf %32, %37 : vector<16x16x128xf32>
    %39 = vector.extract_strided_slice %33 {offsets = [0, 8, 0], sizes = [16, 16, 128], strides = [1, 1, 1]} : vector<16x32x128xf32> to vector<16x16x128xf32>
    %c1_49 = arith.constant 1 : index
    %c1_50 = arith.constant 1 : index
    %c0_51 = arith.constant 0 : index
    %c0_52 = arith.constant 0 : index
    %40 = vector.load %arg3[%c1_49, %c1_50, %c0_51, %c0_52] : memref<3x3x128x128xf32, #tpu.memory_space<vmem>>, vector<1x1x128x128xf32>
    %41 = vector.shape_cast %40 : vector<1x1x128x128xf32> to vector<128x128xf32>
    %cst_53 = arith.constant dense<0.000000e+00> : vector<16x16x128xf32>
    %42 = tpu.matmul %39, %41, %cst_53 {dimension_numbers = #tpu.dot_dimension_numbers<[2], [0], [0, 1], [1], [0, 0, 0, 1, 1, 1], [], []>} : vector<16x16x128xf32>, vector<128x128xf32>, vector<16x16x128xf32> -> vector<16x16x128xf32>
    %43 = arith.addf %38, %42 : vector<16x16x128xf32>
    %44 = vector.extract_strided_slice %33 {offsets = [0, 9, 0], sizes = [16, 16, 128], strides = [1, 1, 1]} : vector<16x32x128xf32> to vector<16x16x128xf32>
    %c1_54 = arith.constant 1 : index
    %c2_55 = arith.constant 2 : index
    %c0_56 = arith.constant 0 : index
    %c0_57 = arith.constant 0 : index
    %45 = vector.load %arg3[%c1_54, %c2_55, %c0_56, %c0_57] : memref<3x3x128x128xf32, #tpu.memory_space<vmem>>, vector<1x1x128x128xf32>
    %46 = vector.shape_cast %45 : vector<1x1x128x128xf32> to vector<128x128xf32>
    %cst_58 = arith.constant dense<0.000000e+00> : vector<16x16x128xf32>
    %47 = tpu.matmul %44, %46, %cst_58 {dimension_numbers = #tpu.dot_dimension_numbers<[2], [0], [0, 1], [1], [0, 0, 0, 1, 1, 1], [], []>} : vector<16x16x128xf32>, vector<128x128xf32>, vector<16x16x128xf32> -> vector<16x16x128xf32>
    %48 = arith.addf %43, %47 : vector<16x16x128xf32>
    %c2_59 = arith.constant 2 : index
    %c0_60 = arith.constant 0 : index
    %c0_61 = arith.constant 0 : index
    %49 = vector.load %arg9[%c2_59, %c0_60, %c0_61] : memref<18x32x128xf32, #tpu.memory_space<vmem>>, vector<16x32x128xf32>
    %50 = vector.extract_strided_slice %49 {offsets = [0, 7, 0], sizes = [16, 16, 128], strides = [1, 1, 1]} : vector<16x32x128xf32> to vector<16x16x128xf32>
    %c2_62 = arith.constant 2 : index
    %c0_63 = arith.constant 0 : index
    %c0_64 = arith.constant 0 : index
    %c0_65 = arith.constant 0 : index
    %51 = vector.load %arg3[%c2_62, %c0_63, %c0_64, %c0_65] : memref<3x3x128x128xf32, #tpu.memory_space<vmem>>, vector<1x1x128x128xf32>
    %52 = vector.shape_cast %51 : vector<1x1x128x128xf32> to vector<128x128xf32>
    %cst_66 = arith.constant dense<0.000000e+00> : vector<16x16x128xf32>
    %53 = tpu.matmul %50, %52, %cst_66 {dimension_numbers = #tpu.dot_dimension_numbers<[2], [0], [0, 1], [1], [0, 0, 0, 1, 1, 1], [], []>} : vector<16x16x128xf32>, vector<128x128xf32>, vector<16x16x128xf32> -> vector<16x16x128xf32>
    %54 = arith.addf %48, %53 : vector<16x16x128xf32>
    %55 = vector.extract_strided_slice %49 {offsets = [0, 8, 0], sizes = [16, 16, 128], strides = [1, 1, 1]} : vector<16x32x128xf32> to vector<16x16x128xf32>
    %c2_67 = arith.constant 2 : index
    %c1_68 = arith.constant 1 : index
    %c0_69 = arith.constant 0 : index
    %c0_70 = arith.constant 0 : index
    %56 = vector.load %arg3[%c2_67, %c1_68, %c0_69, %c0_70] : memref<3x3x128x128xf32, #tpu.memory_space<vmem>>, vector<1x1x128x128xf32>
    %57 = vector.shape_cast %56 : vector<1x1x128x128xf32> to vector<128x128xf32>
    %cst_71 = arith.constant dense<0.000000e+00> : vector<16x16x128xf32>
    %58 = tpu.matmul %55, %57, %cst_71 {dimension_numbers = #tpu.dot_dimension_numbers<[2], [0], [0, 1], [1], [0, 0, 0, 1, 1, 1], [], []>} : vector<16x16x128xf32>, vector<128x128xf32>, vector<16x16x128xf32> -> vector<16x16x128xf32>
    %59 = arith.addf %54, %58 : vector<16x16x128xf32>
    %60 = vector.extract_strided_slice %49 {offsets = [0, 9, 0], sizes = [16, 16, 128], strides = [1, 1, 1]} : vector<16x32x128xf32> to vector<16x16x128xf32>
    %c2_72 = arith.constant 2 : index
    %c2_73 = arith.constant 2 : index
    %c0_74 = arith.constant 0 : index
    %c0_75 = arith.constant 0 : index
    %61 = vector.load %arg3[%c2_72, %c2_73, %c0_74, %c0_75] : memref<3x3x128x128xf32, #tpu.memory_space<vmem>>, vector<1x1x128x128xf32>
    %62 = vector.shape_cast %61 : vector<1x1x128x128xf32> to vector<128x128xf32>
    %cst_76 = arith.constant dense<0.000000e+00> : vector<16x16x128xf32>
    %63 = tpu.matmul %60, %62, %cst_76 {dimension_numbers = #tpu.dot_dimension_numbers<[2], [0], [0, 1], [1], [0, 0, 0, 1, 1, 1], [], []>} : vector<16x16x128xf32>, vector<128x128xf32>, vector<16x16x128xf32> -> vector<16x16x128xf32>
    %64 = arith.addf %59, %63 : vector<16x16x128xf32>
    %c0_77 = arith.constant 0 : index
    %c0_78 = arith.constant 0 : index
    %c0_79 = arith.constant 0 : index
    %65 = vector.load %arg6[%c0_77, %c0_78, %c0_79] : memref<1x1x128xf32, #tpu.memory_space<vmem>>, vector<1x1x128xf32>
    %66 = vector.broadcast %65 : vector<1x1x128xf32> to vector<16x16x128xf32>
    %67 = arith.addf %64, %66 : vector<16x16x128xf32>
    %cst_80 = arith.constant 0.000000e+00 : f32
    %68 = vector.broadcast %cst_80 : f32 to vector<16x16x128xf32>
    %69 = arith.maximumf %67, %68 : vector<16x16x128xf32>
    %c0_81 = arith.constant 0 : index
    %c0_82 = arith.constant 0 : index
    %70 = vector.load %arg4[%c0_81, %c0_82] : memref<128x128xf32, #tpu.memory_space<vmem>>, vector<128x128xf32>
    %cst_83 = arith.constant dense<0.000000e+00> : vector<16x16x128xf32>
    %71 = tpu.matmul %69, %70, %cst_83 {dimension_numbers = #tpu.dot_dimension_numbers<[2], [0], [0, 1], [1], [0, 0, 0, 1, 1, 1], [], []>} : vector<16x16x128xf32>, vector<128x128xf32>, vector<16x16x128xf32> -> vector<16x16x128xf32>
    %c0_84 = arith.constant 0 : index
    %c0_85 = arith.constant 0 : index
    %c0_86 = arith.constant 0 : index
    %72 = vector.load %arg7[%c0_84, %c0_85, %c0_86] : memref<1x1x128xf32, #tpu.memory_space<vmem>>, vector<1x1x128xf32>
    %73 = vector.broadcast %72 : vector<1x1x128xf32> to vector<16x16x128xf32>
    %74 = arith.addf %71, %73 : vector<16x16x128xf32>
    %c0_87 = arith.constant 0 : index
    %c0_88 = arith.constant 0 : index
    %c0_89 = arith.constant 0 : index
    %c0_90 = arith.constant 0 : index
    %75 = vector.load %arg1[%c0_87, %c0_88, %c0_89, %c0_90] : memref<1x16x16x128xf32, #tpu.memory_space<vmem>>, vector<1x16x16x128xf32>
    %76 = vector.shape_cast %75 : vector<1x16x16x128xf32> to vector<16x16x128xf32>
    %77 = arith.addf %74, %76 : vector<16x16x128xf32>
    %cst_91 = arith.constant 0.000000e+00 : f32
    %78 = vector.broadcast %cst_91 : f32 to vector<16x16x128xf32>
    %79 = arith.maximumf %77, %78 : vector<16x16x128xf32>
    %c0_92 = arith.constant 0 : index
    %c0_93 = arith.constant 0 : index
    %c0_94 = arith.constant 0 : index
    %c0_95 = arith.constant 0 : index
    %80 = vector.load %arg8[%c0_92, %c0_93, %c0_94, %c0_95] : memref<1x16x16x128xf32, #tpu.memory_space<vmem>>, vector<1x16x16x128xf32>
    %81 = vector.shape_cast %80 : vector<1x16x16x128xf32> to vector<16x16x128xf32>
    %82 = vector.shape_cast %79 : vector<16x16x128xf32> to vector<1x16x16x128xf32>
    tpu.vector_store %arg8[%c0_92, %c0_93, %c0_94, %c0_95], %82 {strides = array<i32>} : memref<1x16x16x128xf32, #tpu.memory_space<vmem>>, vector<1x16x16x128xf32>,
    return
  }
  func.func @transform_0(%arg0: i32) -> (i32, i32, i32, i32) {
    %c0_i32 = arith.constant 0 : i32
    %c0_i32_0 = arith.constant 0 : i32
    %c0_i32_1 = arith.constant 0 : i32
    %c0_i32_2 = arith.constant 0 : i32
    return %arg0, %c0_i32, %c0_i32_0, %c0_i32_1 : i32, i32, i32, i32
  }
  func.func @transform_1(%arg0: i32) -> (i32, i32) {
    %c0_i32 = arith.constant 0 : i32
    %c0_i32_0 = arith.constant 0 : i32
    %c0_i32_1 = arith.constant 0 : i32
    return %c0_i32, %c0_i32_0 : i32, i32
  }
  func.func @transform_2(%arg0: i32) -> (i32, i32, i32, i32) {
    %c0_i32 = arith.constant 0 : i32
    %c0_i32_0 = arith.constant 0 : i32
    %c0_i32_1 = arith.constant 0 : i32
    %c0_i32_2 = arith.constant 0 : i32
    %c0_i32_3 = arith.constant 0 : i32
    return %c0_i32, %c0_i32_0, %c0_i32_1, %c0_i32_2 : i32, i32, i32, i32
  }
  func.func @transform_3(%arg0: i32) -> (i32, i32) {
    %c0_i32 = arith.constant 0 : i32
    %c0_i32_0 = arith.constant 0 : i32
    %c0_i32_1 = arith.constant 0 : i32
    return %c0_i32, %c0_i32_0 : i32, i32
  }
  func.func @transform_4(%arg0: i32) -> (i32, i32, i32) {
    %c0_i32 = arith.constant 0 : i32
    %c0_i32_0 = arith.constant 0 : i32
    %c0_i32_1 = arith.constant 0 : i32
    %c0_i32_2 = arith.constant 0 : i32
    return %c0_i32, %c0_i32_0, %c0_i32_1 : i32, i32, i32
  }
  func.func @transform_5(%arg0: i32) -> (i32, i32, i32) {
    %c0_i32 = arith.constant 0 : i32
    %c0_i32_0 = arith.constant 0 : i32
    %c0_i32_1 = arith.constant 0 : i32
    %c0_i32_2 = arith.constant 0 : i32
    return %c0_i32, %c0_i32_0, %c0_i32_1 : i32, i32, i32
  }
  func.func @transform_6(%arg0: i32) -> (i32, i32, i32) {
    %c0_i32 = arith.constant 0 : i32
    %c0_i32_0 = arith.constant 0 : i32
    %c0_i32_1 = arith.constant 0 : i32
    %c0_i32_2 = arith.constant 0 : i32
    return %c0_i32, %c0_i32_0, %c0_i32_1 : i32, i32, i32
  }
  func.func @transform_7(%arg0: i32) -> (i32, i32, i32, i32) {
    %c0_i32 = arith.constant 0 : i32
    %c0_i32_0 = arith.constant 0 : i32
    %c0_i32_1 = arith.constant 0 : i32
    %c0_i32_2 = arith.constant 0 : i32
    return %arg0, %c0_i32, %c0_i32_0, %c0_i32_1 : i32, i32, i32, i32
  }
}

</mosaic_0001>

<llo_original>
// kernel: bottleneck_pallas.1
$region0: #{bottleneck_pallas.1}
  #allocation0 [shape = 'u32[]', space=smem, size = 0x4, offset = 0x4, fixed_abs, tag = 'smem constant byte address 0x4 - core index']
  #allocation1 [shape = 'u32[144,128]{1,0:T(1,128)}', space=vmem, size = 0x12000, scoped, tag = 'internal scratch']
  #allocation2 [shape = 'f32[18,32,128]{2,1,0:T(8,128)}', space=vmem, size = 0x48000, scoped, tag = 'scratch operand']
  %s0 = inlined_call_operand.vmem [shape: f32[2,16,16,128], index: 0, kind: input, shape index: {}]
  %s1 = inlined_call_operand.vmem [shape: f32[128,128], index: 1, kind: input, shape index: {}]
  %s2 = inlined_call_operand.vmem [shape: f32[3,3,128,128], index: 2, kind: input, shape index: {}]
  %s3 = inlined_call_operand.vmem [shape: f32[128,128], index: 3, kind: input, shape index: {}]
  %s4 = inlined_call_operand.vmem [shape: f32[1,1,128], index: 4, kind: input, shape index: {}]
  %s5 = inlined_call_operand.vmem [shape: f32[1,1,128], index: 5, kind: input, shape index: {}]
  %s6 = inlined_call_operand.vmem [shape: f32[1,1,128], index: 6, kind: input, shape index: {}]
  %s7 = inlined_call_operand.hbm [shape: f32[2,16,16,128], index: 7, kind: output, shape index: {}]
  %s8 = sld [smem:[#allocation0]]
  $region61: #{bottleneck_pallas.1} parent=0
    _
  %s10 = ssub.s32 1, %s8
  %s11 = scalar_select 0, %s10, %s8
  $region1: #{bottleneck_pallas.1} parent=0
    #allocation3 [shape = 'u8[262144]{0}', space=vmem, size = 0x40000, scoped, tag = 'output window, operand 0']
    #allocation4 [shape = 's32[2]{0}', space=sflag, size = 0x8, scoped, tag = 'scoped memory for bottleneck_pallas.1']
    %12 = vsyncpa [#allocation4], 0
    %s13 = scalar_lea.sflag [#allocation4], 1
    %14 = vsyncpa %s13, 0
    loop: start=0, step=1, limit=4
    $region2: #{bottleneck_pallas.1} parent=1 // loop_pre_header
      _
    $region3: #{bottleneck_pallas.1} parent=1 // loop_header
      %s16 = sphi 0, %s20
      %p17 = scmp.ge.s32.totalorder %s16, 4
      %s26 = sphi 0, %s28
      %s29 = sphi 0, %s26
      %s30 = sphi 0, %s29
      %s46 = sphi 0, %s30
      %s50 = sphi 0, %s50
      %s52 = sphi 0, %s50
      %s53 = sphi 0, %s52
      %s67 = sphi 0, %s53
      %s71 = sphi 0, %s71
      %s73 = sphi 0, %s71
      %s74 = sphi 0, %s73
      %s88 = sphi 0, %s74
      %s92 = sphi 0, %s92
      %s94 = sphi 0, %s92
      %s95 = sphi 0, %s94
      %s109 = sphi 0, %s95
      %s113 = sphi 0, %s113
      %s115 = sphi 0, %s113
      %s116 = sphi 0, %s115
      %s130 = sphi 0, %s116
      %s134 = sphi 0, %s134
      %s136 = sphi 0, %s134
      %s137 = sphi 0, %s136
      %s151 = sphi 0, %s137
      %s155 = sphi 0, %s155
      %s157 = sphi 0, %s155
      %s158 = sphi 0, %s157
      %s172 = sphi 0, %s158
      %s178 = sphi 0, %s180
      %s181 = sphi 0, %s178
      %s182 = sphi 0, %s181
      %s198 = sphi 0, %s182
    $region4: #{bottleneck_pallas.1} parent=1 // loop_header_branch
      %19 = sbr.rel (%p17) target = $region8
    $region5: #{bottleneck_pallas.1} parent=1 // loop_body
      %s21 = ssub.s32 %s16, 1
      %s22 = ssub.s32 %s16, 2
      %s23 = sadd.s32 %s16, 1
      %s24 = ssub.s32 %s16, %s23
      %p25 = scmp.eq.s32.totalorder %s24, 0
      %s27 = sadd.s32 %s26, 1
      %s28 = scalar_select %p25, %s26, %s27
      %p31 = pneg %p25
      %p32 = scmp.eq.s32.totalorder %s16, 1
      %p33 = por %p31, %p32
      %p34 = scmp.ne.s32.totalorder %s26, %s29
      %p35 = scmp.eq.s32.totalorder %s16, 0
      %p36 = por %p34, %p35
      %p37 = scmp.ne.s32.totalorder %s26, %s29
      %p38 = scmp.eq.s32.totalorder %s21, 1
      %p39 = por %p37, %p38
      %p40 = scmp.ne.s32.totalorder %s29, %s30
      %p41 = scmp.eq.s32.totalorder %s21, 0
      %p42 = por %p40, %p41
      %p43 = scmp.ne.s32.totalorder %s29, %s30
      %p44 = scmp.eq.s32.totalorder %s22, 1
      %p45 = por %p43, %p44
      %p47 = scmp.ne.s32.totalorder %s30, %s46
      %p48 = scmp.eq.s32.totalorder %s22, 0
      %p49 = por %p47, %p48
      %s51 = sadd.s32 %s50, 1
      %p54 = scmp.eq.s32.totalorder %s16, 1
      %p55 = scmp.ne.s32.totalorder %s50, %s52
      %p56 = scmp.eq.s32.totalorder %s16, 0
      %p57 = por %p55, %p56
      %p58 = scmp.ne.s32.totalorder %s50, %s52
      %p59 = scmp.eq.s32.totalorder %s21, 1
      %p60 = por %p58, %p59
      %p61 = scmp.ne.s32.totalorder %s52, %s53
      %p62 = scmp.eq.s32.totalorder %s21, 0
      %p63 = por %p61, %p62
      %p64 = scmp.ne.s32.totalorder %s52, %s53
      %p65 = scmp.eq.s32.totalorder %s22, 1
      %p66 = por %p64, %p65
      %p68 = scmp.ne.s32.totalorder %s53, %s67
      %p69 = scmp.eq.s32.totalorder %s22, 0
      %p70 = por %p68, %p69
      %s72 = sadd.s32 %s71, 1
      %p75 = scmp.eq.s32.totalorder %s16, 1
      %p76 = scmp.ne.s32.totalorder %s71, %s73
      %p77 = scmp.eq.s32.totalorder %s16, 0
      %p78 = por %p76, %p77
      %p79 = scmp.ne.s32.totalorder %s71, %s73
      %p80 = scmp.eq.s32.totalorder %s21, 1
      %p81 = por %p79, %p80
      %p82 = scmp.ne.s32.totalorder %s73, %s74
      %p83 = scmp.eq.s32.totalorder %s21, 0
      %p84 = por %p82, %p83
      %p85 = scmp.ne.s32.totalorder %s73, %s74
      %p86 = scmp.eq.s32.totalorder %s22, 1
      %p87 = por %p85, %p86
      %p89 = scmp.ne.s32.totalorder %s74, %s88
      %p90 = scmp.eq.s32.totalorder %s22, 0
      %p91 = por %p89, %p90
      %s93 = sadd.s32 %s92, 1
      %p96 = scmp.eq.s32.totalorder %s16, 1
      %p97 = scmp.ne.s32.totalorder %s92, %s94
      %p98 = scmp.eq.s32.totalorder %s16, 0
      %p99 = por %p97, %p98
      %p100 = scmp.ne.s32.totalorder %s92, %s94
      %p101 = scmp.eq.s32.totalorder %s21, 1
      %p102 = por %p100, %p101
      %p103 = scmp.ne.s32.totalorder %s94, %s95
      %p104 = scmp.eq.s32.totalorder %s21, 0
      %p105 = por %p103, %p104
      %p106 = scmp.ne.s32.totalorder %s94, %s95
      %p107 = scmp.eq.s32.totalorder %s22, 1
      %p108 = por %p106, %p107
      %p110 = scmp.ne.s32.totalorder %s95, %s109
      %p111 = scmp.eq.s32.totalorder %s22, 0
      %p112 = por %p110, %p111
      %s114 = sadd.s32 %s113, 1
      %p117 = scmp.eq.s32.totalorder %s16, 1
      %p118 = scmp.ne.s32.totalorder %s113, %s115
      %p119 = scmp.eq.s32.totalorder %s16, 0
      %p120 = por %p118, %p119
      %p121 = scmp.ne.s32.totalorder %s113, %s115
      %p122 = scmp.eq.s32.totalorder %s21, 1
      %p123 = por %p121, %p122
      %p124 = scmp.ne.s32.totalorder %s115, %s116
      %p125 = scmp.eq.s32.totalorder %s21, 0
      %p126 = por %p124, %p125
      %p127 = scmp.ne.s32.totalorder %s115, %s116
      %p128 = scmp.eq.s32.totalorder %s22, 1
      %p129 = por %p127, %p128
      %p131 = scmp.ne.s32.totalorder %s116, %s130
      %p132 = scmp.eq.s32.totalorder %s22, 0
      %p133 = por %p131, %p132
      %s135 = sadd.s32 %s134, 1
      %p138 = scmp.eq.s32.totalorder %s16, 1
      %p139 = scmp.ne.s32.totalorder %s134, %s136
      %p140 = scmp.eq.s32.totalorder %s16, 0
      %p141 = por %p139, %p140
      %p142 = scmp.ne.s32.totalorder %s134, %s136
      %p143 = scmp.eq.s32.totalorder %s21, 1
      %p144 = por %p142, %p143
      %p145 = scmp.ne.s32.totalorder %s136, %s137
      %p146 = scmp.eq.s32.totalorder %s21, 0
      %p147 = por %p145, %p146
      %p148 = scmp.ne.s32.totalorder %s136, %s137
      %p149 = scmp.eq.s32.totalorder %s22, 1
      %p150 = por %p148, %p149
      %p152 = scmp.ne.s32.totalorder %s137, %s151
      %p153 = scmp.eq.s32.totalorder %s22, 0
      %p154 = por %p152, %p153
      %s156 = sadd.s32 %s155, 1
      %p159 = scmp.eq.s32.totalorder %s16, 1
      %p160 = scmp.ne.s32.totalorder %s155, %s157
      %p161 = scmp.eq.s32.totalorder %s16, 0
      %p162 = por %p160, %p161
      %p163 = scmp.ne.s32.totalorder %s155, %s157
      %p164 = scmp.eq.s32.totalorder %s21, 1
      %p165 = por %p163, %p164
      %p166 = scmp.ne.s32.totalorder %s157, %s158
      %p167 = scmp.eq.s32.totalorder %s21, 0
      %p168 = por %p166, %p167
      %p169 = scmp.ne.s32.totalorder %s157, %s158
      %p170 = scmp.eq.s32.totalorder %s22, 1
      %p171 = por %p169, %p170
      %p173 = scmp.ne.s32.totalorder %s158, %s172
      %p174 = scmp.eq.s32.totalorder %s22, 0
      %p175 = por %p173, %p174
      %s176 = ssub.s32 %s16, %s23
      %p177 = scmp.eq.s32.totalorder %s176, 0
      %s179 = sadd.s32 %s178, 1
      %s180 = scalar_select %p177, %s178, %s179
      %p183 = pneg %p177
      %p184 = scmp.eq.s32.totalorder %s16, 1
      %p185 = por %p183, %p184
      %p186 = scmp.ne.s32.totalorder %s178, %s181
      %p187 = scmp.eq.s32.totalorder %s16, 0
      %p188 = por %p186, %p187
      %p189 = scmp.ne.s32.totalorder %s178, %s181
      %p190 = scmp.eq.s32.totalorder %s21, 1
      %p191 = por %p189, %p190
      %p192 = scmp.ne.s32.totalorder %s181, %s182
      %p193 = scmp.eq.s32.totalorder %s21, 0
      %p194 = por %p192, %p193
      %p195 = scmp.ne.s32.totalorder %s181, %s182
      %p196 = scmp.eq.s32.totalorder %s22, 1
      %p197 = por %p195, %p196
      %p199 = scmp.ne.s32.totalorder %s182, %s198
      %p200 = scmp.eq.s32.totalorder %s22, 0
      %p201 = por %p199, %p200
      %p202 = scmp.le.s32.totalorder 1, %s16
      %p203 = scmp.lt.s32.totalorder %s16, 3
      %p204 = pnand %p202, %p203
      %p205 = pneg %p204
      // Predicated region
      $region9: #{bottleneck_pallas.1} parent=5 // pred_check
        _
      $region10: #{bottleneck_pallas.1} parent=5 // pred_check_branch
        %207 = sbr.rel (%p204) target = $region12
      $region11: #{bottleneck_pallas.1} parent=5 // pred_region
        %s208 = ssub.s32 %s16, 1
        // Predicated region
        $region13: #{bottleneck_pallas.1} parent=11 // pred_check
          %p209 = pneg %p63
        $region14: #{bottleneck_pallas.1} parent=11 // pred_check_branch
          %211 = sbr.rel (%p209) target = $region16
        $region15: #{bottleneck_pallas.1} parent=11 // pred_region
          _
        $region16: #{bottleneck_pallas.1} parent=11 // pred_fallthru
          _
        // Predicated region
        $region17: #{bottleneck_pallas.1} parent=11 // pred_check
          %p212 = pneg %p84
        $region18: #{bottleneck_pallas.1} parent=11 // pred_check_branch
          %214 = sbr.rel (%p212) target = $region20
        $region19: #{bottleneck_pallas.1} parent=11 // pred_region
          _
        $region20: #{bottleneck_pallas.1} parent=11 // pred_fallthru
          _
        // Predicated region
        $region21: #{bottleneck_pallas.1} parent=11 // pred_check
          %p215 = pneg %p105
        $region22: #{bottleneck_pallas.1} parent=11 // pred_check_branch
          %217 = sbr.rel (%p215) target = $region24
        $region23: #{bottleneck_pallas.1} parent=11 // pred_region
          _
        $region24: #{bottleneck_pallas.1} parent=11 // pred_fallthru
          _
        // Predicated region
        $region25: #{bottleneck_pallas.1} parent=11 // pred_check
          %p218 = pneg %p126
        $region26: #{bottleneck_pallas.1} parent=11 // pred_check_branch
          %220 = sbr.rel (%p218) target = $region28
        $region27: #{bottleneck_pallas.1} parent=11 // pred_region
          _
        $region28: #{bottleneck_pallas.1} parent=11 // pred_fallthru
          _
        // Predicated region
        $region29: #{bottleneck_pallas.1} parent=11 // pred_check
          %p221 = pneg %p147
        $region30: #{bottleneck_pallas.1} parent=11 // pred_check_branch
          %223 = sbr.rel (%p221) target = $region32
        $region31: #{bottleneck_pallas.1} parent=11 // pred_region
          _
        $region32: #{bottleneck_pallas.1} parent=11 // pred_fallthru
          _
        // Predicated region
        $region33: #{bottleneck_pallas.1} parent=11 // pred_check
          %p224 = pneg %p168
        $region34: #{bottleneck_pallas.1} parent=11 // pred_check_branch
          %226 = sbr.rel (%p224) target = $region36
        $region35: #{bottleneck_pallas.1} parent=11 // pred_region
          _
        $region36: #{bottleneck_pallas.1} parent=11 // pred_fallthru
          _
      $region12: #{bottleneck_pallas.1} parent=5 // pred_fallthru
        _
      %p227 = scmp.lt.s32.totalorder %s16, 2
      // Predicated region
      $region37: #{bottleneck_pallas.1} parent=5 // pred_check
        %p228 = pneg %p227
      $region38: #{bottleneck_pallas.1} parent=5 // pred_check_branch
        %230 = sbr.rel (%p228) target = $region40
      $region39: #{bottleneck_pallas.1} parent=5 // pred_region
        // Predicated region
        $region41: #{bottleneck_pallas.1} parent=39 // pred_check
          %p231 = pneg %p36
        $region42: #{bottleneck_pallas.1} parent=39 // pred_check_branch
          %233 = sbr.rel (%p231) target = $region44
        $region43: #{bottleneck_pallas.1} parent=39 // pred_region
          %p234 = scmp.lt.s32.totalorder %s16, 1
          %s235 = scalar_select %p234, %s16, 1
          %s236 = smul.addr %s235, 32
          %s237 = smul.addr %s236, 8
          %s238 = scalar_lea.vmem %s0, %s237
        $region44: #{bottleneck_pallas.1} parent=39 // pred_fallthru
          _
      $region40: #{bottleneck_pallas.1} parent=5 // pred_fallthru
        _
      %p239 = scmp.le.s32.totalorder 1, %s16
      %p240 = scmp.lt.s32.totalorder %s16, 3
      %p241 = pnand %p239, %p240
      %p242 = pneg %p241
      // Predicated region
      $region45: #{bottleneck_pallas.1} parent=5 // pred_check
        _
      $region46: #{bottleneck_pallas.1} parent=5 // pred_check_branch
        %244 = sbr.rel (%p241) target = $region48
      $region47: #{bottleneck_pallas.1} parent=5 // pred_region
        %s245 = ssub.s32 %s16, 1
        %p246 = scmp.lt.s32.totalorder %s21, 1
        %s247 = scalar_select %p246, %s21, 1
        %s248 = smul.addr %s247, 32
        %s249 = smul.addr %s248, 8
        %s250 = scalar_lea.vmem %s0, %s249
        %p251 = pneg %p42
        %p252 = pneg %p39
        %p253 = pneg %p63
        %p254 = pneg %p60
        %p255 = pneg %p84
        %p256 = pneg %p81
        %p257 = pneg %p105
        %p258 = pneg %p102
        %p259 = pneg %p126
        %p260 = pneg %p123
        %p261 = pneg %p147
        %p262 = pneg %p144
        %p263 = pneg %p168
        %p264 = pneg %p165
        %p265 = pneg %p194
        %p266 = pneg %p191
        %s267 = sand.u32 %s181, 1
        %s268 = scalar_lea.sflag [#allocation4], %s267
        %s269 = sand.u32 %s181, 1
        %s270 = smul.addr %s269, 256
        %s271 = scalar_lea.vmem [#allocation3], %s270
        %p272 = scmp.lt.s32.totalorder %s21, 1
        %s273 = scalar_select %p272, %s21, 1
        %s274 = smul.addr %s273, 32
        %s275 = smul.addr %s274, 8
        %s276 = scalar_lea.vmem %s0, %s275
        %v277 = vld [vmem:[%s276] sm:$0xff]
        %v278 = vld [vmem:[%s276 + $0x8] sm:$0xff]
        %v279 = vld [vmem:[%s276 + $0x10] sm:$0xff]
        %v280 = vld [vmem:[%s276 + $0x18] sm:$0xff]
        %v281 = vld [vmem:[%s276 + $0x20] sm:$0xff]
        %v282 = vld [vmem:[%s276 + $0x28] sm:$0xff]
        %v283 = vld [vmem:[%s276 + $0x30] sm:$0xff]
        %v284 = vld [vmem:[%s276 + $0x38] sm:$0xff]
        %v285 = vld [vmem:[%s276 + $0x40] sm:$0xff]
        %v286 = vld [vmem:[%s276 + $0x48] sm:$0xff]
        %v287 = vld [vmem:[%s276 + $0x50] sm:$0xff]
        %v288 = vld [vmem:[%s276 + $0x58] sm:$0xff]
        %v289 = vld [vmem:[%s276 + $0x60] sm:$0xff]
        %v290 = vld [vmem:[%s276 + $0x68] sm:$0xff]
        %v291 = vld [vmem:[%s276 + $0x70] sm:$0xff]
        %v292 = vld [vmem:[%s276 + $0x78] sm:$0xff]
        %v293 = vld [vmem:[%s276 + $0x80] sm:$0xff]
        %v294 = vld [vmem:[%s276 + $0x88] sm:$0xff]
        %v295 = vld [vmem:[%s276 + $0x90] sm:$0xff]
        %v296 = vld [vmem:[%s276 + $0x98] sm:$0xff]
        %v297 = vld [vmem:[%s276 + $0xa0] sm:$0xff]
        %v298 = vld [vmem:[%s276 + $0xa8] sm:$0xff]
        %v299 = vld [vmem:[%s276 + $0xb0] sm:$0xff]
        %v300 = vld [vmem:[%s276 + $0xb8] sm:$0xff]
        %v301 = vld [vmem:[%s276 + $0xc0] sm:$0xff]
        %v302 = vld [vmem:[%s276 + $0xc8] sm:$0xff]
        %v303 = vld [vmem:[%s276 + $0xd0] sm:$0xff]
        %v304 = vld [vmem:[%s276 + $0xd8] sm:$0xff]
        %v305 = vld [vmem:[%s276 + $0xe0] sm:$0xff]
        %v306 = vld [vmem:[%s276 + $0xe8] sm:$0xff]
        %v307 = vld [vmem:[%s276 + $0xf0] sm:$0xff]
        %v308 = vld [vmem:[%s276 + $0xf8] sm:$0xff]
        %v309 = vld [vmem:[%s1] sm:$0xff]
        %v310 = vld [vmem:[%s1 + $0x8] sm:$0xff]
        %v311 = vld [vmem:[%s1 + $0x10] sm:$0xff]
        %v312 = vld [vmem:[%s1 + $0x18] sm:$0xff]
        %v313 = vld [vmem:[%s1 + $0x20] sm:$0xff]
        %v314 = vld [vmem:[%s1 + $0x28] sm:$0xff]
        %v315 = vld [vmem:[%s1 + $0x30] sm:$0xff]
        %v316 = vld [vmem:[%s1 + $0x38] sm:$0xff]
        %v317 = vld [vmem:[%s1 + $0x40] sm:$0xff]
        %v318 = vld [vmem:[%s1 + $0x48] sm:$0xff]
        %v319 = vld [vmem:[%s1 + $0x50] sm:$0xff]
        %v320 = vld [vmem:[%s1 + $0x58] sm:$0xff]
        %v321 = vld [vmem:[%s1 + $0x60] sm:$0xff]
        %v322 = vld [vmem:[%s1 + $0x68] sm:$0xff]
        %v323 = vld [vmem:[%s1 + $0x70] sm:$0xff]
        %v324 = vld [vmem:[%s1 + $0x78] sm:$0xff]
        %v325 = vld [vmem:[%s4] sm:$0x1]
        %v327 = vlaneseq
        %v328 = vshrl.u32 %v327, 7
        %v329 = vsub.s32 0, %v328
        %v330 = vrot.slane %v325, %v329
        %332 = vmatprep.subr.mxu0 0.0
        %333 = vmatpush1.msra.mxu0 %v309
        %334 = vmatprep.subr.mxu0 0.0
        %335 = vmatpush1.msra.mxu0 %v310
        %336 = vmatprep.subr.mxu0 0.0
        %337 = vmatpush1.msra.mxu0 %v311
        %338 = vmatprep.subr.mxu0 0.0
        %339 = vmatpush1.msra.mxu0 %v312
        %340 = vmatprep.subr.mxu0 0.0
        %341 = vmatpush1.msra.mxu0 %v313
        %342 = vmatprep.subr.mxu0 0.0
        %343 = vmatpush1.msra.mxu0 %v314
        %344 = vmatprep.subr.mxu0 0.0
        %345 = vmatpush1.msra.mxu0 %v315
        %346 = vmatprep.subr.mxu0 0.0
        %347 = vmatpush1.msra.mxu0 %v316
        %348 = vmatprep.subr.mxu0 0.0
        %349 = vmatpush1.msra.mxu0 %v317
        %350 = vmatprep.subr.mxu0 0.0
        %351 = vmatpush1.msra.mxu0 %v318
        %352 = vmatprep.subr.mxu0 0.0
        %353 = vmatpush1.msra.mxu0 %v319
        %354 = vmatprep.subr.mxu0 0.0
        %355 = vmatpush1.msra.mxu0 %v320
        %356 = vmatprep.subr.mxu0 0.0
        %357 = vmatpush1.msra.mxu0 %v321
        %358 = vmatprep.subr.mxu0 0.0
        %359 = vmatpush1.msra.mxu0 %v322
        %360 = vmatprep.subr.mxu0 0.0
        %361 = vmatpush1.msra.mxu0 %v323
        %362 = vmatprep.subr.mxu0 0.0
        %363 = vmatpush1.msra.mxu0 %v324
        %364 = vmatprep.subr.mxu0 0.0
        %365 = vmatpush1.msra.mxu0 0.0
        %366 = vmatprep.subr.mxu0 0.0
        %367 = vmatpush1.msra.mxu0 0.0
        %368 = vmatprep.subr.mxu0 0.0
        %369 = vmatpush1.msra.mxu0 0.0
        %370 = vmatprep.subr.mxu0 0.0
        %371 = vmatpush1.msra.mxu0 0.0
        %372 = vmatprep.subr.mxu0 0.0
        %373 = vmatpush1.msra.mxu0 0.0
        %374 = vmatprep.subr.mxu0 0.0
        %375 = vmatpush1.msra.mxu0 0.0
        %376 = vmatprep.subr.mxu0 0.0
        %377 = vmatpush1.msra.mxu0 0.0
        %378 = vmatprep.subr.mxu0 0.0
        %379 = vmatpush1.msra.mxu0 0.0
        %380 = vmatprep.subr.mxu0 0.0
        %381 = vmatpush1.msra.mxu0 0.0
        %382 = vmatprep.subr.mxu0 0.0
        %383 = vmatpush1.msra.mxu0 0.0
        %384 = vmatprep.subr.mxu0 0.0
        %385 = vmatpush1.msra.mxu0 0.0
        %386 = vmatprep.subr.mxu0 0.0
        %387 = vmatpush1.msra.mxu0 0.0
        %388 = vmatprep.subr.mxu0 0.0
        %389 = vmatpush1.msra.mxu0 0.0
        %390 = vmatprep.subr.mxu0 0.0
        %391 = vmatpush1.msra.mxu0 0.0
        %392 = vmatprep.subr.mxu0 0.0
        %393 = vmatpush1.msra.mxu0 0.0
        %394 = vmatprep.subr.mxu0 0.0
        %395 = vmatpush1.msra.mxu0 0.0
        %396 = vmatprep.mubr.f32.mxu0 0.0
        %397 = vmatmul.mubr.f32.gmra.mrb[0].mxu0 %v277
        %v398 = vpop.f32.mrb[0].mxu0
        %v399 = vadd.f32 %v330, %v398
        %v400 = vpop.f32.mrb[0].mxu0
        %401 = vmatprep.mubr.f32.mxu0 0.0
        %402 = vmatmul.mubr.f32.gmra.mrb[0].mxu0 %v278
        %v403 = vpop.f32.mrb[0].mxu0
        %v404 = vadd.f32 %v330, %v403
        %v405 = vpop.f32.mrb[0].mxu0
        %406 = vmatprep.mubr.f32.mxu0 0.0
        %407 = vmatmul.mubr.f32.gmra.mrb[0].mxu0 %v279
        %v408 = vpop.f32.mrb[0].mxu0
        %v409 = vadd.f32 %v330, %v408
        %v410 = vpop.f32.mrb[0].mxu0
        %411 = vmatprep.mubr.f32.mxu0 0.0
        %412 = vmatmul.mubr.f32.gmra.mrb[0].mxu0 %v280
        %v413 = vpop.f32.mrb[0].mxu0
        %v414 = vadd.f32 %v330, %v413
        %v415 = vpop.f32.mrb[0].mxu0
        %416 = vmatprep.mubr.f32.mxu0 0.0
        %417 = vmatmul.mubr.f32.gmra.mrb[0].mxu0 %v281
        %v418 = vpop.f32.mrb[0].mxu0
        %v419 = vadd.f32 %v330, %v418
        %v420 = vpop.f32.mrb[0].mxu0
        %421 = vmatprep.mubr.f32.mxu0 0.0
        %422 = vmatmul.mubr.f32.gmra.mrb[0].mxu0 %v282
        %v423 = vpop.f32.mrb[0].mxu0
        %v424 = vadd.f32 %v330, %v423
        %v425 = vpop.f32.mrb[0].mxu0
        %426 = vmatprep.mubr.f32.mxu0 0.0
        %427 = vmatmul.mubr.f32.gmra.mrb[0].mxu0 %v283
        %v428 = vpop.f32.mrb[0].mxu0
        %v429 = vadd.f32 %v330, %v428
        %v430 = vpop.f32.mrb[0].mxu0
        %431 = vmatprep.mubr.f32.mxu0 0.0
        %432 = vmatmul.mubr.f32.gmra.mrb[0].mxu0 %v284
        %v433 = vpop.f32.mrb[0].mxu0
        %v434 = vadd.f32 %v330, %v433
        %v435 = vpop.f32.mrb[0].mxu0
        %436 = vmatprep.mubr.f32.mxu0 0.0
        %437 = vmatmul.mubr.f32.gmra.mrb[0].mxu0 %v285
        %v438 = vpop.f32.mrb[0].mxu0
        %v439 = vadd.f32 %v330, %v438
        %v440 = vpop.f32.mrb[0].mxu0
        %441 = vmatprep.mubr.f32.mxu0 0.0
        %442 = vmatmul.mubr.f32.gmra.mrb[0].mxu0 %v286
        %v443 = vpop.f32.mrb[0].mxu0
        %v444 = vadd.f32 %v330, %v443
        %v445 = vpop.f32.mrb[0].mxu0
        %446 = vmatprep.mubr.f32.mxu0 0.0
        %447 = vmatmul.mubr.f32.gmra.mrb[0].mxu0 %v287
        %v448 = vpop.f32.mrb[0].mxu0
        %v449 = vadd.f32 %v330, %v448
        %v450 = vpop.f32.mrb[0].mxu0
        %451 = vmatprep.mubr.f32.mxu0 0.0
        %452 = vmatmul.mubr.f32.gmra.mrb[0].mxu0 %v288
        %v453 = vpop.f32.mrb[0].mxu0
        %v454 = vadd.f32 %v330, %v453
        %v455 = vpop.f32.mrb[0].mxu0
        %456 = vmatprep.mubr.f32.mxu0 0.0
        %457 = vmatmul.mubr.f32.gmra.mrb[0].mxu0 %v289
        %v458 = vpop.f32.mrb[0].mxu0
        %v459 = vadd.f32 %v330, %v458
        %v460 = vpop.f32.mrb[0].mxu0
        %461 = vmatprep.mubr.f32.mxu0 0.0
        %462 = vmatmul.mubr.f32.gmra.mrb[0].mxu0 %v290
        %v463 = vpop.f32.mrb[0].mxu0
        %v464 = vadd.f32 %v330, %v463
        %v465 = vpop.f32.mrb[0].mxu0
        %466 = vmatprep.mubr.f32.mxu0 0.0
        %467 = vmatmul.mubr.f32.gmra.mrb[0].mxu0 %v291
        %v468 = vpop.f32.mrb[0].mxu0
        %v469 = vadd.f32 %v330, %v468
        %v470 = vpop.f32.mrb[0].mxu0
        %471 = vmatprep.mubr.f32.mxu0 0.0
        %472 = vmatmul.mubr.f32.gmra.mrb[0].mxu0 %v292
        %v473 = vpop.f32.mrb[0].mxu0
        %v474 = vadd.f32 %v330, %v473
        %v475 = vpop.f32.mrb[0].mxu0
        %476 = vmatprep.mubr.f32.mxu0 0.0
        %477 = vmatmul.mubr.f32.gmra.mrb[0].mxu0 %v293
        %v478 = vpop.f32.mrb[0].mxu0
        %v479 = vadd.f32 %v330, %v478
        %v480 = vpop.f32.mrb[0].mxu0
        %481 = vmatprep.mubr.f32.mxu0 0.0
        %482 = vmatmul.mubr.f32.gmra.mrb[0].mxu0 %v294
        %v483 = vpop.f32.mrb[0].mxu0
        %v484 = vadd.f32 %v330, %v483
        %v485 = vpop.f32.mrb[0].mxu0
        %486 = vmatprep.mubr.f32.mxu0 0.0
        %487 = vmatmul.mubr.f32.gmra.mrb[0].mxu0 %v295
        %v488 = vpop.f32.mrb[0].mxu0
        %v489 = vadd.f32 %v330, %v488
        %v490 = vpop.f32.mrb[0].mxu0
        %491 = vmatprep.mubr.f32.mxu0 0.0
        %492 = vmatmul.mubr.f32.gmra.mrb[0].mxu0 %v296
        %v493 = vpop.f32.mrb[0].mxu0
        %v494 = vadd.f32 %v330, %v493
        %v495 = vpop.f32.mrb[0].mxu0
        %496 = vmatprep.mubr.f32.mxu0 0.0
        %497 = vmatmul.mubr.f32.gmra.mrb[0].mxu0 %v297
        %v498 = vpop.f32.mrb[0].mxu0
        %v499 = vadd.f32 %v330, %v498
        %v500 = vpop.f32.mrb[0].mxu0
        %501 = vmatprep.mubr.f32.mxu0 0.0
        %502 = vmatmul.mubr.f32.gmra.mrb[0].mxu0 %v298
        %v503 = vpop.f32.mrb[0].mxu0
        %v504 = vadd.f32 %v330, %v503
        %v505 = vpop.f32.mrb[0].mxu0
        %506 = vmatprep.mubr.f32.mxu0 0.0
        %507 = vmatmul.mubr.f32.gmra.mrb[0].mxu0 %v299
        %v508 = vpop.f32.mrb[0].mxu0
        %v509 = vadd.f32 %v330, %v508
        %v510 = vpop.f32.mrb[0].mxu0
        %511 = vmatprep.mubr.f32.mxu0 0.0
        %512 = vmatmul.mubr.f32.gmra.mrb[0].mxu0 %v300
        %v513 = vpop.f32.mrb[0].mxu0
        %v514 = vadd.f32 %v330, %v513
        %v515 = vpop.f32.mrb[0].mxu0
        %516 = vmatprep.mubr.f32.mxu0 0.0
        %517 = vmatmul.mubr.f32.gmra.mrb[0].mxu0 %v301
        %v518 = vpop.f32.mrb[0].mxu0
        %v519 = vadd.f32 %v330, %v518
        %v520 = vpop.f32.mrb[0].mxu0
        %521 = vmatprep.mubr.f32.mxu0 0.0
        %522 = vmatmul.mubr.f32.gmra.mrb[0].mxu0 %v302
        %v523 = vpop.f32.mrb[0].mxu0
        %v524 = vadd.f32 %v330, %v523
        %v525 = vpop.f32.mrb[0].mxu0
        %526 = vmatprep.mubr.f32.mxu0 0.0
        %527 = vmatmul.mubr.f32.gmra.mrb[0].mxu0 %v303
        %v528 = vpop.f32.mrb[0].mxu0
        %v529 = vadd.f32 %v330, %v528
        %v530 = vpop.f32.mrb[0].mxu0
        %531 = vmatprep.mubr.f32.mxu0 0.0
        %532 = vmatmul.mubr.f32.gmra.mrb[0].mxu0 %v304
        %v533 = vpop.f32.mrb[0].mxu0
        %v534 = vadd.f32 %v330, %v533
        %v535 = vpop.f32.mrb[0].mxu0
        %536 = vmatprep.mubr.f32.mxu0 0.0
        %537 = vmatmul.mubr.f32.gmra.mrb[0].mxu0 %v305
        %v538 = vpop.f32.mrb[0].mxu0
        %v539 = vadd.f32 %v330, %v538
        %v540 = vpop.f32.mrb[0].mxu0
        %541 = vmatprep.mubr.f32.mxu0 0.0
        %542 = vmatmul.mubr.f32.gmra.mrb[0].mxu0 %v306
        %v543 = vpop.f32.mrb[0].mxu0
        %v544 = vadd.f32 %v330, %v543
        %v545 = vpop.f32.mrb[0].mxu0
        %546 = vmatprep.mubr.f32.mxu0 0.0
        %547 = vmatmul.mubr.f32.gmra.mrb[0].mxu0 %v307
        %v548 = vpop.f32.mrb[0].mxu0
        %v549 = vadd.f32 %v330, %v548
        %v550 = vpop.f32.mrb[0].mxu0
        %551 = vmatprep.mubr.f32.mxu0 0.0
        %552 = vmatmul.mubr.f32.gmra.mrb[0].mxu0 %v308
        %v553 = vpop.f32.mrb[0].mxu0
        %v554 = vadd.f32 %v330, %v553
        %v555 = vpop.f32.mrb[0].mxu0
        %556 = vdwg.mxu0
        %v557 = vmax.f32 %v399, 0.0
        %v558 = vmax.f32 %v404, 0.0
        %v559 = vmax.f32 %v409, 0.0
        %v560 = vmax.f32 %v414, 0.0
        %v561 = vmax.f32 %v419, 0.0
        %v562 = vmax.f32 %v424, 0.0
        %v563 = vmax.f32 %v429, 0.0
        %v564 = vmax.f32 %v434, 0.0
        %v565 = vmax.f32 %v439, 0.0
        %v566 = vmax.f32 %v444, 0.0
        %v567 = vmax.f32 %v449, 0.0
        %v568 = vmax.f32 %v454, 0.0
        %v569 = vmax.f32 %v459, 0.0
        %v570 = vmax.f32 %v464, 0.0
        %v571 = vmax.f32 %v469, 0.0
        %v572 = vmax.f32 %v474, 0.0
        %v573 = vmax.f32 %v479, 0.0
        %v574 = vmax.f32 %v484, 0.0
        %v575 = vmax.f32 %v489, 0.0
        %v576 = vmax.f32 %v494, 0.0
        %v577 = vmax.f32 %v499, 0.0
        %v578 = vmax.f32 %v504, 0.0
        %v579 = vmax.f32 %v509, 0.0
        %v580 = vmax.f32 %v514, 0.0
        %v581 = vmax.f32 %v519, 0.0
        %v582 = vmax.f32 %v524, 0.0
        %v583 = vmax.f32 %v529, 0.0
        %v584 = vmax.f32 %v534, 0.0
        %v585 = vmax.f32 %v539, 0.0
        %v586 = vmax.f32 %v544, 0.0
        %v587 = vmax.f32 %v549, 0.0
        %v588 = vmax.f32 %v554, 0.0
        %589 = vst [vmem:[#allocation2] sm:$0xff] 0.0
        %590 = vst [vmem:[#allocation2 + $0x8] sm:$0xff] 0.0
        %591 = vst [vmem:[#allocation2 + $0x10] sm:$0xff] 0.0
        %592 = vst [vmem:[#allocation2 + $0x18] sm:$0xff] 0.0
        %s593 = scalar_lea.vmem [#allocation2], 544
        %594 = vst [vmem:[%s593] sm:$0xff] 0.0
        %595 = vst [vmem:[%s593 + $0x8] sm:$0xff] 0.0
        %596 = vst [vmem:[%s593 + $0x10] sm:$0xff] 0.0
        %597 = vst [vmem:[%s593 + $0x18] sm:$0xff] 0.0
        %s598 = scalar_lea.vmem [#allocation2], 32
        %599 = vst [vmem:[%s598] sm:$0xff] 0.0
        %600 = vst [vmem:[%s598 + $0x20] sm:$0xff] 0.0
        %601 = vst [vmem:[%s598 + $0x40] sm:$0xff] 0.0
        %602 = vst [vmem:[%s598 + $0x60] sm:$0xff] 0.0
        %603 = vst [vmem:[%s598 + $0x80] sm:$0xff] 0.0
        %604 = vst [vmem:[%s598 + $0xa0] sm:$0xff] 0.0
        %605 = vst [vmem:[%s598 + $0xc0] sm:$0xff] 0.0
        %606 = vst [vmem:[%s598 + $0xe0] sm:$0xff] 0.0
        %607 = vst [vmem:[%s598 + $0x100] sm:$0xff] 0.0
        %608 = vst [vmem:[%s598 + $0x120] sm:$0xff] 0.0
        %609 = vst [vmem:[%s598 + $0x140] sm:$0xff] 0.0
        %610 = vst [vmem:[%s598 + $0x160] sm:$0xff] 0.0
        %611 = vst [vmem:[%s598 + $0x180] sm:$0xff] 0.0
        %612 = vst [vmem:[%s598 + $0x1a0] sm:$0xff] 0.0
        %613 = vst [vmem:[%s598 + $0x1c0] sm:$0xff] 0.0
        %614 = vst [vmem:[%s598 + $0x1e0] sm:$0xff] 0.0
        %615 = vst [vmem:[%s598 + $0x18] sm:$0xff] 0.0
        %616 = vst [vmem:[%s598 + $0x38] sm:$0xff] 0.0
        %617 = vst [vmem:[%s598 + $0x58] sm:$0xff] 0.0
        %618 = vst [vmem:[%s598 + $0x78] sm:$0xff] 0.0
        %619 = vst [vmem:[%s598 + $0x98] sm:$0xff] 0.0
        %620 = vst [vmem:[%s598 + $0xb8] sm:$0xff] 0.0
        %621 = vst [vmem:[%s598 + $0xd8] sm:$0xff] 0.0
        %622 = vst [vmem:[%s598 + $0xf8] sm:$0xff] 0.0
        %623 = vst [vmem:[%s598 + $0x118] sm:$0xff] 0.0
        %624 = vst [vmem:[%s598 + $0x138] sm:$0xff] 0.0
        %625 = vst [vmem:[%s598 + $0x158] sm:$0xff] 0.0
        %626 = vst [vmem:[%s598 + $0x178] sm:$0xff] 0.0
        %627 = vst [vmem:[%s598 + $0x198] sm:$0xff] 0.0
        %628 = vst [vmem:[%s598 + $0x1b8] sm:$0xff] 0.0
        %629 = vst [vmem:[%s598 + $0x1d8] sm:$0xff] 0.0
        %630 = vst [vmem:[%s598 + $0x1f8] sm:$0xff] 0.0
        %631 = vst [vmem:[%s598 + $0x8] sm:$0xff] %v557
        %632 = vst [vmem:[%s598 + $0x10] sm:$0xff] %v558
        %633 = vst [vmem:[%s598 + $0x28] sm:$0xff] %v559
        %634 = vst [vmem:[%s598 + $0x30] sm:$0xff] %v560
        %635 = vst [vmem:[%s598 + $0x48] sm:$0xff] %v561
        %636 = vst [vmem:[%s598 + $0x50] sm:$0xff] %v562
        %637 = vst [vmem:[%s598 + $0x68] sm:$0xff] %v563
        %638 = vst [vmem:[%s598 + $0x70] sm:$0xff] %v564
        %639 = vst [vmem:[%s598 + $0x88] sm:$0xff] %v565
        %640 = vst [vmem:[%s598 + $0x90] sm:$0xff] %v566
        %641 = vst [vmem:[%s598 + $0xa8] sm:$0xff] %v567
        %642 = vst [vmem:[%s598 + $0xb0] sm:$0xff] %v568
        %643 = vst [vmem:[%s598 + $0xc8] sm:$0xff] %v569
        %644 = vst [vmem:[%s598 + $0xd0] sm:$0xff] %v570
        %645 = vst [vmem:[%s598 + $0xe8] sm:$0xff] %v571
        %646 = vst [vmem:[%s598 + $0xf0] sm:$0xff] %v572
        %647 = vst [vmem:[%s598 + $0x108] sm:$0xff] %v573
        %648 = vst [vmem:[%s598 + $0x110] sm:$0xff] %v574
        %649 = vst [vmem:[%s598 + $0x128] sm:$0xff] %v575
        %650 = vst [vmem:[%s598 + $0x130] sm:$0xff] %v576
        %651 = vst [vmem:[%s598 + $0x148] sm:$0xff] %v577
        %652 = vst [vmem:[%s598 + $0x150] sm:$0xff] %v578
        %653 = vst [vmem:[%s598 + $0x168] sm:$0xff] %v579
        %654 = vst [vmem:[%s598 + $0x170] sm:$0xff] %v580
        %655 = vst [vmem:[%s598 + $0x188] sm:$0xff] %v581
        %656 = vst [vmem:[%s598 + $0x190] sm:$0xff] %v582
        %657 = vst [vmem:[%s598 + $0x1a8] sm:$0xff] %v583
        %658 = vst [vmem:[%s598 + $0x1b0] sm:$0xff] %v584
        %659 = vst [vmem:[%s598 + $0x1c8] sm:$0xff] %v585
        %660 = vst [vmem:[%s598 + $0x1d0] sm:$0xff] %v586
        %661 = vst [vmem:[%s598 + $0x1e8] sm:$0xff] %v587
        %662 = vst [vmem:[%s598 + $0x1f0] sm:$0xff] %v588
        %v663 = vld [vmem:[#allocation2] sm:$0xff]
        %v664 = vld [vmem:[#allocation2 + $0x8] sm:$0xff]
        %v665 = vld [vmem:[#allocation2 + $0x10] sm:$0xff]
        %v666 = vld [vmem:[#allocation2 + $0x18] sm:$0xff]
        %v667 = vld [vmem:[#allocation2 + $0x20] sm:$0xff]
        %v668 = vld [vmem:[#allocation2 + $0x28] sm:$0xff]
        %v669 = vld [vmem:[#allocation2 + $0x30] sm:$0xff]
        %v670 = vld [vmem:[#allocation2 + $0x38] sm:$0xff]
        %v671 = vld [vmem:[#allocation2 + $0x40] sm:$0xff]
        %v672 = vld [vmem:[#allocation2 + $0x48] sm:$0xff]
        %v673 = vld [vmem:[#allocation2 + $0x50] sm:$0xff]
        %v674 = vld [vmem:[#allocation2 + $0x58] sm:$0xff]
        %v675 = vld [vmem:[#allocation2 + $0x60] sm:$0xff]
        %v676 = vld [vmem:[#allocation2 + $0x68] sm:$0xff]
        %v677 = vld [vmem:[#allocation2 + $0x70] sm:$0xff]
        %v678 = vld [vmem:[#allocation2 + $0x78] sm:$0xff]
        %v679 = vld [vmem:[#allocation2 + $0x80] sm:$0xff]
        %v680 = vld [vmem:[#allocation2 + $0x88] sm:$0xff]
        %v681 = vld [vmem:[#allocation2 + $0x90] sm:$0xff]
        %v682 = vld [vmem:[#allocation2 + $0x98] sm:$0xff]
        %v683 = vld [vmem:[#allocation2 + $0xa0] sm:$0xff]
        %v684 = vld [vmem:[#allocation2 + $0xa8] sm:$0xff]
        %v685 = vld [vmem:[#allocation2 + $0xb0] sm:$0xff]
        %v686 = vld [vmem:[#allocation2 + $0xb8] sm:$0xff]
        %v687 = vld [vmem:[#allocation2 + $0xc0] sm:$0xff]
        %v688 = vld [vmem:[#allocation2 + $0xc8] sm:$0xff]
        %v689 = vld [vmem:[#allocation2 + $0xd0] sm:$0xff]
        %v690 = vld [vmem:[#allocation2 + $0xd8] sm:$0xff]
        %v691 = vld [vmem:[#allocation2 + $0xe0] sm:$0xff]
        %v692 = vld [vmem:[#allocation2 + $0xe8] sm:$0xff]
        %v693 = vld [vmem:[#allocation2 + $0xf0] sm:$0xff]
        %v694 = vld [vmem:[#allocation2 + $0xf8] sm:$0xff]
        %v695 = vld [vmem:[#allocation2 + $0x100] sm:$0xff]
        %v696 = vld [vmem:[#allocation2 + $0x108] sm:$0xff]
        %v697 = vld [vmem:[#allocation2 + $0x110] sm:$0xff]
        %v698 = vld [vmem:[#allocation2 + $0x118] sm:$0xff]
        %v699 = vld [vmem:[#allocation2 + $0x120] sm:$0xff]
        %v700 = vld [vmem:[#allocation2 + $0x128] sm:$0xff]
        %v701 = vld [vmem:[#allocation2 + $0x130] sm:$0xff]
        %v702 = vld [vmem:[#allocation2 + $0x138] sm:$0xff]
        %v703 = vld [vmem:[#allocation2 + $0x140] sm:$0xff]
        %v704 = vld [vmem:[#allocation2 + $0x148] sm:$0xff]
        %v705 = vld [vmem:[#allocation2 + $0x150] sm:$0xff]
        %v706 = vld [vmem:[#allocation2 + $0x158] sm:$0xff]
        %v707 = vld [vmem:[#allocation2 + $0x160] sm:$0xff]
        %v708 = vld [vmem:[#allocation2 + $0x168] sm:$0xff]
        %v709 = vld [vmem:[#allocation2 + $0x170] sm:$0xff]
        %v710 = vld [vmem:[#allocation2 + $0x178] sm:$0xff]
        %v711 = vld [vmem:[#allocation2 + $0x180] sm:$0xff]
        %v712 = vld [vmem:[#allocation2 + $0x188] sm:$0xff]
        %v713 = vld [vmem:[#allocation2 + $0x190] sm:$0xff]
        %v714 = vld [vmem:[#allocation2 + $0x198] sm:$0xff]
        %v715 = vld [vmem:[#allocation2 + $0x1a0] sm:$0xff]
        %v716 = vld [vmem:[#allocation2 + $0x1a8] sm:$0xff]
        %v717 = vld [vmem:[#allocation2 + $0x1b0] sm:$0xff]
        %v718 = vld [vmem:[#allocation2 + $0x1b8] sm:$0xff]
        %v719 = vld [vmem:[#allocation2 + $0x1c0] sm:$0xff]
        %v720 = vld [vmem:[#allocation2 + $0x1c8] sm:$0xff]
        %v721 = vld [vmem:[#allocation2 + $0x1d0] sm:$0xff]
        %v722 = vld [vmem:[#allocation2 + $0x1d8] sm:$0xff]
        %v723 = vld [vmem:[#allocation2 + $0x1e0] sm:$0xff]
        %v724 = vld [vmem:[#allocation2 + $0x1e8] sm:$0xff]
        %v725 = vld [vmem:[#allocation2 + $0x1f0] sm:$0xff]
        %v726 = vld [vmem:[#allocation2 + $0x1f8] sm:$0xff]
        %v727 = vld [vmem:[%s2] sm:$0xff]
        %v728 = vld [vmem:[%s2 + $0x8] sm:$0xff]
        %v729 = vld [vmem:[%s2 + $0x10] sm:$0xff]
        %v730 = vld [vmem:[%s2 + $0x18] sm:$0xff]
        %v731 = vld [vmem:[%s2 + $0x20] sm:$0xff]
        %v732 = vld [vmem:[%s2 + $0x28] sm:$0xff]
        %v733 = vld [vmem:[%s2 + $0x30] sm:$0xff]
        %v734 = vld [vmem:[%s2 + $0x38] sm:$0xff]
        %v735 = vld [vmem:[%s2 + $0x40] sm:$0xff]
        %v736 = vld [vmem:[%s2 + $0x48] sm:$0xff]
        %v737 = vld [vmem:[%s2 + $0x50] sm:$0xff]
        %v738 = vld [vmem:[%s2 + $0x58] sm:$0xff]
        %v739 = vld [vmem:[%s2 + $0x60] sm:$0xff]
        %v740 = vld [vmem:[%s2 + $0x68] sm:$0xff]
        %v741 = vld [vmem:[%s2 + $0x70] sm:$0xff]
        %v742 = vld [vmem:[%s2 + $0x78] sm:$0xff]
        %s743 = scalar_lea.vmem %s2, 128
        %v744 = vld [vmem:[%s743] sm:$0xff]
        %v745 = vld [vmem:[%s743 + $0x8] sm:$0xff]
        %v746 = vld [vmem:[%s743 + $0x10] sm:$0xff]
        %v747 = vld [vmem:[%s743 + $0x18] sm:$0xff]
        %v748 = vld [vmem:[%s743 + $0x20] sm:$0xff]
        %v749 = vld [vmem:[%s743 + $0x28] sm:$0xff]
        %v750 = vld [vmem:[%s743 + $0x30] sm:$0xff]
        %v751 = vld [vmem:[%s743 + $0x38] sm:$0xff]
        %v752 = vld [vmem:[%s743 + $0x40] sm:$0xff]
        %v753 = vld [vmem:[%s743 + $0x48] sm:$0xff]
        %v754 = vld [vmem:[%s743 + $0x50] sm:$0xff]
        %v755 = vld [vmem:[%s743 + $0x58] sm:$0xff]
        %v756 = vld [vmem:[%s743 + $0x60] sm:$0xff]
        %v757 = vld [vmem:[%s743 + $0x68] sm:$0xff]
        %v758 = vld [vmem:[%s743 + $0x70] sm:$0xff]
        %v759 = vld [vmem:[%s743 + $0x78] sm:$0xff]
        %760 = vmatprep.subr.mxu0 0.0
        %761 = vmatpush1.msra.mxu0 %v744
        %762 = vmatprep.subr.mxu0 0.0
        %763 = vmatpush1.msra.mxu0 %v745
        %764 = vmatprep.subr.mxu0 0.0
        %765 = vmatpush1.msra.mxu0 %v746
        %766 = vmatprep.subr.mxu0 0.0
        %767 = vmatpush1.msra.mxu0 %v747
        %768 = vmatprep.subr.mxu0 0.0
        %769 = vmatpush1.msra.mxu0 %v748
        %770 = vmatprep.subr.mxu0 0.0
        %771 = vmatpush1.msra.mxu0 %v749
        %772 = vmatprep.subr.mxu0 0.0
        %773 = vmatpush1.msra.mxu0 %v750
        %774 = vmatprep.subr.mxu0 0.0
        %775 = vmatpush1.msra.mxu0 %v751
        %776 = vmatprep.subr.mxu0 0.0
        %777 = vmatpush1.msra.mxu0 %v752
        %778 = vmatprep.subr.mxu0 0.0
        %779 = vmatpush1.msra.mxu0 %v753
        %780 = vmatprep.subr.mxu0 0.0
        %781 = vmatpush1.msra.mxu0 %v754
        %782 = vmatprep.subr.mxu0 0.0
        %783 = vmatpush1.msra.mxu0 %v755
        %784 = vmatprep.subr.mxu0 0.0
        %785 = vmatpush1.msra.mxu0 %v756
        %786 = vmatprep.subr.mxu0 0.0
        %787 = vmatpush1.msra.mxu0 %v757
        %788 = vmatprep.subr.mxu0 0.0
        %789 = vmatpush1.msra.mxu0 %v758
        %790 = vmatprep.subr.mxu0 0.0
        %791 = vmatpush1.msra.mxu0 %v759
        %792 = vmatprep.subr.mxu0 0.0
        %793 = vmatpush1.msra.mxu0 0.0
        %794 = vmatprep.subr.mxu0 0.0
        %795 = vmatpush1.msra.mxu0 0.0
        %796 = vmatprep.subr.mxu0 0.0
        %797 = vmatpush1.msra.mxu0 0.0
        %798 = vmatprep.subr.mxu0 0.0
        %799 = vmatpush1.msra.mxu0 0.0
        %800 = vmatprep.subr.mxu0 0.0
        %801 = vmatpush1.msra.mxu0 0.0
        %802 = vmatprep.subr.mxu0 0.0
        %803 = vmatpush1.msra.mxu0 0.0
        %804 = vmatprep.subr.mxu0 0.0
        %805 = vmatpush1.msra.mxu0 0.0
        %806 = vmatprep.subr.mxu0 0.0
        %807 = vmatpush1.msra.mxu0 0.0
        %808 = vmatprep.subr.mxu0 0.0
        %809 = vmatpush1.msra.mxu0 0.0
        %810 = vmatprep.subr.mxu0 0.0
        %811 = vmatpush1.msra.mxu0 0.0
        %812 = vmatprep.subr.mxu0 0.0
        %813 = vmatpush1.msra.mxu0 0.0
        %814 = vmatprep.subr.mxu0 0.0
        %815 = vmatpush1.msra.mxu0 0.0
        %816 = vmatprep.subr.mxu0 0.0
        %817 = vmatpush1.msra.mxu0 0.0
        %818 = vmatprep.subr.mxu0 0.0
        %819 = vmatpush1.msra.mxu0 0.0
        %820 = vmatprep.subr.mxu0 0.0
        %821 = vmatpush1.msra.mxu0 0.0
        %822 = vmatprep.subr.mxu0 0.0
        %823 = vmatpush1.msra.mxu0 0.0
        %824 = vmatprep.mubr.f32.mxu0 0.0
        %825 = vmatmul.mubr.f32.gmra.mrb[0].mxu0 %v664
        %v826 = vpop.f32.mrb[0].mxu0
        %v827 = vadd.f32 0.0, %v826
        %v828 = vpop.f32.mrb[0].mxu0
        %829 = vmatprep.mubr.f32.mxu0 0.0
        %830 = vmatmul.mubr.f32.gmra.mrb[0].mxu0 %v665
        %v831 = vpop.f32.mrb[0].mxu0
        %v832 = vadd.f32 0.0, %v831
        %v833 = vpop.f32.mrb[0].mxu0
        %834 = vmatprep.mubr.f32.mxu0 0.0
        %835 = vmatmul.mubr.f32.gmra.mrb[0].mxu0 %v668
        %v836 = vpop.f32.mrb[0].mxu0
        %v837 = vadd.f32 0.0, %v836
        %v838 = vpop.f32.mrb[0].mxu0
        %839 = vmatprep.mubr.f32.mxu0 0.0
        %840 = vmatmul.mubr.f32.gmra.mrb[0].mxu0 %v669
        %v841 = vpop.f32.mrb[0].mxu0
        %v842 = vadd.f32 0.0, %v841
        %v843 = vpop.f32.mrb[0].mxu0
        %844 = vmatprep.mubr.f32.mxu0 0.0
        %845 = vmatmul.mubr.f32.gmra.mrb[0].mxu0 %v672
        %v846 = vpop.f32.mrb[0].mxu0
        %v847 = vadd.f32 0.0, %v846
        %v848 = vpop.f32.mrb[0].mxu0
        %849 = vmatprep.mubr.f32.mxu0 0.0
        %850 = vmatmul.mubr.f32.gmra.mrb[0].mxu0 %v673
        %v851 = vpop.f32.mrb[0].mxu0
        %v852 = vadd.f32 0.0, %v851
        %v853 = vpop.f32.mrb[0].mxu0
        %854 = vmatprep.mubr.f32.mxu0 0.0
        %855 = vmatmul.mubr.f32.gmra.mrb[0].mxu0 %v676
        %v856 = vpop.f32.mrb[0].mxu0
        %v857 = vadd.f32 0.0, %v856
        %v858 = vpop.f32.mrb[0].mxu0
        %859 = vmatprep.mubr.f32.mxu0 0.0
        %860 = vmatmul.mubr.f32.gmra.mrb[0].mxu0 %v677
        %v861 = vpop.f32.mrb[0].mxu0
        %v862 = vadd.f32 0.0, %v861
        %v863 = vpop.f32.mrb[0].mxu0
        %864 = vmatprep.mubr.f32.mxu0 0.0
        %865 = vmatmul.mubr.f32.gmra.mrb[0].mxu0 %v680
        %v866 = vpop.f32.mrb[0].mxu0
        %v867 = vadd.f32 0.0, %v866
        %v868 = vpop.f32.mrb[0].mxu0
        %869 = vmatprep.mubr.f32.mxu0 0.0
        %870 = vmatmul.mubr.f32.gmra.mrb[0].mxu0 %v681
        %v871 = vpop.f32.mrb[0].mxu0
        %v872 = vadd.f32 0.0, %v871
        %v873 = vpop.f32.mrb[0].mxu0
        %874 = vmatprep.mubr.f32.mxu0 0.0
        %875 = vmatmul.mubr.f32.gmra.mrb[0].mxu0 %v684
        %v876 = vpop.f32.mrb[0].mxu0
        %v877 = vadd.f32 0.0, %v876
        %v878 = vpop.f32.mrb[0].mxu0
        %879 = vmatprep.mubr.f32.mxu0 0.0
        %880 = vmatmul.mubr.f32.gmra.mrb[0].mxu0 %v685
        %v881 = vpop.f32.mrb[0].mxu0
        %v882 = vadd.f32 0.0, %v881
        %v883 = vpop.f32.mrb[0].mxu0
        %884 = vmatprep.mubr.f32.mxu0 0.0
        %885 = vmatmul.mubr.f32.gmra.mrb[0].mxu0 %v688
        %v886 = vpop.f32.mrb[0].mxu0
        %v887 = vadd.f32 0.0, %v886
        %v888 = vpop.f32.mrb[0].mxu0
        %889 = vmatprep.mubr.f32.mxu0 0.0
        %890 = vmatmul.mubr.f32.gmra.mrb[0].mxu0 %v689
        %v891 = vpop.f32.mrb[0].mxu0
        %v892 = vadd.f32 0.0, %v891
        %v893 = vpop.f32.mrb[0].mxu0
        %894 = vmatprep.mubr.f32.mxu0 0.0
        %895 = vmatmul.mubr.f32.gmra.mrb[0].mxu0 %v692
        %v896 = vpop.f32.mrb[0].mxu0
        %v897 = vadd.f32 0.0, %v896
        %v898 = vpop.f32.mrb[0].mxu0
        %899 = vmatprep.mubr.f32.mxu0 0.0
        %900 = vmatmul.mubr.f32.gmra.mrb[0].mxu0 %v693
        %v901 = vpop.f32.mrb[0].mxu0
        %v902 = vadd.f32 0.0, %v901
        %v903 = vpop.f32.mrb[0].mxu0
        %904 = vmatprep.mubr.f32.mxu0 0.0
        %905 = vmatmul.mubr.f32.gmra.mrb[0].mxu0 %v696
        %v906 = vpop.f32.mrb[0].mxu0
        %v907 = vadd.f32 0.0, %v906
        %v908 = vpop.f32.mrb[0].mxu0
        %909 = vmatprep.mubr.f32.mxu0 0.0
        %910 = vmatmul.mubr.f32.gmra.mrb[0].mxu0 %v697
        %v911 = vpop.f32.mrb[0].mxu0
        %v912 = vadd.f32 0.0, %v911
        %v913 = vpop.f32.mrb[0].mxu0
        %914 = vmatprep.mubr.f32.mxu0 0.0
        %915 = vmatmul.mubr.f32.gmra.mrb[0].mxu0 %v700
        %v916 = vpop.f32.mrb[0].mxu0
        %v917 = vadd.f32 0.0, %v916
        %v918 = vpop.f32.mrb[0].mxu0
        %919 = vmatprep.mubr.f32.mxu0 0.0
        %920 = vmatmul.mubr.f32.gmra.mrb[0].mxu0 %v701
        %v921 = vpop.f32.mrb[0].mxu0
        %v922 = vadd.f32 0.0, %v921
        %v923 = vpop.f32.mrb[0].mxu0
        %924 = vmatprep.mubr.f32.mxu0 0.0
        %925 = vmatmul.mubr.f32.gmra.mrb[0].mxu0 %v704
        %v926 = vpop.f32.mrb[0].mxu0
        %v927 = vadd.f32 0.0, %v926
        %v928 = vpop.f32.mrb[0].mxu0
        %929 = vmatprep.mubr.f32.mxu0 0.0
        %930 = vmatmul.mubr.f32.gmra.mrb[0].mxu0 %v705
        %v931 = vpop.f32.mrb[0].mxu0
        %v932 = vadd.f32 0.0, %v931
        %v933 = vpop.f32.mrb[0].mxu0
        %934 = vmatprep.mubr.f32.mxu0 0.0
        %935 = vmatmul.mubr.f32.gmra.mrb[0].mxu0 %v708
        %v936 = vpop.f32.mrb[0].mxu0
        %v937 = vadd.f32 0.0, %v936
        %v938 = vpop.f32.mrb[0].mxu0
        %939 = vmatprep.mubr.f32.mxu0 0.0
        %940 = vmatmul.mubr.f32.gmra.mrb[0].mxu0 %v709
        %v941 = vpop.f32.mrb[0].mxu0
        %v942 = vadd.f32 0.0, %v941
        %v943 = vpop.f32.mrb[0].mxu0
        %944 = vmatprep.mubr.f32.mxu0 0.0
        %945 = vmatmul.mubr.f32.gmra.mrb[0].mxu0 %v712
        %v946 = vpop.f32.mrb[0].mxu0
        %v947 = vadd.f32 0.0, %v946
        %v948 = vpop.f32.mrb[0].mxu0
        %949 = vmatprep.mubr.f32.mxu0 0.0
        %950 = vmatmul.mubr.f32.gmra.mrb[0].mxu0 %v713
        %v951 = vpop.f32.mrb[0].mxu0
        %v952 = vadd.f32 0.0, %v951
        %v953 = vpop.f32.mrb[0].mxu0
        %954 = vmatprep.mubr.f32.mxu0 0.0
        %955 = vmatmul.mubr.f32.gmra.mrb[0].mxu0 %v716
        %v956 = vpop.f32.mrb[0].mxu0
        %v957 = vadd.f32 0.0, %v956
        %v958 = vpop.f32.mrb[0].mxu0
        %959 = vmatprep.mubr.f32.mxu0 0.0
        %960 = vmatmul.mubr.f32.gmra.mrb[0].mxu0 %v717
        %v961 = vpop.f32.mrb[0].mxu0
        %v962 = vadd.f32 0.0, %v961
        %v963 = vpop.f32.mrb[0].mxu0
        %964 = vmatprep.mubr.f32.mxu0 0.0
        %965 = vmatmul.mubr.f32.gmra.mrb[0].mxu0 %v720
        %v966 = vpop.f32.mrb[0].mxu0
        %v967 = vadd.f32 0.0, %v966
        %v968 = vpop.f32.mrb[0].mxu0
        %969 = vmatprep.mubr.f32.mxu0 0.0
        %970 = vmatmul.mubr.f32.gmra.mrb[0].mxu0 %v721
        %v971 = vpop.f32.mrb[0].mxu0
        %v972 = vadd.f32 0.0, %v971
        %v973 = vpop.f32.mrb[0].mxu0
        %974 = vmatprep.mubr.f32.mxu0 0.0
        %975 = vmatmul.mubr.f32.gmra.mrb[0].mxu0 %v724
        %v976 = vpop.f32.mrb[0].mxu0
        %v977 = vadd.f32 0.0, %v976
        %v978 = vpop.f32.mrb[0].mxu0
        %979 = vmatprep.mubr.f32.mxu0 0.0
        %980 = vmatmul.mubr.f32.gmra.mrb[0].mxu0 %v725
        %v981 = vpop.f32.mrb[0].mxu0
        %v982 = vadd.f32 0.0, %v981
        %v983 = vpop.f32.mrb[0].mxu0
        %984 = vdwg.mxu0
        %vm1033 = vcmask 1040384
        %v1034 = vrot.slane %v663, 7
        %v1035 = vrot.slane %v664, 7
        %v1036 = vsel %vm1033, %v1034, %v1035
        %v1037 = vrot.slane %v665, 7
        %v1038 = vsel %vm1033, %v1035, %v1037
        %v1039 = vrot.slane %v667, 7
        %v1040 = vrot.slane %v668, 7
        %v1041 = vsel %vm1033, %v1039, %v1040
        %v1042 = vrot.slane %v669, 7
        %v1043 = vsel %vm1033, %v1040, %v1042
        %v1044 = vrot.slane %v671, 7
        %v1045 = vrot.slane %v672, 7
        %v1046 = vsel %vm1033, %v1044, %v1045
        %v1047 = vrot.slane %v673, 7
        %v1048 = vsel %vm1033, %v1045, %v1047
        %v1049 = vrot.slane %v675, 7
        %v1050 = vrot.slane %v676, 7
        %v1051 = vsel %vm1033, %v1049, %v1050
        %v1052 = vrot.slane %v677, 7
        %v1053 = vsel %vm1033, %v1050, %v1052
        %v1054 = vrot.slane %v679, 7
        %v1055 = vrot.slane %v680, 7
        %v1056 = vsel %vm1033, %v1054, %v1055
        %v1057 = vrot.slane %v681, 7
        %v1058 = vsel %vm1033, %v1055, %v1057
        %v1059 = vrot.slane %v683, 7
        %v1060 = vrot.slane %v684, 7
        %v1061 = vsel %vm1033, %v1059, %v1060
        %v1062 = vrot.slane %v685, 7
        %v1063 = vsel %vm1033, %v1060, %v1062
        %v1064 = vrot.slane %v687, 7
        %v1065 = vrot.slane %v688, 7
        %v1066 = vsel %vm1033, %v1064, %v1065
        %v1067 = vrot.slane %v689, 7
        %v1068 = vsel %vm1033, %v1065, %v1067
        %v1069 = vrot.slane %v691, 7
        %v1070 = vrot.slane %v692, 7
        %v1071 = vsel %vm1033, %v1069, %v1070
        %v1072 = vrot.slane %v693, 7
        %v1073 = vsel %vm1033, %v1070, %v1072
        %v1074 = vrot.slane %v695, 7
        %v1075 = vrot.slane %v696, 7
        %v1076 = vsel %vm1033, %v1074, %v1075
        %v1077 = vrot.slane %v697, 7
        %v1078 = vsel %vm1033, %v1075, %v1077
        %v1079 = vrot.slane %v699, 7
        %v1080 = vrot.slane %v700, 7
        %v1081 = vsel %vm1033, %v1079, %v1080
        %v1082 = vrot.slane %v701, 7
        %v1083 = vsel %vm1033, %v1080, %v1082
        %v1084 = vrot.slane %v703, 7
        %v1085 = vrot.slane %v704, 7
        %v1086 = vsel %vm1033, %v1084, %v1085
        %v1087 = vrot.slane %v705, 7
        %v1088 = vsel %vm1033, %v1085, %v1087
        %v1089 = vrot.slane %v707, 7
        %v1090 = vrot.slane %v708, 7
        %v1091 = vsel %vm1033, %v1089, %v1090
        %v1092 = vrot.slane %v709, 7
        %v1093 = vsel %vm1033, %v1090, %v1092
        %v1094 = vrot.slane %v711, 7
        %v1095 = vrot.slane %v712, 7
        %v1096 = vsel %vm1033, %v1094, %v1095
        %v1097 = vrot.slane %v713, 7
        %v1098 = vsel %vm1033, %v1095, %v1097
        %v1099 = vrot.slane %v715, 7
        %v1100 = vrot.slane %v716, 7
        %v1101 = vsel %vm1033, %v1099, %v1100
        %v1102 = vrot.slane %v717, 7
        %v1103 = vsel %vm1033, %v1100, %v1102
        %v1104 = vrot.slane %v719, 7
        %v1105 = vrot.slane %v720, 7
        %v1106 = vsel %vm1033, %v1104, %v1105
        %v1107 = vrot.slane %v721, 7
        %v1108 = vsel %vm1033, %v1105, %v1107
        %v1109 = vrot.slane %v723, 7
        %v1110 = vrot.slane %v724, 7
        %v1111 = vsel %vm1033, %v1109, %v1110
        %v1112 = vrot.slane %v725, 7
        %v1113 = vsel %vm1033, %v1110, %v1112
        %1146 = vmatprep.subr.mxu0 0.0
        %1147 = vmatpush1.msra.mxu0 %v727
        %1148 = vmatprep.subr.mxu0 0.0
        %1149 = vmatpush1.msra.mxu0 %v728
        %1150 = vmatprep.subr.mxu0 0.0
        %1151 = vmatpush1.msra.mxu0 %v729
        %1152 = vmatprep.subr.mxu0 0.0
        %1153 = vmatpush1.msra.mxu0 %v730
        %1154 = vmatprep.subr.mxu0 0.0
        %1155 = vmatpush1.msra.mxu0 %v731
        %1156 = vmatprep.subr.mxu0 0.0
        %1157 = vmatpush1.msra.mxu0 %v732
        %1158 = vmatprep.subr.mxu0 0.0
        %1159 = vmatpush1.msra.mxu0 %v733
        %1160 = vmatprep.subr.mxu0 0.0
        %1161 = vmatpush1.msra.mxu0 %v734
        %1162 = vmatprep.subr.mxu0 0.0
        %1163 = vmatpush1.msra.mxu0 %v735
        %1164 = vmatprep.subr.mxu0 0.0
        %1165 = vmatpush1.msra.mxu0 %v736
        %1166 = vmatprep.subr.mxu0 0.0
        %1167 = vmatpush1.msra.mxu0 %v737
        %1168 = vmatprep.subr.mxu0 0.0
        %1169 = vmatpush1.msra.mxu0 %v738
        %1170 = vmatprep.subr.mxu0 0.0
        %1171 = vmatpush1.msra.mxu0 %v739
        %1172 = vmatprep.subr.mxu0 0.0
        %1173 = vmatpush1.msra.mxu0 %v740
        %1174 = vmatprep.subr.mxu0 0.0
        %1175 = vmatpush1.msra.mxu0 %v741
        %1176 = vmatprep.subr.mxu0 0.0
        %1177 = vmatpush1.msra.mxu0 %v742
        %1178 = vmatprep.subr.mxu0 0.0
        %1179 = vmatpush1.msra.mxu0 0.0
        %1180 = vmatprep.subr.mxu0 0.0
        %1181 = vmatpush1.msra.mxu0 0.0
        %1182 = vmatprep.subr.mxu0 0.0
        %1183 = vmatpush1.msra.mxu0 0.0
        %1184 = vmatprep.subr.mxu0 0.0
        %1185 = vmatpush1.msra.mxu0 0.0
        %1186 = vmatprep.subr.mxu0 0.0
        %1187 = vmatpush1.msra.mxu0 0.0
        %1188 = vmatprep.subr.mxu0 0.0
        %1189 = vmatpush1.msra.mxu0 0.0
        %1190 = vmatprep.subr.mxu0 0.0
        %1191 = vmatpush1.msra.mxu0 0.0
        %1192 = vmatprep.subr.mxu0 0.0
        %1193 = vmatpush1.msra.mxu0 0.0
        %1194 = vmatprep.subr.mxu0 0.0
        %1195 = vmatpush1.msra.mxu0 0.0
        %1196 = vmatprep.subr.mxu0 0.0
        %1197 = vmatpush1.msra.mxu0 0.0
        %1198 = vmatprep.subr.mxu0 0.0
        %1199 = vmatpush1.msra.mxu0 0.0
        %1200 = vmatprep.subr.mxu0 0.0
        %1201 = vmatpush1.msra.mxu0 0.0
        %1202 = vmatprep.subr.mxu0 0.0
        %1203 = vmatpush1.msra.mxu0 0.0
        %1204 = vmatprep.subr.mxu0 0.0
        %1205 = vmatpush1.msra.mxu0 0.0
        %1206 = vmatprep.subr.mxu0 0.0
        %1207 = vmatpush1.msra.mxu0 0.0
        %1208 = vmatprep.subr.mxu0 0.0
        %1209 = vmatpush1.msra.mxu0 0.0
        %1210 = vmatprep.mubr.f32.mxu0 0.0
        %1211 = vmatmul.mubr.f32.gmra.mrb[0].mxu0 %v1036
        %v1212 = vpop.f32.mrb[0].mxu0
        %v1213 = vadd.f32 %v827, %v1212
        %v1214 = vpop.f32.mrb[0].mxu0
        %1215 = vmatprep.mubr.f32.mxu0 0.0
        %1216 = vmatmul.mubr.f32.gmra.mrb[0].mxu0 %v1038
        %v1217 = vpop.f32.mrb[0].mxu0
        %v1218 = vadd.f32 %v832, %v1217
        %v1219 = vpop.f32.mrb[0].mxu0
        %1220 = vmatprep.mubr.f32.mxu0 0.0
        %1221 = vmatmul.mubr.f32.gmra.mrb[0].mxu0 %v1041
        %v1222 = vpop.f32.mrb[0].mxu0
        %v1223 = vadd.f32 %v837, %v1222
        %v1224 = vpop.f32.mrb[0].mxu0
        %1225 = vmatprep.mubr.f32.mxu0 0.0
        %1226 = vmatmul.mubr.f32.gmra.mrb[0].mxu0 %v1043
        %v1227 = vpop.f32.mrb[0].mxu0
        %v1228 = vadd.f32 %v842, %v1227
        %v1229 = vpop.f32.mrb[0].mxu0
        %1230 = vmatprep.mubr.f32.mxu0 0.0
        %1231 = vmatmul.mubr.f32.gmra.mrb[0].mxu0 %v1046
        %v1232 = vpop.f32.mrb[0].mxu0
        %v1233 = vadd.f32 %v847, %v1232
        %v1234 = vpop.f32.mrb[0].mxu0
        %1235 = vmatprep.mubr.f32.mxu0 0.0
        %1236 = vmatmul.mubr.f32.gmra.mrb[0].mxu0 %v1048
        %v1237 = vpop.f32.mrb[0].mxu0
        %v1238 = vadd.f32 %v852, %v1237
        %v1239 = vpop.f32.mrb[0].mxu0
        %1240 = vmatprep.mubr.f32.mxu0 0.0
        %1241 = vmatmul.mubr.f32.gmra.mrb[0].mxu0 %v1051
        %v1242 = vpop.f32.mrb[0].mxu0
        %v1243 = vadd.f32 %v857, %v1242
        %v1244 = vpop.f32.mrb[0].mxu0
        %1245 = vmatprep.mubr.f32.mxu0 0.0
        %1246 = vmatmul.mubr.f32.gmra.mrb[0].mxu0 %v1053
        %v1247 = vpop.f32.mrb[0].mxu0
        %v1248 = vadd.f32 %v862, %v1247
        %v1249 = vpop.f32.mrb[0].mxu0
        %1250 = vmatprep.mubr.f32.mxu0 0.0
        %1251 = vmatmul.mubr.f32.gmra.mrb[0].mxu0 %v1056
        %v1252 = vpop.f32.mrb[0].mxu0
        %v1253 = vadd.f32 %v867, %v1252
        %v1254 = vpop.f32.mrb[0].mxu0
        %1255 = vmatprep.mubr.f32.mxu0 0.0
        %1256 = vmatmul.mubr.f32.gmra.mrb[0].mxu0 %v1058
        %v1257 = vpop.f32.mrb[0].mxu0
        %v1258 = vadd.f32 %v872, %v1257
        %v1259 = vpop.f32.mrb[0].mxu0
        %1260 = vmatprep.mubr.f32.mxu0 0.0
        %1261 = vmatmul.mubr.f32.gmra.mrb[0].mxu0 %v1061
        %v1262 = vpop.f32.mrb[0].mxu0
        %v1263 = vadd.f32 %v877, %v1262
        %v1264 = vpop.f32.mrb[0].mxu0
        %1265 = vmatprep.mubr.f32.mxu0 0.0
        %1266 = vmatmul.mubr.f32.gmra.mrb[0].mxu0 %v1063
        %v1267 = vpop.f32.mrb[0].mxu0
        %v1268 = vadd.f32 %v882, %v1267
        %v1269 = vpop.f32.mrb[0].mxu0
        %1270 = vmatprep.mubr.f32.mxu0 0.0
        %1271 = vmatmul.mubr.f32.gmra.mrb[0].mxu0 %v1066
        %v1272 = vpop.f32.mrb[0].mxu0
        %v1273 = vadd.f32 %v887, %v1272
        %v1274 = vpop.f32.mrb[0].mxu0
        %1275 = vmatprep.mubr.f32.mxu0 0.0
        %1276 = vmatmul.mubr.f32.gmra.mrb[0].mxu0 %v1068
        %v1277 = vpop.f32.mrb[0].mxu0
        %v1278 = vadd.f32 %v892, %v1277
        %v1279 = vpop.f32.mrb[0].mxu0
        %1280 = vmatprep.mubr.f32.mxu0 0.0
        %1281 = vmatmul.mubr.f32.gmra.mrb[0].mxu0 %v1071
        %v1282 = vpop.f32.mrb[0].mxu0
        %v1283 = vadd.f32 %v897, %v1282
        %v1284 = vpop.f32.mrb[0].mxu0
        %1285 = vmatprep.mubr.f32.mxu0 0.0
        %1286 = vmatmul.mubr.f32.gmra.mrb[0].mxu0 %v1073
        %v1287 = vpop.f32.mrb[0].mxu0
        %v1288 = vadd.f32 %v902, %v1287
        %v1289 = vpop.f32.mrb[0].mxu0
        %1290 = vmatprep.mubr.f32.mxu0 0.0
        %1291 = vmatmul.mubr.f32.gmra.mrb[0].mxu0 %v1076
        %v1292 = vpop.f32.mrb[0].mxu0
        %v1293 = vadd.f32 %v907, %v1292
        %v1294 = vpop.f32.mrb[0].mxu0
        %1295 = vmatprep.mubr.f32.mxu0 0.0
        %1296 = vmatmul.mubr.f32.gmra.mrb[0].mxu0 %v1078
        %v1297 = vpop.f32.mrb[0].mxu0
        %v1298 = vadd.f32 %v912, %v1297
        %v1299 = vpop.f32.mrb[0].mxu0
        %1300 = vmatprep.mubr.f32.mxu0 0.0
        %1301 = vmatmul.mubr.f32.gmra.mrb[0].mxu0 %v1081
        %v1302 = vpop.f32.mrb[0].mxu0
        %v1303 = vadd.f32 %v917, %v1302
        %v1304 = vpop.f32.mrb[0].mxu0
        %1305 = vmatprep.mubr.f32.mxu0 0.0
        %1306 = vmatmul.mubr.f32.gmra.mrb[0].mxu0 %v1083
        %v1307 = vpop.f32.mrb[0].mxu0
        %v1308 = vadd.f32 %v922, %v1307
        %v1309 = vpop.f32.mrb[0].mxu0
        %1310 = vmatprep.mubr.f32.mxu0 0.0
        %1311 = vmatmul.mubr.f32.gmra.mrb[0].mxu0 %v1086
        %v1312 = vpop.f32.mrb[0].mxu0
        %v1313 = vadd.f32 %v927, %v1312
        %v1314 = vpop.f32.mrb[0].mxu0
        %1315 = vmatprep.mubr.f32.mxu0 0.0
        %1316 = vmatmul.mubr.f32.gmra.mrb[0].mxu0 %v1088
        %v1317 = vpop.f32.mrb[0].mxu0
        %v1318 = vadd.f32 %v932, %v1317
        %v1319 = vpop.f32.mrb[0].mxu0
        %1320 = vmatprep.mubr.f32.mxu0 0.0
        %1321 = vmatmul.mubr.f32.gmra.mrb[0].mxu0 %v1091
        %v1322 = vpop.f32.mrb[0].mxu0
        %v1323 = vadd.f32 %v937, %v1322
        %v1324 = vpop.f32.mrb[0].mxu0
        %1325 = vmatprep.mubr.f32.mxu0 0.0
        %1326 = vmatmul.mubr.f32.gmra.mrb[0].mxu0 %v1093
        %v1327 = vpop.f32.mrb[0].mxu0
        %v1328 = vadd.f32 %v942, %v1327
        %v1329 = vpop.f32.mrb[0].mxu0
        %1330 = vmatprep.mubr.f32.mxu0 0.0
        %1331 = vmatmul.mubr.f32.gmra.mrb[0].mxu0 %v1096
        %v1332 = vpop.f32.mrb[0].mxu0
        %v1333 = vadd.f32 %v947, %v1332
        %v1334 = vpop.f32.mrb[0].mxu0
        %1335 = vmatprep.mubr.f32.mxu0 0.0
        %1336 = vmatmul.mubr.f32.gmra.mrb[0].mxu0 %v1098
        %v1337 = vpop.f32.mrb[0].mxu0
        %v1338 = vadd.f32 %v952, %v1337
        %v1339 = vpop.f32.mrb[0].mxu0
        %1340 = vmatprep.mubr.f32.mxu0 0.0
        %1341 = vmatmul.mubr.f32.gmra.mrb[0].mxu0 %v1101
        %v1342 = vpop.f32.mrb[0].mxu0
        %v1343 = vadd.f32 %v957, %v1342
        %v1344 = vpop.f32.mrb[0].mxu0
        %1345 = vmatprep.mubr.f32.mxu0 0.0
        %1346 = vmatmul.mubr.f32.gmra.mrb[0].mxu0 %v1103
        %v1347 = vpop.f32.mrb[0].mxu0
        %v1348 = vadd.f32 %v962, %v1347
        %v1349 = vpop.f32.mrb[0].mxu0
        %1350 = vmatprep.mubr.f32.mxu0 0.0
        %1351 = vmatmul.mubr.f32.gmra.mrb[0].mxu0 %v1106
        %v1352 = vpop.f32.mrb[0].mxu0
        %v1353 = vadd.f32 %v967, %v1352
        %v1354 = vpop.f32.mrb[0].mxu0
        %1355 = vmatprep.mubr.f32.mxu0 0.0
        %1356 = vmatmul.mubr.f32.gmra.mrb[0].mxu0 %v1108
        %v1357 = vpop.f32.mrb[0].mxu0
        %v1358 = vadd.f32 %v972, %v1357
        %v1359 = vpop.f32.mrb[0].mxu0
        %1360 = vmatprep.mubr.f32.mxu0 0.0
        %1361 = vmatmul.mubr.f32.gmra.mrb[0].mxu0 %v1111
        %v1362 = vpop.f32.mrb[0].mxu0
        %v1363 = vadd.f32 %v977, %v1362
        %v1364 = vpop.f32.mrb[0].mxu0
        %1365 = vmatprep.mubr.f32.mxu0 0.0
        %1366 = vmatmul.mubr.f32.gmra.mrb[0].mxu0 %v1113
        %v1367 = vpop.f32.mrb[0].mxu0
        %v1368 = vadd.f32 %v982, %v1367
        %v1369 = vpop.f32.mrb[0].mxu0
        %1370 = vdwg.mxu0
        %s1371 = scalar_lea.vmem %s2, 256
        %v1372 = vld [vmem:[%s1371] sm:$0xff]
        %v1373 = vld [vmem:[%s1371 + $0x8] sm:$0xff]
        %v1374 = vld [vmem:[%s1371 + $0x10] sm:$0xff]
        %v1375 = vld [vmem:[%s1371 + $0x18] sm:$0xff]
        %v1376 = vld [vmem:[%s1371 + $0x20] sm:$0xff]
        %v1377 = vld [vmem:[%s1371 + $0x28] sm:$0xff]
        %v1378 = vld [vmem:[%s1371 + $0x30] sm:$0xff]
        %v1379 = vld [vmem:[%s1371 + $0x38] sm:$0xff]
        %v1380 = vld [vmem:[%s1371 + $0x40] sm:$0xff]
        %v1381 = vld [vmem:[%s1371 + $0x48] sm:$0xff]
        %v1382 = vld [vmem:[%s1371 + $0x50] sm:$0xff]
        %v1383 = vld [vmem:[%s1371 + $0x58] sm:$0xff]
        %v1384 = vld [vmem:[%s1371 + $0x60] sm:$0xff]
        %v1385 = vld [vmem:[%s1371 + $0x68] sm:$0xff]
        %v1386 = vld [vmem:[%s1371 + $0x70] sm:$0xff]
        %v1387 = vld [vmem:[%s1371 + $0x78] sm:$0xff]
        %vm1404 = vcmask 1046528
        %v1405 = vrot.slane %v664, 1
        %v1406 = vrot.slane %v665, 1
        %v1407 = vsel %vm1404, %v1405, %v1406
        %v1408 = vrot.slane %v666, 1
        %v1409 = vsel %vm1404, %v1406, %v1408
        %v1410 = vrot.slane %v668, 1
        %v1411 = vrot.slane %v669, 1
        %v1412 = vsel %vm1404, %v1410, %v1411
        %v1413 = vrot.slane %v670, 1
        %v1414 = vsel %vm1404, %v1411, %v1413
        %v1415 = vrot.slane %v672, 1
        %v1416 = vrot.slane %v673, 1
        %v1417 = vsel %vm1404, %v1415, %v1416
        %v1418 = vrot.slane %v674, 1
        %v1419 = vsel %vm1404, %v1416, %v1418
        %v1420 = vrot.slane %v676, 1
        %v1421 = vrot.slane %v677, 1
        %v1422 = vsel %vm1404, %v1420, %v1421
        %v1423 = vrot.slane %v678, 1
        %v1424 = vsel %vm1404, %v1421, %v1423
        %v1425 = vrot.slane %v680, 1
        %v1426 = vrot.slane %v681, 1
        %v1427 = vsel %vm1404, %v1425, %v1426
        %v1428 = vrot.slane %v682, 1
        %v1429 = vsel %vm1404, %v1426, %v1428
        %v1430 = vrot.slane %v684, 1
        %v1431 = vrot.slane %v685, 1
        %v1432 = vsel %vm1404, %v1430, %v1431
        %v1433 = vrot.slane %v686, 1
        %v1434 = vsel %vm1404, %v1431, %v1433
        %v1435 = vrot.slane %v688, 1
        %v1436 = vrot.slane %v689, 1
        %v1437 = vsel %vm1404, %v1435, %v1436
        %v1438 = vrot.slane %v690, 1
        %v1439 = vsel %vm1404, %v1436, %v1438
        %v1440 = vrot.slane %v692, 1
        %v1441 = vrot.slane %v693, 1
        %v1442 = vsel %vm1404, %v1440, %v1441
        %v1443 = vrot.slane %v694, 1
        %v1444 = vsel %vm1404, %v1441, %v1443
        %v1445 = vrot.slane %v696, 1
        %v1446 = vrot.slane %v697, 1
        %v1447 = vsel %vm1404, %v1445, %v1446
        %v1448 = vrot.slane %v698, 1
        %v1449 = vsel %vm1404, %v1446, %v1448
        %v1450 = vrot.slane %v700, 1
        %v1451 = vrot.slane %v701, 1
        %v1452 = vsel %vm1404, %v1450, %v1451
        %v1453 = vrot.slane %v702, 1
        %v1454 = vsel %vm1404, %v1451, %v1453
        %v1455 = vrot.slane %v704, 1
        %v1456 = vrot.slane %v705, 1
        %v1457 = vsel %vm1404, %v1455, %v1456
        %v1458 = vrot.slane %v706, 1
        %v1459 = vsel %vm1404, %v1456, %v1458
        %v1460 = vrot.slane %v708, 1
        %v1461 = vrot.slane %v709, 1
        %v1462 = vsel %vm1404, %v1460, %v1461
        %v1463 = vrot.slane %v710, 1
        %v1464 = vsel %vm1404, %v1461, %v1463
        %v1465 = vrot.slane %v712, 1
        %v1466 = vrot.slane %v713, 1
        %v1467 = vsel %vm1404, %v1465, %v1466
        %v1468 = vrot.slane %v714, 1
        %v1469 = vsel %vm1404, %v1466, %v1468
        %v1470 = vrot.slane %v716, 1
        %v1471 = vrot.slane %v717, 1
        %v1472 = vsel %vm1404, %v1470, %v1471
        %v1473 = vrot.slane %v718, 1
        %v1474 = vsel %vm1404, %v1471, %v1473
        %v1475 = vrot.slane %v720, 1
        %v1476 = vrot.slane %v721, 1
        %v1477 = vsel %vm1404, %v1475, %v1476
        %v1478 = vrot.slane %v722, 1
        %v1479 = vsel %vm1404, %v1476, %v1478
        %v1480 = vrot.slane %v724, 1
        %v1481 = vrot.slane %v725, 1
        %v1482 = vsel %vm1404, %v1480, %v1481
        %v1483 = vrot.slane %v726, 1
        %v1484 = vsel %vm1404, %v1481, %v1483
        %1517 = vmatprep.subr.mxu0 0.0
        %1518 = vmatpush1.msra.mxu0 %v1372
        %1519 = vmatprep.subr.mxu0 0.0
        %1520 = vmatpush1.msra.mxu0 %v1373
        %1521 = vmatprep.subr.mxu0 0.0
        %1522 = vmatpush1.msra.mxu0 %v1374
        %1523 = vmatprep.subr.mxu0 0.0
        %1524 = vmatpush1.msra.mxu0 %v1375
        %1525 = vmatprep.subr.mxu0 0.0
        %1526 = vmatpush1.msra.mxu0 %v1376
        %1527 = vmatprep.subr.mxu0 0.0
        %1528 = vmatpush1.msra.mxu0 %v1377
        %1529 = vmatprep.subr.mxu0 0.0
        %1530 = vmatpush1.msra.mxu0 %v1378
        %1531 = vmatprep.subr.mxu0 0.0
        %1532 = vmatpush1.msra.mxu0 %v1379
        %1533 = vmatprep.subr.mxu0 0.0
        %1534 = vmatpush1.msra.mxu0 %v1380
        %1535 = vmatprep.subr.mxu0 0.0
        %1536 = vmatpush1.msra.mxu0 %v1381
        %1537 = vmatprep.subr.mxu0 0.0
        %1538 = vmatpush1.msra.mxu0 %v1382
        %1539 = vmatprep.subr.mxu0 0.0
        %1540 = vmatpush1.msra.mxu0 %v1383
        %1541 = vmatprep.subr.mxu0 0.0
        %1542 = vmatpush1.msra.mxu0 %v1384
        %1543 = vmatprep.subr.mxu0 0.0
        %1544 = vmatpush1.msra.mxu0 %v1385
        %1545 = vmatprep.subr.mxu0 0.0
        %1546 = vmatpush1.msra.mxu0 %v1386
        %1547 = vmatprep.subr.mxu0 0.0
        %1548 = vmatpush1.msra.mxu0 %v1387
        %1549 = vmatprep.subr.mxu0 0.0
        %1550 = vmatpush1.msra.mxu0 0.0
        %1551 = vmatprep.subr.mxu0 0.0
        %1552 = vmatpush1.msra.mxu0 0.0
        %1553 = vmatprep.subr.mxu0 0.0
        %1554 = vmatpush1.msra.mxu0 0.0
        %1555 = vmatprep.subr.mxu0 0.0
        %1556 = vmatpush1.msra.mxu0 0.0
        %1557 = vmatprep.subr.mxu0 0.0
        %1558 = vmatpush1.msra.mxu0 0.0
        %1559 = vmatprep.subr.mxu0 0.0
        %1560 = vmatpush1.msra.mxu0 0.0
        %1561 = vmatprep.subr.mxu0 0.0
        %1562 = vmatpush1.msra.mxu0 0.0
        %1563 = vmatprep.subr.mxu0 0.0
        %1564 = vmatpush1.msra.mxu0 0.0
        %1565 = vmatprep.subr.mxu0 0.0
        %1566 = vmatpush1.msra.mxu0 0.0
        %1567 = vmatprep.subr.mxu0 0.0
        %1568 = vmatpush1.msra.mxu0 0.0
        %1569 = vmatprep.subr.mxu0 0.0
        %1570 = vmatpush1.msra.mxu0 0.0
        %1571 = vmatprep.subr.mxu0 0.0
        %1572 = vmatpush1.msra.mxu0 0.0
        %1573 = vmatprep.subr.mxu0 0.0
        %1574 = vmatpush1.msra.mxu0 0.0
        %1575 = vmatprep.subr.mxu0 0.0
        %1576 = vmatpush1.msra.mxu0 0.0
        %1577 = vmatprep.subr.mxu0 0.0
        %1578 = vmatpush1.msra.mxu0 0.0
        %1579 = vmatprep.subr.mxu0 0.0
        %1580 = vmatpush1.msra.mxu0 0.0
        %1581 = vmatprep.mubr.f32.mxu0 0.0
        %1582 = vmatmul.mubr.f32.gmra.mrb[0].mxu0 %v1407
        %v1583 = vpop.f32.mrb[0].mxu0
        %v1584 = vadd.f32 0.0, %v1583
        %v1585 = vpop.f32.mrb[0].mxu0
        %1586 = vmatprep.mubr.f32.mxu0 0.0
        %1587 = vmatmul.mubr.f32.gmra.mrb[0].mxu0 %v1409
        %v1588 = vpop.f32.mrb[0].mxu0
        %v1589 = vadd.f32 0.0, %v1588
        %v1590 = vpop.f32.mrb[0].mxu0
        %1591 = vmatprep.mubr.f32.mxu0 0.0
        %1592 = vmatmul.mubr.f32.gmra.mrb[0].mxu0 %v1412
        %v1593 = vpop.f32.mrb[0].mxu0
        %v1594 = vadd.f32 0.0, %v1593
        %v1595 = vpop.f32.mrb[0].mxu0
        %1596 = vmatprep.mubr.f32.mxu0 0.0
        %1597 = vmatmul.mubr.f32.gmra.mrb[0].mxu0 %v1414
        %v1598 = vpop.f32.mrb[0].mxu0
        %v1599 = vadd.f32 0.0, %v1598
        %v1600 = vpop.f32.mrb[0].mxu0
        %1601 = vmatprep.mubr.f32.mxu0 0.0
        %1602 = vmatmul.mubr.f32.gmra.mrb[0].mxu0 %v1417
        %v1603 = vpop.f32.mrb[0].mxu0
        %v1604 = vadd.f32 0.0, %v1603
        %v1605 = vpop.f32.mrb[0].mxu0
        %1606 = vmatprep.mubr.f32.mxu0 0.0
        %1607 = vmatmul.mubr.f32.gmra.mrb[0].mxu0 %v1419
        %v1608 = vpop.f32.mrb[0].mxu0
        %v1609 = vadd.f32 0.0, %v1608
        %v1610 = vpop.f32.mrb[0].mxu0
        %1611 = vmatprep.mubr.f32.mxu0 0.0
        %1612 = vmatmul.mubr.f32.gmra.mrb[0].mxu0 %v1422
        %v1613 = vpop.f32.mrb[0].mxu0
        %v1614 = vadd.f32 0.0, %v1613
        %v1615 = vpop.f32.mrb[0].mxu0
        %1616 = vmatprep.mubr.f32.mxu0 0.0
        %1617 = vmatmul.mubr.f32.gmra.mrb[0].mxu0 %v1424
        %v1618 = vpop.f32.mrb[0].mxu0
        %v1619 = vadd.f32 0.0, %v1618
        %v1620 = vpop.f32.mrb[0].mxu0
        %1621 = vmatprep.mubr.f32.mxu0 0.0
        %1622 = vmatmul.mubr.f32.gmra.mrb[0].mxu0 %v1427
        %v1623 = vpop.f32.mrb[0].mxu0
        %v1624 = vadd.f32 0.0, %v1623
        %v1625 = vpop.f32.mrb[0].mxu0
        %1626 = vmatprep.mubr.f32.mxu0 0.0
        %1627 = vmatmul.mubr.f32.gmra.mrb[0].mxu0 %v1429
        %v1628 = vpop.f32.mrb[0].mxu0
        %v1629 = vadd.f32 0.0, %v1628
        %v1630 = vpop.f32.mrb[0].mxu0
        %1631 = vmatprep.mubr.f32.mxu0 0.0
        %1632 = vmatmul.mubr.f32.gmra.mrb[0].mxu0 %v1432
        %v1633 = vpop.f32.mrb[0].mxu0
        %v1634 = vadd.f32 0.0, %v1633
        %v1635 = vpop.f32.mrb[0].mxu0
        %1636 = vmatprep.mubr.f32.mxu0 0.0
        %1637 = vmatmul.mubr.f32.gmra.mrb[0].mxu0 %v1434
        %v1638 = vpop.f32.mrb[0].mxu0
        %v1639 = vadd.f32 0.0, %v1638
        %v1640 = vpop.f32.mrb[0].mxu0
        %1641 = vmatprep.mubr.f32.mxu0 0.0
        %1642 = vmatmul.mubr.f32.gmra.mrb[0].mxu0 %v1437
        %v1643 = vpop.f32.mrb[0].mxu0
        %v1644 = vadd.f32 0.0, %v1643
        %v1645 = vpop.f32.mrb[0].mxu0
        %1646 = vmatprep.mubr.f32.mxu0 0.0
        %1647 = vmatmul.mubr.f32.gmra.mrb[0].mxu0 %v1439
        %v1648 = vpop.f32.mrb[0].mxu0
        %v1649 = vadd.f32 0.0, %v1648
        %v1650 = vpop.f32.mrb[0].mxu0
        %1651 = vmatprep.mubr.f32.mxu0 0.0
        %1652 = vmatmul.mubr.f32.gmra.mrb[0].mxu0 %v1442
        %v1653 = vpop.f32.mrb[0].mxu0
        %v1654 = vadd.f32 0.0, %v1653
        %v1655 = vpop.f32.mrb[0].mxu0
        %1656 = vmatprep.mubr.f32.mxu0 0.0
        %1657 = vmatmul.mubr.f32.gmra.mrb[0].mxu0 %v1444
        %v1658 = vpop.f32.mrb[0].mxu0
        %v1659 = vadd.f32 0.0, %v1658
        %v1660 = vpop.f32.mrb[0].mxu0
        %1661 = vmatprep.mubr.f32.mxu0 0.0
        %1662 = vmatmul.mubr.f32.gmra.mrb[0].mxu0 %v1447
        %v1663 = vpop.f32.mrb[0].mxu0
        %v1664 = vadd.f32 0.0, %v1663
        %v1665 = vpop.f32.mrb[0].mxu0
        %1666 = vmatprep.mubr.f32.mxu0 0.0
        %1667 = vmatmul.mubr.f32.gmra.mrb[0].mxu0 %v1449
        %v1668 = vpop.f32.mrb[0].mxu0
        %v1669 = vadd.f32 0.0, %v1668
        %v1670 = vpop.f32.mrb[0].mxu0
        %1671 = vmatprep.mubr.f32.mxu0 0.0
        %1672 = vmatmul.mubr.f32.gmra.mrb[0].mxu0 %v1452
        %v1673 = vpop.f32.mrb[0].mxu0
        %v1674 = vadd.f32 0.0, %v1673
        %v1675 = vpop.f32.mrb[0].mxu0
        %1676 = vmatprep.mubr.f32.mxu0 0.0
        %1677 = vmatmul.mubr.f32.gmra.mrb[0].mxu0 %v1454
        %v1678 = vpop.f32.mrb[0].mxu0
        %v1679 = vadd.f32 0.0, %v1678
        %v1680 = vpop.f32.mrb[0].mxu0
        %1681 = vmatprep.mubr.f32.mxu0 0.0
        %1682 = vmatmul.mubr.f32.gmra.mrb[0].mxu0 %v1457
        %v1683 = vpop.f32.mrb[0].mxu0
        %v1684 = vadd.f32 0.0, %v1683
        %v1685 = vpop.f32.mrb[0].mxu0
        %1686 = vmatprep.mubr.f32.mxu0 0.0
        %1687 = vmatmul.mubr.f32.gmra.mrb[0].mxu0 %v1459
        %v1688 = vpop.f32.mrb[0].mxu0
        %v1689 = vadd.f32 0.0, %v1688
        %v1690 = vpop.f32.mrb[0].mxu0
        %1691 = vmatprep.mubr.f32.mxu0 0.0
        %1692 = vmatmul.mubr.f32.gmra.mrb[0].mxu0 %v1462
        %v1693 = vpop.f32.mrb[0].mxu0
        %v1694 = vadd.f32 0.0, %v1693
        %v1695 = vpop.f32.mrb[0].mxu0
        %1696 = vmatprep.mubr.f32.mxu0 0.0
        %1697 = vmatmul.mubr.f32.gmra.mrb[0].mxu0 %v1464
        %v1698 = vpop.f32.mrb[0].mxu0
        %v1699 = vadd.f32 0.0, %v1698
        %v1700 = vpop.f32.mrb[0].mxu0
        %1701 = vmatprep.mubr.f32.mxu0 0.0
        %1702 = vmatmul.mubr.f32.gmra.mrb[0].mxu0 %v1467
        %v1703 = vpop.f32.mrb[0].mxu0
        %v1704 = vadd.f32 0.0, %v1703
        %v1705 = vpop.f32.mrb[0].mxu0
        %1706 = vmatprep.mubr.f32.mxu0 0.0
        %1707 = vmatmul.mubr.f32.gmra.mrb[0].mxu0 %v1469
        %v1708 = vpop.f32.mrb[0].mxu0
        %v1709 = vadd.f32 0.0, %v1708
        %v1710 = vpop.f32.mrb[0].mxu0
        %1711 = vmatprep.mubr.f32.mxu0 0.0
        %1712 = vmatmul.mubr.f32.gmra.mrb[0].mxu0 %v1472
        %v1713 = vpop.f32.mrb[0].mxu0
        %v1714 = vadd.f32 0.0, %v1713
        %v1715 = vpop.f32.mrb[0].mxu0
        %1716 = vmatprep.mubr.f32.mxu0 0.0
        %1717 = vmatmul.mubr.f32.gmra.mrb[0].mxu0 %v1474
        %v1718 = vpop.f32.mrb[0].mxu0
        %v1719 = vadd.f32 0.0, %v1718
        %v1720 = vpop.f32.mrb[0].mxu0
        %1721 = vmatprep.mubr.f32.mxu0 0.0
        %1722 = vmatmul.mubr.f32.gmra.mrb[0].mxu0 %v1477
        %v1723 = vpop.f32.mrb[0].mxu0
        %v1724 = vadd.f32 0.0, %v1723
        %v1725 = vpop.f32.mrb[0].mxu0
        %1726 = vmatprep.mubr.f32.mxu0 0.0
        %1727 = vmatmul.mubr.f32.gmra.mrb[0].mxu0 %v1479
        %v1728 = vpop.f32.mrb[0].mxu0
        %v1729 = vadd.f32 0.0, %v1728
        %v1730 = vpop.f32.mrb[0].mxu0
        %1731 = vmatprep.mubr.f32.mxu0 0.0
        %1732 = vmatmul.mubr.f32.gmra.mrb[0].mxu0 %v1482
        %v1733 = vpop.f32.mrb[0].mxu0
        %v1734 = vadd.f32 0.0, %v1733
        %v1735 = vpop.f32.mrb[0].mxu0
        %1736 = vmatprep.mubr.f32.mxu0 0.0
        %1737 = vmatmul.mubr.f32.gmra.mrb[0].mxu0 %v1484
        %v1738 = vpop.f32.mrb[0].mxu0
        %v1739 = vadd.f32 0.0, %v1738
        %v1740 = vpop.f32.mrb[0].mxu0
        %1741 = vdwg.mxu0
        %v1742 = vadd.f32 %v1213, %v1584
        %v1743 = vadd.f32 %v1218, %v1589
        %v1744 = vadd.f32 %v1223, %v1594
        %v1745 = vadd.f32 %v1228, %v1599
        %v1746 = vadd.f32 %v1233, %v1604
        %v1747 = vadd.f32 %v1238, %v1609
        %v1748 = vadd.f32 %v1243, %v1614
        %v1749 = vadd.f32 %v1248, %v1619
        %v1750 = vadd.f32 %v1253, %v1624
        %v1751 = vadd.f32 %v1258, %v1629
        %v1752 = vadd.f32 %v1263, %v1634
        %v1753 = vadd.f32 %v1268, %v1639
        %v1754 = vadd.f32 %v1273, %v1644
        %v1755 = vadd.f32 %v1278, %v1649
        %v1756 = vadd.f32 %v1283, %v1654
        %v1757 = vadd.f32 %v1288, %v1659
        %v1758 = vadd.f32 %v1293, %v1664
        %v1759 = vadd.f32 %v1298, %v1669
        %v1760 = vadd.f32 %v1303, %v1674
        %v1761 = vadd.f32 %v1308, %v1679
        %v1762 = vadd.f32 %v1313, %v1684
        %v1763 = vadd.f32 %v1318, %v1689
        %v1764 = vadd.f32 %v1323, %v1694
        %v1765 = vadd.f32 %v1328, %v1699
        %v1766 = vadd.f32 %v1333, %v1704
        %v1767 = vadd.f32 %v1338, %v1709
        %v1768 = vadd.f32 %v1343, %v1714
        %v1769 = vadd.f32 %v1348, %v1719
        %v1770 = vadd.f32 %v1353, %v1724
        %v1771 = vadd.f32 %v1358, %v1729
        %v1772 = vadd.f32 %v1363, %v1734
        %v1773 = vadd.f32 %v1368, %v1739
        %v1774 = vld [vmem:[%s598] sm:$0xff]
        %v1775 = vld [vmem:[%s598 + $0x8] sm:$0xff]
        %v1776 = vld [vmem:[%s598 + $0x10] sm:$0xff]
        %v1777 = vld [vmem:[%s598 + $0x18] sm:$0xff]
        %v1778 = vld [vmem:[%s598 + $0x20] sm:$0xff]
        %v1779 = vld [vmem:[%s598 + $0x28] sm:$0xff]
        %v1780 = vld [vmem:[%s598 + $0x30] sm:$0xff]
        %v1781 = vld [vmem:[%s598 + $0x38] sm:$0xff]
        %v1782 = vld [vmem:[%s598 + $0x40] sm:$0xff]
        %v1783 = vld [vmem:[%s598 + $0x48] sm:$0xff]
        %v1784 = vld [vmem:[%s598 + $0x50] sm:$0xff]
        %v1785 = vld [vmem:[%s598 + $0x58] sm:$0xff]
        %v1786 = vld [vmem:[%s598 + $0x60] sm:$0xff]
        %v1787 = vld [vmem:[%s598 + $0x68] sm:$0xff]
        %v1788 = vld [vmem:[%s598 + $0x70] sm:$0xff]
        %v1789 = vld [vmem:[%s598 + $0x78] sm:$0xff]
        %v1790 = vld [vmem:[%s598 + $0x80] sm:$0xff]
        %v1791 = vld [vmem:[%s598 + $0x88] sm:$0xff]
        %v1792 = vld [vmem:[%s598 + $0x90] sm:$0xff]
        %v1793 = vld [vmem:[%s598 + $0x98] sm:$0xff]
        %v1794 = vld [vmem:[%s598 + $0xa0] sm:$0xff]
        %v1795 = vld [vmem:[%s598 + $0xa8] sm:$0xff]
        %v1796 = vld [vmem:[%s598 + $0xb0] sm:$0xff]
        %v1797 = vld [vmem:[%s598 + $0xb8] sm:$0xff]
        %v1798 = vld [vmem:[%s598 + $0xc0] sm:$0xff]
        %v1799 = vld [vmem:[%s598 + $0xc8] sm:$0xff]
        %v1800 = vld [vmem:[%s598 + $0xd0] sm:$0xff]
        %v1801 = vld [vmem:[%s598 + $0xd8] sm:$0xff]
        %v1802 = vld [vmem:[%s598 + $0xe0] sm:$0xff]
        %v1803 = vld [vmem:[%s598 + $0xe8] sm:$0xff]
        %v1804 = vld [vmem:[%s598 + $0xf0] sm:$0xff]
        %v1805 = vld [vmem:[%s598 + $0xf8] sm:$0xff]
        %v1806 = vld [vmem:[%s598 + $0x100] sm:$0xff]
        %v1807 = vld [vmem:[%s598 + $0x108] sm:$0xff]
        %v1808 = vld [vmem:[%s598 + $0x110] sm:$0xff]
        %v1809 = vld [vmem:[%s598 + $0x118] sm:$0xff]
        %v1810 = vld [vmem:[%s598 + $0x120] sm:$0xff]
        %v1811 = vld [vmem:[%s598 + $0x128] sm:$0xff]
        %v1812 = vld [vmem:[%s598 + $0x130] sm:$0xff]
        %v1813 = vld [vmem:[%s598 + $0x138] sm:$0xff]
        %v1814 = vld [vmem:[%s598 + $0x140] sm:$0xff]
        %v1815 = vld [vmem:[%s598 + $0x148] sm:$0xff]
        %v1816 = vld [vmem:[%s598 + $0x150] sm:$0xff]
        %v1817 = vld [vmem:[%s598 + $0x158] sm:$0xff]
        %v1818 = vld [vmem:[%s598 + $0x160] sm:$0xff]
        %v1819 = vld [vmem:[%s598 + $0x168] sm:$0xff]
        %v1820 = vld [vmem:[%s598 + $0x170] sm:$0xff]
        %v1821 = vld [vmem:[%s598 + $0x178] sm:$0xff]
        %v1822 = vld [vmem:[%s598 + $0x180] sm:$0xff]
        %v1823 = vld [vmem:[%s598 + $0x188] sm:$0xff]
        %v1824 = vld [vmem:[%s598 + $0x190] sm:$0xff]
        %v1825 = vld [vmem:[%s598 + $0x198] sm:$0xff]
        %v1826 = vld [vmem:[%s598 + $0x1a0] sm:$0xff]
        %v1827 = vld [vmem:[%s598 + $0x1a8] sm:$0xff]
        %v1828 = vld [vmem:[%s598 + $0x1b0] sm:$0xff]
        %v1829 = vld [vmem:[%s598 + $0x1b8] sm:$0xff]
        %v1830 = vld [vmem:[%s598 + $0x1c0] sm:$0xff]
        %v1831 = vld [vmem:[%s598 + $0x1c8] sm:$0xff]
        %v1832 = vld [vmem:[%s598 + $0x1d0] sm:$0xff]
        %v1833 = vld [vmem:[%s598 + $0x1d8] sm:$0xff]
        %v1834 = vld [vmem:[%s598 + $0x1e0] sm:$0xff]
        %v1835 = vld [vmem:[%s598 + $0x1e8] sm:$0xff]
        %v1836 = vld [vmem:[%s598 + $0x1f0] sm:$0xff]
        %v1837 = vld [vmem:[%s598 + $0x1f8] sm:$0xff]
        %s1838 = scalar_lea.vmem %s2, 384
        %v1839 = vld [vmem:[%s1838] sm:$0xff]
        %v1840 = vld [vmem:[%s1838 + $0x8] sm:$0xff]
        %v1841 = vld [vmem:[%s1838 + $0x10] sm:$0xff]
        %v1842 = vld [vmem:[%s1838 + $0x18] sm:$0xff]
        %v1843 = vld [vmem:[%s1838 + $0x20] sm:$0xff]
        %v1844 = vld [vmem:[%s1838 + $0x28] sm:$0xff]
        %v1845 = vld [vmem:[%s1838 + $0x30] sm:$0xff]
        %v1846 = vld [vmem:[%s1838 + $0x38] sm:$0xff]
        %v1847 = vld [vmem:[%s1838 + $0x40] sm:$0xff]
        %v1848 = vld [vmem:[%s1838 + $0x48] sm:$0xff]
        %v1849 = vld [vmem:[%s1838 + $0x50] sm:$0xff]
        %v1850 = vld [vmem:[%s1838 + $0x58] sm:$0xff]
        %v1851 = vld [vmem:[%s1838 + $0x60] sm:$0xff]
        %v1852 = vld [vmem:[%s1838 + $0x68] sm:$0xff]
        %v1853 = vld [vmem:[%s1838 + $0x70] sm:$0xff]
        %v1854 = vld [vmem:[%s1838 + $0x78] sm:$0xff]
        %v1903 = vrot.slane %v1774, 7
        %v1904 = vrot.slane %v1775, 7
        %v1905 = vsel %vm1033, %v1903, %v1904
        %v1906 = vrot.slane %v1776, 7
        %v1907 = vsel %vm1033, %v1904, %v1906
        %v1908 = vrot.slane %v1778, 7
        %v1909 = vrot.slane %v1779, 7
        %v1910 = vsel %vm1033, %v1908, %v1909
        %v1911 = vrot.slane %v1780, 7
        %v1912 = vsel %vm1033, %v1909, %v1911
        %v1913 = vrot.slane %v1782, 7
        %v1914 = vrot.slane %v1783, 7
        %v1915 = vsel %vm1033, %v1913, %v1914
        %v1916 = vrot.slane %v1784, 7
        %v1917 = vsel %vm1033, %v1914, %v1916
        %v1918 = vrot.slane %v1786, 7
        %v1919 = vrot.slane %v1787, 7
        %v1920 = vsel %vm1033, %v1918, %v1919
        %v1921 = vrot.slane %v1788, 7
        %v1922 = vsel %vm1033, %v1919, %v1921
        %v1923 = vrot.slane %v1790, 7
        %v1924 = vrot.slane %v1791, 7
        %v1925 = vsel %vm1033, %v1923, %v1924
        %v1926 = vrot.slane %v1792, 7
        %v1927 = vsel %vm1033, %v1924, %v1926
        %v1928 = vrot.slane %v1794, 7
        %v1929 = vrot.slane %v1795, 7
        %v1930 = vsel %vm1033, %v1928, %v1929
        %v1931 = vrot.slane %v1796, 7
        %v1932 = vsel %vm1033, %v1929, %v1931
        %v1933 = vrot.slane %v1798, 7
        %v1934 = vrot.slane %v1799, 7
        %v1935 = vsel %vm1033, %v1933, %v1934
        %v1936 = vrot.slane %v1800, 7
        %v1937 = vsel %vm1033, %v1934, %v1936
        %v1938 = vrot.slane %v1802, 7
        %v1939 = vrot.slane %v1803, 7
        %v1940 = vsel %vm1033, %v1938, %v1939
        %v1941 = vrot.slane %v1804, 7
        %v1942 = vsel %vm1033, %v1939, %v1941
        %v1943 = vrot.slane %v1806, 7
        %v1944 = vrot.slane %v1807, 7
        %v1945 = vsel %vm1033, %v1943, %v1944
        %v1946 = vrot.slane %v1808, 7
        %v1947 = vsel %vm1033, %v1944, %v1946
        %v1948 = vrot.slane %v1810, 7
        %v1949 = vrot.slane %v1811, 7
        %v1950 = vsel %vm1033, %v1948, %v1949
        %v1951 = vrot.slane %v1812, 7
        %v1952 = vsel %vm1033, %v1949, %v1951
        %v1953 = vrot.slane %v1814, 7
        %v1954 = vrot.slane %v1815, 7
        %v1955 = vsel %vm1033, %v1953, %v1954
        %v1956 = vrot.slane %v1816, 7
        %v1957 = vsel %vm1033, %v1954, %v1956
        %v1958 = vrot.slane %v1818, 7
        %v1959 = vrot.slane %v1819, 7
        %v1960 = vsel %vm1033, %v1958, %v1959
        %v1961 = vrot.slane %v1820, 7
        %v1962 = vsel %vm1033, %v1959, %v1961
        %v1963 = vrot.slane %v1822, 7
        %v1964 = vrot.slane %v1823, 7
        %v1965 = vsel %vm1033, %v1963, %v1964
        %v1966 = vrot.slane %v1824, 7
        %v1967 = vsel %vm1033, %v1964, %v1966
        %v1968 = vrot.slane %v1826, 7
        %v1969 = vrot.slane %v1827, 7
        %v1970 = vsel %vm1033, %v1968, %v1969
        %v1971 = vrot.slane %v1828, 7
        %v1972 = vsel %vm1033, %v1969, %v1971
        %v1973 = vrot.slane %v1830, 7
        %v1974 = vrot.slane %v1831, 7
        %v1975 = vsel %vm1033, %v1973, %v1974
        %v1976 = vrot.slane %v1832, 7
        %v1977 = vsel %vm1033, %v1974, %v1976
        %v1978 = vrot.slane %v1834, 7
        %v1979 = vrot.slane %v1835, 7
        %v1980 = vsel %vm1033, %v1978, %v1979
        %v1981 = vrot.slane %v1836, 7
        %v1982 = vsel %vm1033, %v1979, %v1981
        %2015 = vmatprep.subr.mxu0 0.0
        %2016 = vmatpush1.msra.mxu0 %v1839
        %2017 = vmatprep.subr.mxu0 0.0
        %2018 = vmatpush1.msra.mxu0 %v1840
        %2019 = vmatprep.subr.mxu0 0.0
        %2020 = vmatpush1.msra.mxu0 %v1841
        %2021 = vmatprep.subr.mxu0 0.0
        %2022 = vmatpush1.msra.mxu0 %v1842
        %2023 = vmatprep.subr.mxu0 0.0
        %2024 = vmatpush1.msra.mxu0 %v1843
        %2025 = vmatprep.subr.mxu0 0.0
        %2026 = vmatpush1.msra.mxu0 %v1844
        %2027 = vmatprep.subr.mxu0 0.0
        %2028 = vmatpush1.msra.mxu0 %v1845
        %2029 = vmatprep.subr.mxu0 0.0
        %2030 = vmatpush1.msra.mxu0 %v1846
        %2031 = vmatprep.subr.mxu0 0.0
        %2032 = vmatpush1.msra.mxu0 %v1847
        %2033 = vmatprep.subr.mxu0 0.0
        %2034 = vmatpush1.msra.mxu0 %v1848
        %2035 = vmatprep.subr.mxu0 0.0
        %2036 = vmatpush1.msra.mxu0 %v1849
        %2037 = vmatprep.subr.mxu0 0.0
        %2038 = vmatpush1.msra.mxu0 %v1850
        %2039 = vmatprep.subr.mxu0 0.0
        %2040 = vmatpush1.msra.mxu0 %v1851
        %2041 = vmatprep.subr.mxu0 0.0
        %2042 = vmatpush1.msra.mxu0 %v1852
        %2043 = vmatprep.subr.mxu0 0.0
        %2044 = vmatpush1.msra.mxu0 %v1853
        %2045 = vmatprep.subr.mxu0 0.0
        %2046 = vmatpush1.msra.mxu0 %v1854
        %2047 = vmatprep.subr.mxu0 0.0
        %2048 = vmatpush1.msra.mxu0 0.0
        %2049 = vmatprep.subr.mxu0 0.0
        %2050 = vmatpush1.msra.mxu0 0.0
        %2051 = vmatprep.subr.mxu0 0.0
        %2052 = vmatpush1.msra.mxu0 0.0
        %2053 = vmatprep.subr.mxu0 0.0
        %2054 = vmatpush1.msra.mxu0 0.0
        %2055 = vmatprep.subr.mxu0 0.0
        %2056 = vmatpush1.msra.mxu0 0.0
        %2057 = vmatprep.subr.mxu0 0.0
        %2058 = vmatpush1.msra.mxu0 0.0
        %2059 = vmatprep.subr.mxu0 0.0
        %2060 = vmatpush1.msra.mxu0 0.0
        %2061 = vmatprep.subr.mxu0 0.0
        %2062 = vmatpush1.msra.mxu0 0.0
        %2063 = vmatprep.subr.mxu0 0.0
        %2064 = vmatpush1.msra.mxu0 0.0
        %2065 = vmatprep.subr.mxu0 0.0
        %2066 = vmatpush1.msra.mxu0 0.0
        %2067 = vmatprep.subr.mxu0 0.0
        %2068 = vmatpush1.msra.mxu0 0.0
        %2069 = vmatprep.subr.mxu0 0.0
        %2070 = vmatpush1.msra.mxu0 0.0
        %2071 = vmatprep.subr.mxu0 0.0
        %2072 = vmatpush1.msra.mxu0 0.0
        %2073 = vmatprep.subr.mxu0 0.0
        %2074 = vmatpush1.msra.mxu0 0.0
        %2075 = vmatprep.subr.mxu0 0.0
        %2076 = vmatpush1.msra.mxu0 0.0
        %2077 = vmatprep.subr.mxu0 0.0
        %2078 = vmatpush1.msra.mxu0 0.0
        %2079 = vmatprep.mubr.f32.mxu0 0.0
        %2080 = vmatmul.mubr.f32.gmra.mrb[0].mxu0 %v1905
        %v2081 = vpop.f32.mrb[0].mxu0
        %v2082 = vadd.f32 0.0, %v2081
        %v2083 = vpop.f32.mrb[0].mxu0
        %2084 = vmatprep.mubr.f32.mxu0 0.0
        %2085 = vmatmul.mubr.f32.gmra.mrb[0].mxu0 %v1907
        %v2086 = vpop.f32.mrb[0].mxu0
        %v2087 = vadd.f32 0.0, %v2086
        %v2088 = vpop.f32.mrb[0].mxu0
        %2089 = vmatprep.mubr.f32.mxu0 0.0
        %2090 = vmatmul.mubr.f32.gmra.mrb[0].mxu0 %v1910
        %v2091 = vpop.f32.mrb[0].mxu0
        %v2092 = vadd.f32 0.0, %v2091
        %v2093 = vpop.f32.mrb[0].mxu0
        %2094 = vmatprep.mubr.f32.mxu0 0.0
        %2095 = vmatmul.mubr.f32.gmra.mrb[0].mxu0 %v1912
        %v2096 = vpop.f32.mrb[0].mxu0
        %v2097 = vadd.f32 0.0, %v2096
        %v2098 = vpop.f32.mrb[0].mxu0
        %2099 = vmatprep.mubr.f32.mxu0 0.0
        %2100 = vmatmul.mubr.f32.gmra.mrb[0].mxu0 %v1915
        %v2101 = vpop.f32.mrb[0].mxu0
        %v2102 = vadd.f32 0.0, %v2101
        %v2103 = vpop.f32.mrb[0].mxu0
        %2104 = vmatprep.mubr.f32.mxu0 0.0
        %2105 = vmatmul.mubr.f32.gmra.mrb[0].mxu0 %v1917
        %v2106 = vpop.f32.mrb[0].mxu0
        %v2107 = vadd.f32 0.0, %v2106
        %v2108 = vpop.f32.mrb[0].mxu0
        %2109 = vmatprep.mubr.f32.mxu0 0.0
        %2110 = vmatmul.mubr.f32.gmra.mrb[0].mxu0 %v1920
        %v2111 = vpop.f32.mrb[0].mxu0
        %v2112 = vadd.f32 0.0, %v2111
        %v2113 = vpop.f32.mrb[0].mxu0
        %2114 = vmatprep.mubr.f32.mxu0 0.0
        %2115 = vmatmul.mubr.f32.gmra.mrb[0].mxu0 %v1922
        %v2116 = vpop.f32.mrb[0].mxu0
        %v2117 = vadd.f32 0.0, %v2116
        %v2118 = vpop.f32.mrb[0].mxu0
        %2119 = vmatprep.mubr.f32.mxu0 0.0
        %2120 = vmatmul.mubr.f32.gmra.mrb[0].mxu0 %v1925
        %v2121 = vpop.f32.mrb[0].mxu0
        %v2122 = vadd.f32 0.0, %v2121
        %v2123 = vpop.f32.mrb[0].mxu0
        %2124 = vmatprep.mubr.f32.mxu0 0.0
        %2125 = vmatmul.mubr.f32.gmra.mrb[0].mxu0 %v1927
        %v2126 = vpop.f32.mrb[0].mxu0
        %v2127 = vadd.f32 0.0, %v2126
        %v2128 = vpop.f32.mrb[0].mxu0
        %2129 = vmatprep.mubr.f32.mxu0 0.0
        %2130 = vmatmul.mubr.f32.gmra.mrb[0].mxu0 %v1930
        %v2131 = vpop.f32.mrb[0].mxu0
        %v2132 = vadd.f32 0.0, %v2131
        %v2133 = vpop.f32.mrb[0].mxu0
        %2134 = vmatprep.mubr.f32.mxu0 0.0
        %2135 = vmatmul.mubr.f32.gmra.mrb[0].mxu0 %v1932
        %v2136 = vpop.f32.mrb[0].mxu0
        %v2137 = vadd.f32 0.0, %v2136
        %v2138 = vpop.f32.mrb[0].mxu0
        %2139 = vmatprep.mubr.f32.mxu0 0.0
        %2140 = vmatmul.mubr.f32.gmra.mrb[0].mxu0 %v1935
        %v2141 = vpop.f32.mrb[0].mxu0
        %v2142 = vadd.f32 0.0, %v2141
        %v2143 = vpop.f32.mrb[0].mxu0
        %2144 = vmatprep.mubr.f32.mxu0 0.0
        %2145 = vmatmul.mubr.f32.gmra.mrb[0].mxu0 %v1937
        %v2146 = vpop.f32.mrb[0].mxu0
        %v2147 = vadd.f32 0.0, %v2146
        %v2148 = vpop.f32.mrb[0].mxu0
        %2149 = vmatprep.mubr.f32.mxu0 0.0
        %2150 = vmatmul.mubr.f32.gmra.mrb[0].mxu0 %v1940
        %v2151 = vpop.f32.mrb[0].mxu0
        %v2152 = vadd.f32 0.0, %v2151
        %v2153 = vpop.f32.mrb[0].mxu0
        %2154 = vmatprep.mubr.f32.mxu0 0.0
        %2155 = vmatmul.mubr.f32.gmra.mrb[0].mxu0 %v1942
        %v2156 = vpop.f32.mrb[0].mxu0
        %v2157 = vadd.f32 0.0, %v2156
        %v2158 = vpop.f32.mrb[0].mxu0
        %2159 = vmatprep.mubr.f32.mxu0 0.0
        %2160 = vmatmul.mubr.f32.gmra.mrb[0].mxu0 %v1945
        %v2161 = vpop.f32.mrb[0].mxu0
        %v2162 = vadd.f32 0.0, %v2161
        %v2163 = vpop.f32.mrb[0].mxu0
        %2164 = vmatprep.mubr.f32.mxu0 0.0
        %2165 = vmatmul.mubr.f32.gmra.mrb[0].mxu0 %v1947
        %v2166 = vpop.f32.mrb[0].mxu0
        %v2167 = vadd.f32 0.0, %v2166
        %v2168 = vpop.f32.mrb[0].mxu0
        %2169 = vmatprep.mubr.f32.mxu0 0.0
        %2170 = vmatmul.mubr.f32.gmra.mrb[0].mxu0 %v1950
        %v2171 = vpop.f32.mrb[0].mxu0
        %v2172 = vadd.f32 0.0, %v2171
        %v2173 = vpop.f32.mrb[0].mxu0
        %2174 = vmatprep.mubr.f32.mxu0 0.0
        %2175 = vmatmul.mubr.f32.gmra.mrb[0].mxu0 %v1952
        %v2176 = vpop.f32.mrb[0].mxu0
        %v2177 = vadd.f32 0.0, %v2176
        %v2178 = vpop.f32.mrb[0].mxu0
        %2179 = vmatprep.mubr.f32.mxu0 0.0
        %2180 = vmatmul.mubr.f32.gmra.mrb[0].mxu0 %v1955
        %v2181 = vpop.f32.mrb[0].mxu0
        %v2182 = vadd.f32 0.0, %v2181
        %v2183 = vpop.f32.mrb[0].mxu0
        %2184 = vmatprep.mubr.f32.mxu0 0.0
        %2185 = vmatmul.mubr.f32.gmra.mrb[0].mxu0 %v1957
        %v2186 = vpop.f32.mrb[0].mxu0
        %v2187 = vadd.f32 0.0, %v2186
        %v2188 = vpop.f32.mrb[0].mxu0
        %2189 = vmatprep.mubr.f32.mxu0 0.0
        %2190 = vmatmul.mubr.f32.gmra.mrb[0].mxu0 %v1960
        %v2191 = vpop.f32.mrb[0].mxu0
        %v2192 = vadd.f32 0.0, %v2191
        %v2193 = vpop.f32.mrb[0].mxu0
        %2194 = vmatprep.mubr.f32.mxu0 0.0
        %2195 = vmatmul.mubr.f32.gmra.mrb[0].mxu0 %v1962
        %v2196 = vpop.f32.mrb[0].mxu0
        %v2197 = vadd.f32 0.0, %v2196
        %v2198 = vpop.f32.mrb[0].mxu0
        %2199 = vmatprep.mubr.f32.mxu0 0.0
        %2200 = vmatmul.mubr.f32.gmra.mrb[0].mxu0 %v1965
        %v2201 = vpop.f32.mrb[0].mxu0
        %v2202 = vadd.f32 0.0, %v2201
        %v2203 = vpop.f32.mrb[0].mxu0
        %2204 = vmatprep.mubr.f32.mxu0 0.0
        %2205 = vmatmul.mubr.f32.gmra.mrb[0].mxu0 %v1967
        %v2206 = vpop.f32.mrb[0].mxu0
        %v2207 = vadd.f32 0.0, %v2206
        %v2208 = vpop.f32.mrb[0].mxu0
        %2209 = vmatprep.mubr.f32.mxu0 0.0
        %2210 = vmatmul.mubr.f32.gmra.mrb[0].mxu0 %v1970
        %v2211 = vpop.f32.mrb[0].mxu0
        %v2212 = vadd.f32 0.0, %v2211
        %v2213 = vpop.f32.mrb[0].mxu0
        %2214 = vmatprep.mubr.f32.mxu0 0.0
        %2215 = vmatmul.mubr.f32.gmra.mrb[0].mxu0 %v1972
        %v2216 = vpop.f32.mrb[0].mxu0
        %v2217 = vadd.f32 0.0, %v2216
        %v2218 = vpop.f32.mrb[0].mxu0
        %2219 = vmatprep.mubr.f32.mxu0 0.0
        %2220 = vmatmul.mubr.f32.gmra.mrb[0].mxu0 %v1975
        %v2221 = vpop.f32.mrb[0].mxu0
        %v2222 = vadd.f32 0.0, %v2221
        %v2223 = vpop.f32.mrb[0].mxu0
        %2224 = vmatprep.mubr.f32.mxu0 0.0
        %2225 = vmatmul.mubr.f32.gmra.mrb[0].mxu0 %v1977
        %v2226 = vpop.f32.mrb[0].mxu0
        %v2227 = vadd.f32 0.0, %v2226
        %v2228 = vpop.f32.mrb[0].mxu0
        %2229 = vmatprep.mubr.f32.mxu0 0.0
        %2230 = vmatmul.mubr.f32.gmra.mrb[0].mxu0 %v1980
        %v2231 = vpop.f32.mrb[0].mxu0
        %v2232 = vadd.f32 0.0, %v2231
        %v2233 = vpop.f32.mrb[0].mxu0
        %2234 = vmatprep.mubr.f32.mxu0 0.0
        %2235 = vmatmul.mubr.f32.gmra.mrb[0].mxu0 %v1982
        %v2236 = vpop.f32.mrb[0].mxu0
        %v2237 = vadd.f32 0.0, %v2236
        %v2238 = vpop.f32.mrb[0].mxu0
        %2239 = vdwg.mxu0
        %v2240 = vadd.f32 %v1742, %v2082
        %v2241 = vadd.f32 %v1743, %v2087
        %v2242 = vadd.f32 %v1744, %v2092
        %v2243 = vadd.f32 %v1745, %v2097
        %v2244 = vadd.f32 %v1746, %v2102
        %v2245 = vadd.f32 %v1747, %v2107
        %v2246 = vadd.f32 %v1748, %v2112
        %v2247 = vadd.f32 %v1749, %v2117
        %v2248 = vadd.f32 %v1750, %v2122
        %v2249 = vadd.f32 %v1751, %v2127
        %v2250 = vadd.f32 %v1752, %v2132
        %v2251 = vadd.f32 %v1753, %v2137
        %v2252 = vadd.f32 %v1754, %v2142
        %v2253 = vadd.f32 %v1755, %v2147
        %v2254 = vadd.f32 %v1756, %v2152
        %v2255 = vadd.f32 %v1757, %v2157
        %v2256 = vadd.f32 %v1758, %v2162
        %v2257 = vadd.f32 %v1759, %v2167
        %v2258 = vadd.f32 %v1760, %v2172
        %v2259 = vadd.f32 %v1761, %v2177
        %v2260 = vadd.f32 %v1762, %v2182
        %v2261 = vadd.f32 %v1763, %v2187
        %v2262 = vadd.f32 %v1764, %v2192
        %v2263 = vadd.f32 %v1765, %v2197
        %v2264 = vadd.f32 %v1766, %v2202
        %v2265 = vadd.f32 %v1767, %v2207
        %v2266 = vadd.f32 %v1768, %v2212
        %v2267 = vadd.f32 %v1769, %v2217
        %v2268 = vadd.f32 %v1770, %v2222
        %v2269 = vadd.f32 %v1771, %v2227
        %v2270 = vadd.f32 %v1772, %v2232
        %v2271 = vadd.f32 %v1773, %v2237
        %s2272 = scalar_lea.vmem %s2, 512
        %v2273 = vld [vmem:[%s2272] sm:$0xff]
        %v2274 = vld [vmem:[%s2272 + $0x8] sm:$0xff]
        %v2275 = vld [vmem:[%s2272 + $0x10] sm:$0xff]
        %v2276 = vld [vmem:[%s2272 + $0x18] sm:$0xff]
        %v2277 = vld [vmem:[%s2272 + $0x20] sm:$0xff]
        %v2278 = vld [vmem:[%s2272 + $0x28] sm:$0xff]
        %v2279 = vld [vmem:[%s2272 + $0x30] sm:$0xff]
        %v2280 = vld [vmem:[%s2272 + $0x38] sm:$0xff]
        %v2281 = vld [vmem:[%s2272 + $0x40] sm:$0xff]
        %v2282 = vld [vmem:[%s2272 + $0x48] sm:$0xff]
        %v2283 = vld [vmem:[%s2272 + $0x50] sm:$0xff]
        %v2284 = vld [vmem:[%s2272 + $0x58] sm:$0xff]
        %v2285 = vld [vmem:[%s2272 + $0x60] sm:$0xff]
        %v2286 = vld [vmem:[%s2272 + $0x68] sm:$0xff]
        %v2287 = vld [vmem:[%s2272 + $0x70] sm:$0xff]
        %v2288 = vld [vmem:[%s2272 + $0x78] sm:$0xff]
        %2289 = vmatprep.subr.mxu0 0.0
        %2290 = vmatpush1.msra.mxu0 %v2273
        %2291 = vmatprep.subr.mxu0 0.0
        %2292 = vmatpush1.msra.mxu0 %v2274
        %2293 = vmatprep.subr.mxu0 0.0
        %2294 = vmatpush1.msra.mxu0 %v2275
        %2295 = vmatprep.subr.mxu0 0.0
        %2296 = vmatpush1.msra.mxu0 %v2276
        %2297 = vmatprep.subr.mxu0 0.0
        %2298 = vmatpush1.msra.mxu0 %v2277
        %2299 = vmatprep.subr.mxu0 0.0
        %2300 = vmatpush1.msra.mxu0 %v2278
        %2301 = vmatprep.subr.mxu0 0.0
        %2302 = vmatpush1.msra.mxu0 %v2279
        %2303 = vmatprep.subr.mxu0 0.0
        %2304 = vmatpush1.msra.mxu0 %v2280
        %2305 = vmatprep.subr.mxu0 0.0
        %2306 = vmatpush1.msra.mxu0 %v2281
        %2307 = vmatprep.subr.mxu0 0.0
        %2308 = vmatpush1.msra.mxu0 %v2282
        %2309 = vmatprep.subr.mxu0 0.0
        %2310 = vmatpush1.msra.mxu0 %v2283
        %2311 = vmatprep.subr.mxu0 0.0
        %2312 = vmatpush1.msra.mxu0 %v2284
        %2313 = vmatprep.subr.mxu0 0.0
        %2314 = vmatpush1.msra.mxu0 %v2285
        %2315 = vmatprep.subr.mxu0 0.0
        %2316 = vmatpush1.msra.mxu0 %v2286
        %2317 = vmatprep.subr.mxu0 0.0
        %2318 = vmatpush1.msra.mxu0 %v2287
        %2319 = vmatprep.subr.mxu0 0.0
        %2320 = vmatpush1.msra.mxu0 %v2288
        %2321 = vmatprep.subr.mxu0 0.0
        %2322 = vmatpush1.msra.mxu0 0.0
        %2323 = vmatprep.subr.mxu0 0.0
        %2324 = vmatpush1.msra.mxu0 0.0
        %2325 = vmatprep.subr.mxu0 0.0
        %2326 = vmatpush1.msra.mxu0 0.0
        %2327 = vmatprep.subr.mxu0 0.0
        %2328 = vmatpush1.msra.mxu0 0.0
        %2329 = vmatprep.subr.mxu0 0.0
        %2330 = vmatpush1.msra.mxu0 0.0
        %2331 = vmatprep.subr.mxu0 0.0
        %2332 = vmatpush1.msra.mxu0 0.0
        %2333 = vmatprep.subr.mxu0 0.0
        %2334 = vmatpush1.msra.mxu0 0.0
        %2335 = vmatprep.subr.mxu0 0.0
        %2336 = vmatpush1.msra.mxu0 0.0
        %2337 = vmatprep.subr.mxu0 0.0
        %2338 = vmatpush1.msra.mxu0 0.0
        %2339 = vmatprep.subr.mxu0 0.0
        %2340 = vmatpush1.msra.mxu0 0.0
        %2341 = vmatprep.subr.mxu0 0.0
        %2342 = vmatpush1.msra.mxu0 0.0
        %2343 = vmatprep.subr.mxu0 0.0
        %2344 = vmatpush1.msra.mxu0 0.0
        %2345 = vmatprep.subr.mxu0 0.0
        %2346 = vmatpush1.msra.mxu0 0.0
        %2347 = vmatprep.subr.mxu0 0.0
        %2348 = vmatpush1.msra.mxu0 0.0
        %2349 = vmatprep.subr.mxu0 0.0
        %2350 = vmatpush1.msra.mxu0 0.0
        %2351 = vmatprep.subr.mxu0 0.0
        %2352 = vmatpush1.msra.mxu0 0.0
        %2353 = vmatprep.mubr.f32.mxu0 0.0
        %2354 = vmatmul.mubr.f32.gmra.mrb[0].mxu0 %v1775
        %v2355 = vpop.f32.mrb[0].mxu0
        %v2356 = vadd.f32 0.0, %v2355
        %v2357 = vpop.f32.mrb[0].mxu0
        %2358 = vmatprep.mubr.f32.mxu0 0.0
        %2359 = vmatmul.mubr.f32.gmra.mrb[0].mxu0 %v1776
        %v2360 = vpop.f32.mrb[0].mxu0
        %v2361 = vadd.f32 0.0, %v2360
        %v2362 = vpop.f32.mrb[0].mxu0
        %2363 = vmatprep.mubr.f32.mxu0 0.0
        %2364 = vmatmul.mubr.f32.gmra.mrb[0].mxu0 %v1779
        %v2365 = vpop.f32.mrb[0].mxu0
        %v2366 = vadd.f32 0.0, %v2365
        %v2367 = vpop.f32.mrb[0].mxu0
        %2368 = vmatprep.mubr.f32.mxu0 0.0
        %2369 = vmatmul.mubr.f32.gmra.mrb[0].mxu0 %v1780
        %v2370 = vpop.f32.mrb[0].mxu0
        %v2371 = vadd.f32 0.0, %v2370
        %v2372 = vpop.f32.mrb[0].mxu0
        %2373 = vmatprep.mubr.f32.mxu0 0.0
        %2374 = vmatmul.mubr.f32.gmra.mrb[0].mxu0 %v1783
        %v2375 = vpop.f32.mrb[0].mxu0
        %v2376 = vadd.f32 0.0, %v2375
        %v2377 = vpop.f32.mrb[0].mxu0
        %2378 = vmatprep.mubr.f32.mxu0 0.0
        %2379 = vmatmul.mubr.f32.gmra.mrb[0].mxu0 %v1784
        %v2380 = vpop.f32.mrb[0].mxu0
        %v2381 = vadd.f32 0.0, %v2380
        %v2382 = vpop.f32.mrb[0].mxu0
        %2383 = vmatprep.mubr.f32.mxu0 0.0
        %2384 = vmatmul.mubr.f32.gmra.mrb[0].mxu0 %v1787
        %v2385 = vpop.f32.mrb[0].mxu0
        %v2386 = vadd.f32 0.0, %v2385
        %v2387 = vpop.f32.mrb[0].mxu0
        %2388 = vmatprep.mubr.f32.mxu0 0.0
        %2389 = vmatmul.mubr.f32.gmra.mrb[0].mxu0 %v1788
        %v2390 = vpop.f32.mrb[0].mxu0
        %v2391 = vadd.f32 0.0, %v2390
        %v2392 = vpop.f32.mrb[0].mxu0
        %2393 = vmatprep.mubr.f32.mxu0 0.0
        %2394 = vmatmul.mubr.f32.gmra.mrb[0].mxu0 %v1791
        %v2395 = vpop.f32.mrb[0].mxu0
        %v2396 = vadd.f32 0.0, %v2395
        %v2397 = vpop.f32.mrb[0].mxu0
        %2398 = vmatprep.mubr.f32.mxu0 0.0
        %2399 = vmatmul.mubr.f32.gmra.mrb[0].mxu0 %v1792
        %v2400 = vpop.f32.mrb[0].mxu0
        %v2401 = vadd.f32 0.0, %v2400
        %v2402 = vpop.f32.mrb[0].mxu0
        %2403 = vmatprep.mubr.f32.mxu0 0.0
        %2404 = vmatmul.mubr.f32.gmra.mrb[0].mxu0 %v1795
        %v2405 = vpop.f32.mrb[0].mxu0
        %v2406 = vadd.f32 0.0, %v2405
        %v2407 = vpop.f32.mrb[0].mxu0
        %2408 = vmatprep.mubr.f32.mxu0 0.0
        %2409 = vmatmul.mubr.f32.gmra.mrb[0].mxu0 %v1796
        %v2410 = vpop.f32.mrb[0].mxu0
        %v2411 = vadd.f32 0.0, %v2410
        %v2412 = vpop.f32.mrb[0].mxu0
        %2413 = vmatprep.mubr.f32.mxu0 0.0
        %2414 = vmatmul.mubr.f32.gmra.mrb[0].mxu0 %v1799
        %v2415 = vpop.f32.mrb[0].mxu0
        %v2416 = vadd.f32 0.0, %v2415
        %v2417 = vpop.f32.mrb[0].mxu0
        %2418 = vmatprep.mubr.f32.mxu0 0.0
        %2419 = vmatmul.mubr.f32.gmra.mrb[0].mxu0 %v1800
        %v2420 = vpop.f32.mrb[0].mxu0
        %v2421 = vadd.f32 0.0, %v2420
        %v2422 = vpop.f32.mrb[0].mxu0
        %2423 = vmatprep.mubr.f32.mxu0 0.0
        %2424 = vmatmul.mubr.f32.gmra.mrb[0].mxu0 %v1803
        %v2425 = vpop.f32.mrb[0].mxu0
        %v2426 = vadd.f32 0.0, %v2425
        %v2427 = vpop.f32.mrb[0].mxu0
        %2428 = vmatprep.mubr.f32.mxu0 0.0
        %2429 = vmatmul.mubr.f32.gmra.mrb[0].mxu0 %v1804
        %v2430 = vpop.f32.mrb[0].mxu0
        %v2431 = vadd.f32 0.0, %v2430
        %v2432 = vpop.f32.mrb[0].mxu0
        %2433 = vmatprep.mubr.f32.mxu0 0.0
        %2434 = vmatmul.mubr.f32.gmra.mrb[0].mxu0 %v1807
        %v2435 = vpop.f32.mrb[0].mxu0
        %v2436 = vadd.f32 0.0, %v2435
        %v2437 = vpop.f32.mrb[0].mxu0
        %2438 = vmatprep.mubr.f32.mxu0 0.0
        %2439 = vmatmul.mubr.f32.gmra.mrb[0].mxu0 %v1808
        %v2440 = vpop.f32.mrb[0].mxu0
        %v2441 = vadd.f32 0.0, %v2440
        %v2442 = vpop.f32.mrb[0].mxu0
        %2443 = vmatprep.mubr.f32.mxu0 0.0
        %2444 = vmatmul.mubr.f32.gmra.mrb[0].mxu0 %v1811
        %v2445 = vpop.f32.mrb[0].mxu0
        %v2446 = vadd.f32 0.0, %v2445
        %v2447 = vpop.f32.mrb[0].mxu0
        %2448 = vmatprep.mubr.f32.mxu0 0.0
        %2449 = vmatmul.mubr.f32.gmra.mrb[0].mxu0 %v1812
        %v2450 = vpop.f32.mrb[0].mxu0
        %v2451 = vadd.f32 0.0, %v2450
        %v2452 = vpop.f32.mrb[0].mxu0
        %2453 = vmatprep.mubr.f32.mxu0 0.0
        %2454 = vmatmul.mubr.f32.gmra.mrb[0].mxu0 %v1815
        %v2455 = vpop.f32.mrb[0].mxu0
        %v2456 = vadd.f32 0.0, %v2455
        %v2457 = vpop.f32.mrb[0].mxu0
        %2458 = vmatprep.mubr.f32.mxu0 0.0
        %2459 = vmatmul.mubr.f32.gmra.mrb[0].mxu0 %v1816
        %v2460 = vpop.f32.mrb[0].mxu0
        %v2461 = vadd.f32 0.0, %v2460
        %v2462 = vpop.f32.mrb[0].mxu0
        %2463 = vmatprep.mubr.f32.mxu0 0.0
        %2464 = vmatmul.mubr.f32.gmra.mrb[0].mxu0 %v1819
        %v2465 = vpop.f32.mrb[0].mxu0
        %v2466 = vadd.f32 0.0, %v2465
        %v2467 = vpop.f32.mrb[0].mxu0
        %2468 = vmatprep.mubr.f32.mxu0 0.0
        %2469 = vmatmul.mubr.f32.gmra.mrb[0].mxu0 %v1820
        %v2470 = vpop.f32.mrb[0].mxu0
        %v2471 = vadd.f32 0.0, %v2470
        %v2472 = vpop.f32.mrb[0].mxu0
        %2473 = vmatprep.mubr.f32.mxu0 0.0
        %2474 = vmatmul.mubr.f32.gmra.mrb[0].mxu0 %v1823
        %v2475 = vpop.f32.mrb[0].mxu0
        %v2476 = vadd.f32 0.0, %v2475
        %v2477 = vpop.f32.mrb[0].mxu0
        %2478 = vmatprep.mubr.f32.mxu0 0.0
        %2479 = vmatmul.mubr.f32.gmra.mrb[0].mxu0 %v1824
        %v2480 = vpop.f32.mrb[0].mxu0
        %v2481 = vadd.f32 0.0, %v2480
        %v2482 = vpop.f32.mrb[0].mxu0
        %2483 = vmatprep.mubr.f32.mxu0 0.0
        %2484 = vmatmul.mubr.f32.gmra.mrb[0].mxu0 %v1827
        %v2485 = vpop.f32.mrb[0].mxu0
        %v2486 = vadd.f32 0.0, %v2485
        %v2487 = vpop.f32.mrb[0].mxu0
        %2488 = vmatprep.mubr.f32.mxu0 0.0
        %2489 = vmatmul.mubr.f32.gmra.mrb[0].mxu0 %v1828
        %v2490 = vpop.f32.mrb[0].mxu0
        %v2491 = vadd.f32 0.0, %v2490
        %v2492 = vpop.f32.mrb[0].mxu0
        %2493 = vmatprep.mubr.f32.mxu0 0.0
        %2494 = vmatmul.mubr.f32.gmra.mrb[0].mxu0 %v1831
        %v2495 = vpop.f32.mrb[0].mxu0
        %v2496 = vadd.f32 0.0, %v2495
        %v2497 = vpop.f32.mrb[0].mxu0
        %2498 = vmatprep.mubr.f32.mxu0 0.0
        %2499 = vmatmul.mubr.f32.gmra.mrb[0].mxu0 %v1832
        %v2500 = vpop.f32.mrb[0].mxu0
        %v2501 = vadd.f32 0.0, %v2500
        %v2502 = vpop.f32.mrb[0].mxu0
        %2503 = vmatprep.mubr.f32.mxu0 0.0
        %2504 = vmatmul.mubr.f32.gmra.mrb[0].mxu0 %v1835
        %v2505 = vpop.f32.mrb[0].mxu0
        %v2506 = vadd.f32 0.0, %v2505
        %v2507 = vpop.f32.mrb[0].mxu0
        %2508 = vmatprep.mubr.f32.mxu0 0.0
        %2509 = vmatmul.mubr.f32.gmra.mrb[0].mxu0 %v1836
        %v2510 = vpop.f32.mrb[0].mxu0
        %v2511 = vadd.f32 0.0, %v2510
        %v2512 = vpop.f32.mrb[0].mxu0
        %2513 = vdwg.mxu0
        %v2514 = vadd.f32 %v2240, %v2356
        %v2515 = vadd.f32 %v2241, %v2361
        %v2516 = vadd.f32 %v2242, %v2366
        %v2517 = vadd.f32 %v2243, %v2371
        %v2518 = vadd.f32 %v2244, %v2376
        %v2519 = vadd.f32 %v2245, %v2381
        %v2520 = vadd.f32 %v2246, %v2386
        %v2521 = vadd.f32 %v2247, %v2391
        %v2522 = vadd.f32 %v2248, %v2396
        %v2523 = vadd.f32 %v2249, %v2401
        %v2524 = vadd.f32 %v2250, %v2406
        %v2525 = vadd.f32 %v2251, %v2411
        %v2526 = vadd.f32 %v2252, %v2416
        %v2527 = vadd.f32 %v2253, %v2421
        %v2528 = vadd.f32 %v2254, %v2426
        %v2529 = vadd.f32 %v2255, %v2431
        %v2530 = vadd.f32 %v2256, %v2436
        %v2531 = vadd.f32 %v2257, %v2441
        %v2532 = vadd.f32 %v2258, %v2446
        %v2533 = vadd.f32 %v2259, %v2451
        %v2534 = vadd.f32 %v2260, %v2456
        %v2535 = vadd.f32 %v2261, %v2461
        %v2536 = vadd.f32 %v2262, %v2466
        %v2537 = vadd.f32 %v2263, %v2471
        %v2538 = vadd.f32 %v2264, %v2476
        %v2539 = vadd.f32 %v2265, %v2481
        %v2540 = vadd.f32 %v2266, %v2486
        %v2541 = vadd.f32 %v2267, %v2491
        %v2542 = vadd.f32 %v2268, %v2496
        %v2543 = vadd.f32 %v2269, %v2501
        %v2544 = vadd.f32 %v2270, %v2506
        %v2545 = vadd.f32 %v2271, %v2511
        %s2546 = scalar_lea.vmem %s2, 640
        %v2547 = vld [vmem:[%s2546] sm:$0xff]
        %v2548 = vld [vmem:[%s2546 + $0x8] sm:$0xff]
        %v2549 = vld [vmem:[%s2546 + $0x10] sm:$0xff]
        %v2550 = vld [vmem:[%s2546 + $0x18] sm:$0xff]
        %v2551 = vld [vmem:[%s2546 + $0x20] sm:$0xff]
        %v2552 = vld [vmem:[%s2546 + $0x28] sm:$0xff]
        %v2553 = vld [vmem:[%s2546 + $0x30] sm:$0xff]
        %v2554 = vld [vmem:[%s2546 + $0x38] sm:$0xff]
        %v2555 = vld [vmem:[%s2546 + $0x40] sm:$0xff]
        %v2556 = vld [vmem:[%s2546 + $0x48] sm:$0xff]
        %v2557 = vld [vmem:[%s2546 + $0x50] sm:$0xff]
        %v2558 = vld [vmem:[%s2546 + $0x58] sm:$0xff]
        %v2559 = vld [vmem:[%s2546 + $0x60] sm:$0xff]
        %v2560 = vld [vmem:[%s2546 + $0x68] sm:$0xff]
        %v2561 = vld [vmem:[%s2546 + $0x70] sm:$0xff]
        %v2562 = vld [vmem:[%s2546 + $0x78] sm:$0xff]
        %v2579 = vrot.slane %v1775, 1
        %v2580 = vrot.slane %v1776, 1
        %v2581 = vsel %vm1404, %v2579, %v2580
        %v2582 = vrot.slane %v1777, 1
        %v2583 = vsel %vm1404, %v2580, %v2582
        %v2584 = vrot.slane %v1779, 1
        %v2585 = vrot.slane %v1780, 1
        %v2586 = vsel %vm1404, %v2584, %v2585
        %v2587 = vrot.slane %v1781, 1
        %v2588 = vsel %vm1404, %v2585, %v2587
        %v2589 = vrot.slane %v1783, 1
        %v2590 = vrot.slane %v1784, 1
        %v2591 = vsel %vm1404, %v2589, %v2590
        %v2592 = vrot.slane %v1785, 1
        %v2593 = vsel %vm1404, %v2590, %v2592
        %v2594 = vrot.slane %v1787, 1
        %v2595 = vrot.slane %v1788, 1
        %v2596 = vsel %vm1404, %v2594, %v2595
        %v2597 = vrot.slane %v1789, 1
        %v2598 = vsel %vm1404, %v2595, %v2597
        %v2599 = vrot.slane %v1791, 1
        %v2600 = vrot.slane %v1792, 1
        %v2601 = vsel %vm1404, %v2599, %v2600
        %v2602 = vrot.slane %v1793, 1
        %v2603 = vsel %vm1404, %v2600, %v2602
        %v2604 = vrot.slane %v1795, 1
        %v2605 = vrot.slane %v1796, 1
        %v2606 = vsel %vm1404, %v2604, %v2605
        %v2607 = vrot.slane %v1797, 1
        %v2608 = vsel %vm1404, %v2605, %v2607
        %v2609 = vrot.slane %v1799, 1
        %v2610 = vrot.slane %v1800, 1
        %v2611 = vsel %vm1404, %v2609, %v2610
        %v2612 = vrot.slane %v1801, 1
        %v2613 = vsel %vm1404, %v2610, %v2612
        %v2614 = vrot.slane %v1803, 1
        %v2615 = vrot.slane %v1804, 1
        %v2616 = vsel %vm1404, %v2614, %v2615
        %v2617 = vrot.slane %v1805, 1
        %v2618 = vsel %vm1404, %v2615, %v2617
        %v2619 = vrot.slane %v1807, 1
        %v2620 = vrot.slane %v1808, 1
        %v2621 = vsel %vm1404, %v2619, %v2620
        %v2622 = vrot.slane %v1809, 1
        %v2623 = vsel %vm1404, %v2620, %v2622
        %v2624 = vrot.slane %v1811, 1
        %v2625 = vrot.slane %v1812, 1
        %v2626 = vsel %vm1404, %v2624, %v2625
        %v2627 = vrot.slane %v1813, 1
        %v2628 = vsel %vm1404, %v2625, %v2627
        %v2629 = vrot.slane %v1815, 1
        %v2630 = vrot.slane %v1816, 1
        %v2631 = vsel %vm1404, %v2629, %v2630
        %v2632 = vrot.slane %v1817, 1
        %v2633 = vsel %vm1404, %v2630, %v2632
        %v2634 = vrot.slane %v1819, 1
        %v2635 = vrot.slane %v1820, 1
        %v2636 = vsel %vm1404, %v2634, %v2635
        %v2637 = vrot.slane %v1821, 1
        %v2638 = vsel %vm1404, %v2635, %v2637
        %v2639 = vrot.slane %v1823, 1
        %v2640 = vrot.slane %v1824, 1
        %v2641 = vsel %vm1404, %v2639, %v2640
        %v2642 = vrot.slane %v1825, 1
        %v2643 = vsel %vm1404, %v2640, %v2642
        %v2644 = vrot.slane %v1827, 1
        %v2645 = vrot.slane %v1828, 1
        %v2646 = vsel %vm1404, %v2644, %v2645
        %v2647 = vrot.slane %v1829, 1
        %v2648 = vsel %vm1404, %v2645, %v2647
        %v2649 = vrot.slane %v1831, 1
        %v2650 = vrot.slane %v1832, 1
        %v2651 = vsel %vm1404, %v2649, %v2650
        %v2652 = vrot.slane %v1833, 1
        %v2653 = vsel %vm1404, %v2650, %v2652
        %v2654 = vrot.slane %v1835, 1
        %v2655 = vrot.slane %v1836, 1
        %v2656 = vsel %vm1404, %v2654, %v2655
        %v2657 = vrot.slane %v1837, 1
        %v2658 = vsel %vm1404, %v2655, %v2657
        %2691 = vmatprep.subr.mxu0 0.0
        %2692 = vmatpush1.msra.mxu0 %v2547
        %2693 = vmatprep.subr.mxu0 0.0
        %2694 = vmatpush1.msra.mxu0 %v2548
        %2695 = vmatprep.subr.mxu0 0.0
        %2696 = vmatpush1.msra.mxu0 %v2549
        %2697 = vmatprep.subr.mxu0 0.0
        %2698 = vmatpush1.msra.mxu0 %v2550
        %2699 = vmatprep.subr.mxu0 0.0
        %2700 = vmatpush1.msra.mxu0 %v2551
        %2701 = vmatprep.subr.mxu0 0.0
        %2702 = vmatpush1.msra.mxu0 %v2552
        %2703 = vmatprep.subr.mxu0 0.0
        %2704 = vmatpush1.msra.mxu0 %v2553
        %2705 = vmatprep.subr.mxu0 0.0
        %2706 = vmatpush1.msra.mxu0 %v2554
        %2707 = vmatprep.subr.mxu0 0.0
        %2708 = vmatpush1.msra.mxu0 %v2555
        %2709 = vmatprep.subr.mxu0 0.0
        %2710 = vmatpush1.msra.mxu0 %v2556
        %2711 = vmatprep.subr.mxu0 0.0
        %2712 = vmatpush1.msra.mxu0 %v2557
        %2713 = vmatprep.subr.mxu0 0.0
        %2714 = vmatpush1.msra.mxu0 %v2558
        %2715 = vmatprep.subr.mxu0 0.0
        %2716 = vmatpush1.msra.mxu0 %v2559
        %2717 = vmatprep.subr.mxu0 0.0
        %2718 = vmatpush1.msra.mxu0 %v2560
        %2719 = vmatprep.subr.mxu0 0.0
        %2720 = vmatpush1.msra.mxu0 %v2561
        %2721 = vmatprep.subr.mxu0 0.0
        %2722 = vmatpush1.msra.mxu0 %v2562
        %2723 = vmatprep.subr.mxu0 0.0
        %2724 = vmatpush1.msra.mxu0 0.0
        %2725 = vmatprep.subr.mxu0 0.0
        %2726 = vmatpush1.msra.mxu0 0.0
        %2727 = vmatprep.subr.mxu0 0.0
        %2728 = vmatpush1.msra.mxu0 0.0
        %2729 = vmatprep.subr.mxu0 0.0
        %2730 = vmatpush1.msra.mxu0 0.0
        %2731 = vmatprep.subr.mxu0 0.0
        %2732 = vmatpush1.msra.mxu0 0.0
        %2733 = vmatprep.subr.mxu0 0.0
        %2734 = vmatpush1.msra.mxu0 0.0
        %2735 = vmatprep.subr.mxu0 0.0
        %2736 = vmatpush1.msra.mxu0 0.0
        %2737 = vmatprep.subr.mxu0 0.0
        %2738 = vmatpush1.msra.mxu0 0.0
        %2739 = vmatprep.subr.mxu0 0.0
        %2740 = vmatpush1.msra.mxu0 0.0
        %2741 = vmatprep.subr.mxu0 0.0
        %2742 = vmatpush1.msra.mxu0 0.0
        %2743 = vmatprep.subr.mxu0 0.0
        %2744 = vmatpush1.msra.mxu0 0.0
        %2745 = vmatprep.subr.mxu0 0.0
        %2746 = vmatpush1.msra.mxu0 0.0
        %2747 = vmatprep.subr.mxu0 0.0
        %2748 = vmatpush1.msra.mxu0 0.0
        %2749 = vmatprep.subr.mxu0 0.0
        %2750 = vmatpush1.msra.mxu0 0.0
        %2751 = vmatprep.subr.mxu0 0.0
        %2752 = vmatpush1.msra.mxu0 0.0
        %2753 = vmatprep.subr.mxu0 0.0
        %2754 = vmatpush1.msra.mxu0 0.0
        %2755 = vmatprep.mubr.f32.mxu0 0.0
        %2756 = vmatmul.mubr.f32.gmra.mrb[0].mxu0 %v2581
        %v2757 = vpop.f32.mrb[0].mxu0
        %v2758 = vadd.f32 0.0, %v2757
        %v2759 = vpop.f32.mrb[0].mxu0
        %2760 = vmatprep.mubr.f32.mxu0 0.0
        %2761 = vmatmul.mubr.f32.gmra.mrb[0].mxu0 %v2583
        %v2762 = vpop.f32.mrb[0].mxu0
        %v2763 = vadd.f32 0.0, %v2762
        %v2764 = vpop.f32.mrb[0].mxu0
        %2765 = vmatprep.mubr.f32.mxu0 0.0
        %2766 = vmatmul.mubr.f32.gmra.mrb[0].mxu0 %v2586
        %v2767 = vpop.f32.mrb[0].mxu0
        %v2768 = vadd.f32 0.0, %v2767
        %v2769 = vpop.f32.mrb[0].mxu0
        %2770 = vmatprep.mubr.f32.mxu0 0.0
        %2771 = vmatmul.mubr.f32.gmra.mrb[0].mxu0 %v2588
        %v2772 = vpop.f32.mrb[0].mxu0
        %v2773 = vadd.f32 0.0, %v2772
        %v2774 = vpop.f32.mrb[0].mxu0
        %2775 = vmatprep.mubr.f32.mxu0 0.0
        %2776 = vmatmul.mubr.f32.gmra.mrb[0].mxu0 %v2591
        %v2777 = vpop.f32.mrb[0].mxu0
        %v2778 = vadd.f32 0.0, %v2777
        %v2779 = vpop.f32.mrb[0].mxu0
        %2780 = vmatprep.mubr.f32.mxu0 0.0
        %2781 = vmatmul.mubr.f32.gmra.mrb[0].mxu0 %v2593
        %v2782 = vpop.f32.mrb[0].mxu0
        %v2783 = vadd.f32 0.0, %v2782
        %v2784 = vpop.f32.mrb[0].mxu0
        %2785 = vmatprep.mubr.f32.mxu0 0.0
        %2786 = vmatmul.mubr.f32.gmra.mrb[0].mxu0 %v2596
        %v2787 = vpop.f32.mrb[0].mxu0
        %v2788 = vadd.f32 0.0, %v2787
        %v2789 = vpop.f32.mrb[0].mxu0
        %2790 = vmatprep.mubr.f32.mxu0 0.0
        %2791 = vmatmul.mubr.f32.gmra.mrb[0].mxu0 %v2598
        %v2792 = vpop.f32.mrb[0].mxu0
        %v2793 = vadd.f32 0.0, %v2792
        %v2794 = vpop.f32.mrb[0].mxu0
        %2795 = vmatprep.mubr.f32.mxu0 0.0
        %2796 = vmatmul.mubr.f32.gmra.mrb[0].mxu0 %v2601
        %v2797 = vpop.f32.mrb[0].mxu0
        %v2798 = vadd.f32 0.0, %v2797
        %v2799 = vpop.f32.mrb[0].mxu0
        %2800 = vmatprep.mubr.f32.mxu0 0.0
        %2801 = vmatmul.mubr.f32.gmra.mrb[0].mxu0 %v2603
        %v2802 = vpop.f32.mrb[0].mxu0
        %v2803 = vadd.f32 0.0, %v2802
        %v2804 = vpop.f32.mrb[0].mxu0
        %2805 = vmatprep.mubr.f32.mxu0 0.0
        %2806 = vmatmul.mubr.f32.gmra.mrb[0].mxu0 %v2606
        %v2807 = vpop.f32.mrb[0].mxu0
        %v2808 = vadd.f32 0.0, %v2807
        %v2809 = vpop.f32.mrb[0].mxu0
        %2810 = vmatprep.mubr.f32.mxu0 0.0
        %2811 = vmatmul.mubr.f32.gmra.mrb[0].mxu0 %v2608
        %v2812 = vpop.f32.mrb[0].mxu0
        %v2813 = vadd.f32 0.0, %v2812
        %v2814 = vpop.f32.mrb[0].mxu0
        %2815 = vmatprep.mubr.f32.mxu0 0.0
        %2816 = vmatmul.mubr.f32.gmra.mrb[0].mxu0 %v2611
        %v2817 = vpop.f32.mrb[0].mxu0
        %v2818 = vadd.f32 0.0, %v2817
        %v2819 = vpop.f32.mrb[0].mxu0
        %2820 = vmatprep.mubr.f32.mxu0 0.0
        %2821 = vmatmul.mubr.f32.gmra.mrb[0].mxu0 %v2613
        %v2822 = vpop.f32.mrb[0].mxu0
        %v2823 = vadd.f32 0.0, %v2822
        %v2824 = vpop.f32.mrb[0].mxu0
        %2825 = vmatprep.mubr.f32.mxu0 0.0
        %2826 = vmatmul.mubr.f32.gmra.mrb[0].mxu0 %v2616
        %v2827 = vpop.f32.mrb[0].mxu0
        %v2828 = vadd.f32 0.0, %v2827
        %v2829 = vpop.f32.mrb[0].mxu0
        %2830 = vmatprep.mubr.f32.mxu0 0.0
        %2831 = vmatmul.mubr.f32.gmra.mrb[0].mxu0 %v2618
        %v2832 = vpop.f32.mrb[0].mxu0
        %v2833 = vadd.f32 0.0, %v2832
        %v2834 = vpop.f32.mrb[0].mxu0
        %2835 = vmatprep.mubr.f32.mxu0 0.0
        %2836 = vmatmul.mubr.f32.gmra.mrb[0].mxu0 %v2621
        %v2837 = vpop.f32.mrb[0].mxu0
        %v2838 = vadd.f32 0.0, %v2837
        %v2839 = vpop.f32.mrb[0].mxu0
        %2840 = vmatprep.mubr.f32.mxu0 0.0
        %2841 = vmatmul.mubr.f32.gmra.mrb[0].mxu0 %v2623
        %v2842 = vpop.f32.mrb[0].mxu0
        %v2843 = vadd.f32 0.0, %v2842
        %v2844 = vpop.f32.mrb[0].mxu0
        %2845 = vmatprep.mubr.f32.mxu0 0.0
        %2846 = vmatmul.mubr.f32.gmra.mrb[0].mxu0 %v2626
        %v2847 = vpop.f32.mrb[0].mxu0
        %v2848 = vadd.f32 0.0, %v2847
        %v2849 = vpop.f32.mrb[0].mxu0
        %2850 = vmatprep.mubr.f32.mxu0 0.0
        %2851 = vmatmul.mubr.f32.gmra.mrb[0].mxu0 %v2628
        %v2852 = vpop.f32.mrb[0].mxu0
        %v2853 = vadd.f32 0.0, %v2852
        %v2854 = vpop.f32.mrb[0].mxu0
        %2855 = vmatprep.mubr.f32.mxu0 0.0
        %2856 = vmatmul.mubr.f32.gmra.mrb[0].mxu0 %v2631
        %v2857 = vpop.f32.mrb[0].mxu0
        %v2858 = vadd.f32 0.0, %v2857
        %v2859 = vpop.f32.mrb[0].mxu0
        %2860 = vmatprep.mubr.f32.mxu0 0.0
        %2861 = vmatmul.mubr.f32.gmra.mrb[0].mxu0 %v2633
        %v2862 = vpop.f32.mrb[0].mxu0
        %v2863 = vadd.f32 0.0, %v2862
        %v2864 = vpop.f32.mrb[0].mxu0
        %2865 = vmatprep.mubr.f32.mxu0 0.0
        %2866 = vmatmul.mubr.f32.gmra.mrb[0].mxu0 %v2636
        %v2867 = vpop.f32.mrb[0].mxu0
        %v2868 = vadd.f32 0.0, %v2867
        %v2869 = vpop.f32.mrb[0].mxu0
        %2870 = vmatprep.mubr.f32.mxu0 0.0
        %2871 = vmatmul.mubr.f32.gmra.mrb[0].mxu0 %v2638
        %v2872 = vpop.f32.mrb[0].mxu0
        %v2873 = vadd.f32 0.0, %v2872
        %v2874 = vpop.f32.mrb[0].mxu0
        %2875 = vmatprep.mubr.f32.mxu0 0.0
        %2876 = vmatmul.mubr.f32.gmra.mrb[0].mxu0 %v2641
        %v2877 = vpop.f32.mrb[0].mxu0
        %v2878 = vadd.f32 0.0, %v2877
        %v2879 = vpop.f32.mrb[0].mxu0
        %2880 = vmatprep.mubr.f32.mxu0 0.0
        %2881 = vmatmul.mubr.f32.gmra.mrb[0].mxu0 %v2643
        %v2882 = vpop.f32.mrb[0].mxu0
        %v2883 = vadd.f32 0.0, %v2882
        %v2884 = vpop.f32.mrb[0].mxu0
        %2885 = vmatprep.mubr.f32.mxu0 0.0
        %2886 = vmatmul.mubr.f32.gmra.mrb[0].mxu0 %v2646
        %v2887 = vpop.f32.mrb[0].mxu0
        %v2888 = vadd.f32 0.0, %v2887
        %v2889 = vpop.f32.mrb[0].mxu0
        %2890 = vmatprep.mubr.f32.mxu0 0.0
        %2891 = vmatmul.mubr.f32.gmra.mrb[0].mxu0 %v2648
        %v2892 = vpop.f32.mrb[0].mxu0
        %v2893 = vadd.f32 0.0, %v2892
        %v2894 = vpop.f32.mrb[0].mxu0
        %2895 = vmatprep.mubr.f32.mxu0 0.0
        %2896 = vmatmul.mubr.f32.gmra.mrb[0].mxu0 %v2651
        %v2897 = vpop.f32.mrb[0].mxu0
        %v2898 = vadd.f32 0.0, %v2897
        %v2899 = vpop.f32.mrb[0].mxu0
        %2900 = vmatprep.mubr.f32.mxu0 0.0
        %2901 = vmatmul.mubr.f32.gmra.mrb[0].mxu0 %v2653
        %v2902 = vpop.f32.mrb[0].mxu0
        %v2903 = vadd.f32 0.0, %v2902
        %v2904 = vpop.f32.mrb[0].mxu0
        %2905 = vmatprep.mubr.f32.mxu0 0.0
        %2906 = vmatmul.mubr.f32.gmra.mrb[0].mxu0 %v2656
        %v2907 = vpop.f32.mrb[0].mxu0
        %v2908 = vadd.f32 0.0, %v2907
        %v2909 = vpop.f32.mrb[0].mxu0
        %2910 = vmatprep.mubr.f32.mxu0 0.0
        %2911 = vmatmul.mubr.f32.gmra.mrb[0].mxu0 %v2658
        %v2912 = vpop.f32.mrb[0].mxu0
        %v2913 = vadd.f32 0.0, %v2912
        %v2914 = vpop.f32.mrb[0].mxu0
        %2915 = vdwg.mxu0
        %v2916 = vadd.f32 %v2514, %v2758
        %v2917 = vadd.f32 %v2515, %v2763
        %v2918 = vadd.f32 %v2516, %v2768
        %v2919 = vadd.f32 %v2517, %v2773
        %v2920 = vadd.f32 %v2518, %v2778
        %v2921 = vadd.f32 %v2519, %v2783
        %v2922 = vadd.f32 %v2520, %v2788
        %v2923 = vadd.f32 %v2521, %v2793
        %v2924 = vadd.f32 %v2522, %v2798
        %v2925 = vadd.f32 %v2523, %v2803
        %v2926 = vadd.f32 %v2524, %v2808
        %v2927 = vadd.f32 %v2525, %v2813
        %v2928 = vadd.f32 %v2526, %v2818
        %v2929 = vadd.f32 %v2527, %v2823
        %v2930 = vadd.f32 %v2528, %v2828
        %v2931 = vadd.f32 %v2529, %v2833
        %v2932 = vadd.f32 %v2530, %v2838
        %v2933 = vadd.f32 %v2531, %v2843
        %v2934 = vadd.f32 %v2532, %v2848
        %v2935 = vadd.f32 %v2533, %v2853
        %v2936 = vadd.f32 %v2534, %v2858
        %v2937 = vadd.f32 %v2535, %v2863
        %v2938 = vadd.f32 %v2536, %v2868
        %v2939 = vadd.f32 %v2537, %v2873
        %v2940 = vadd.f32 %v2538, %v2878
        %v2941 = vadd.f32 %v2539, %v2883
        %v2942 = vadd.f32 %v2540, %v2888
        %v2943 = vadd.f32 %v2541, %v2893
        %v2944 = vadd.f32 %v2542, %v2898
        %v2945 = vadd.f32 %v2543, %v2903
        %v2946 = vadd.f32 %v2544, %v2908
        %v2947 = vadd.f32 %v2545, %v2913
        %s2948 = scalar_lea.vmem [#allocation2], 64
        %v2949 = vld [vmem:[%s2948] sm:$0xff]
        %v2950 = vld [vmem:[%s2948 + $0x8] sm:$0xff]
        %v2951 = vld [vmem:[%s2948 + $0x10] sm:$0xff]
        %v2952 = vld [vmem:[%s2948 + $0x18] sm:$0xff]
        %v2953 = vld [vmem:[%s2948 + $0x20] sm:$0xff]
        %v2954 = vld [vmem:[%s2948 + $0x28] sm:$0xff]
        %v2955 = vld [vmem:[%s2948 + $0x30] sm:$0xff]
        %v2956 = vld [vmem:[%s2948 + $0x38] sm:$0xff]
        %v2957 = vld [vmem:[%s2948 + $0x40] sm:$0xff]
        %v2958 = vld [vmem:[%s2948 + $0x48] sm:$0xff]
        %v2959 = vld [vmem:[%s2948 + $0x50] sm:$0xff]
        %v2960 = vld [vmem:[%s2948 + $0x58] sm:$0xff]
        %v2961 = vld [vmem:[%s2948 + $0x60] sm:$0xff]
        %v2962 = vld [vmem:[%s2948 + $0x68] sm:$0xff]
        %v2963 = vld [vmem:[%s2948 + $0x70] sm:$0xff]
        %v2964 = vld [vmem:[%s2948 + $0x78] sm:$0xff]
        %v2965 = vld [vmem:[%s2948 + $0x80] sm:$0xff]
        %v2966 = vld [vmem:[%s2948 + $0x88] sm:$0xff]
        %v2967 = vld [vmem:[%s2948 + $0x90] sm:$0xff]
        %v2968 = vld [vmem:[%s2948 + $0x98] sm:$0xff]
        %v2969 = vld [vmem:[%s2948 + $0xa0] sm:$0xff]
        %v2970 = vld [vmem:[%s2948 + $0xa8] sm:$0xff]
        %v2971 = vld [vmem:[%s2948 + $0xb0] sm:$0xff]
        %v2972 = vld [vmem:[%s2948 + $0xb8] sm:$0xff]
        %v2973 = vld [vmem:[%s2948 + $0xc0] sm:$0xff]
        %v2974 = vld [vmem:[%s2948 + $0xc8] sm:$0xff]
        %v2975 = vld [vmem:[%s2948 + $0xd0] sm:$0xff]
        %v2976 = vld [vmem:[%s2948 + $0xd8] sm:$0xff]
        %v2977 = vld [vmem:[%s2948 + $0xe0] sm:$0xff]
        %v2978 = vld [vmem:[%s2948 + $0xe8] sm:$0xff]
        %v2979 = vld [vmem:[%s2948 + $0xf0] sm:$0xff]
        %v2980 = vld [vmem:[%s2948 + $0xf8] sm:$0xff]
        %v2981 = vld [vmem:[%s2948 + $0x100] sm:$0xff]
        %v2982 = vld [vmem:[%s2948 + $0x108] sm:$0xff]
        %v2983 = vld [vmem:[%s2948 + $0x110] sm:$0xff]
        %v2984 = vld [vmem:[%s2948 + $0x118] sm:$0xff]
        %v2985 = vld [vmem:[%s2948 + $0x120] sm:$0xff]
        %v2986 = vld [vmem:[%s2948 + $0x128] sm:$0xff]
        %v2987 = vld [vmem:[%s2948 + $0x130] sm:$0xff]
        %v2988 = vld [vmem:[%s2948 + $0x138] sm:$0xff]
        %v2989 = vld [vmem:[%s2948 + $0x140] sm:$0xff]
        %v2990 = vld [vmem:[%s2948 + $0x148] sm:$0xff]
        %v2991 = vld [vmem:[%s2948 + $0x150] sm:$0xff]
        %v2992 = vld [vmem:[%s2948 + $0x158] sm:$0xff]
        %v2993 = vld [vmem:[%s2948 + $0x160] sm:$0xff]
        %v2994 = vld [vmem:[%s2948 + $0x168] sm:$0xff]
        %v2995 = vld [vmem:[%s2948 + $0x170] sm:$0xff]
        %v2996 = vld [vmem:[%s2948 + $0x178] sm:$0xff]
        %v2997 = vld [vmem:[%s2948 + $0x180] sm:$0xff]
        %v2998 = vld [vmem:[%s2948 + $0x188] sm:$0xff]
        %v2999 = vld [vmem:[%s2948 + $0x190] sm:$0xff]
        %v3000 = vld [vmem:[%s2948 + $0x198] sm:$0xff]
        %v3001 = vld [vmem:[%s2948 + $0x1a0] sm:$0xff]
        %v3002 = vld [vmem:[%s2948 + $0x1a8] sm:$0xff]
        %v3003 = vld [vmem:[%s2948 + $0x1b0] sm:$0xff]
        %v3004 = vld [vmem:[%s2948 + $0x1b8] sm:$0xff]
        %v3005 = vld [vmem:[%s2948 + $0x1c0] sm:$0xff]
        %v3006 = vld [vmem:[%s2948 + $0x1c8] sm:$0xff]
        %v3007 = vld [vmem:[%s2948 + $0x1d0] sm:$0xff]
        %v3008 = vld [vmem:[%s2948 + $0x1d8] sm:$0xff]
        %v3009 = vld [vmem:[%s2948 + $0x1e0] sm:$0xff]
        %v3010 = vld [vmem:[%s2948 + $0x1e8] sm:$0xff]
        %v3011 = vld [vmem:[%s2948 + $0x1f0] sm:$0xff]
        %v3012 = vld [vmem:[%s2948 + $0x1f8] sm:$0xff]
        %s3013 = scalar_lea.vmem %s2, 768
        %v3014 = vld [vmem:[%s3013] sm:$0xff]
        %v3015 = vld [vmem:[%s3013 + $0x8] sm:$0xff]
        %v3016 = vld [vmem:[%s3013 + $0x10] sm:$0xff]
        %v3017 = vld [vmem:[%s3013 + $0x18] sm:$0xff]
        %v3018 = vld [vmem:[%s3013 + $0x20] sm:$0xff]
        %v3019 = vld [vmem:[%s3013 + $0x28] sm:$0xff]
        %v3020 = vld [vmem:[%s3013 + $0x30] sm:$0xff]
        %v3021 = vld [vmem:[%s3013 + $0x38] sm:$0xff]
        %v3022 = vld [vmem:[%s3013 + $0x40] sm:$0xff]
        %v3023 = vld [vmem:[%s3013 + $0x48] sm:$0xff]
        %v3024 = vld [vmem:[%s3013 + $0x50] sm:$0xff]
        %v3025 = vld [vmem:[%s3013 + $0x58] sm:$0xff]
        %v3026 = vld [vmem:[%s3013 + $0x60] sm:$0xff]
        %v3027 = vld [vmem:[%s3013 + $0x68] sm:$0xff]
        %v3028 = vld [vmem:[%s3013 + $0x70] sm:$0xff]
        %v3029 = vld [vmem:[%s3013 + $0x78] sm:$0xff]
        %v3078 = vrot.slane %v2949, 7
        %v3079 = vrot.slane %v2950, 7
        %v3080 = vsel %vm1033, %v3078, %v3079
        %v3081 = vrot.slane %v2951, 7
        %v3082 = vsel %vm1033, %v3079, %v3081
        %v3083 = vrot.slane %v2953, 7
        %v3084 = vrot.slane %v2954, 7
        %v3085 = vsel %vm1033, %v3083, %v3084
        %v3086 = vrot.slane %v2955, 7
        %v3087 = vsel %vm1033, %v3084, %v3086
        %v3088 = vrot.slane %v2957, 7
        %v3089 = vrot.slane %v2958, 7
        %v3090 = vsel %vm1033, %v3088, %v3089
        %v3091 = vrot.slane %v2959, 7
        %v3092 = vsel %vm1033, %v3089, %v3091
        %v3093 = vrot.slane %v2961, 7
        %v3094 = vrot.slane %v2962, 7
        %v3095 = vsel %vm1033, %v3093, %v3094
        %v3096 = vrot.slane %v2963, 7
        %v3097 = vsel %vm1033, %v3094, %v3096
        %v3098 = vrot.slane %v2965, 7
        %v3099 = vrot.slane %v2966, 7
        %v3100 = vsel %vm1033, %v3098, %v3099
        %v3101 = vrot.slane %v2967, 7
        %v3102 = vsel %vm1033, %v3099, %v3101
        %v3103 = vrot.slane %v2969, 7
        %v3104 = vrot.slane %v2970, 7
        %v3105 = vsel %vm1033, %v3103, %v3104
        %v3106 = vrot.slane %v2971, 7
        %v3107 = vsel %vm1033, %v3104, %v3106
        %v3108 = vrot.slane %v2973, 7
        %v3109 = vrot.slane %v2974, 7
        %v3110 = vsel %vm1033, %v3108, %v3109
        %v3111 = vrot.slane %v2975, 7
        %v3112 = vsel %vm1033, %v3109, %v3111
        %v3113 = vrot.slane %v2977, 7
        %v3114 = vrot.slane %v2978, 7
        %v3115 = vsel %vm1033, %v3113, %v3114
        %v3116 = vrot.slane %v2979, 7
        %v3117 = vsel %vm1033, %v3114, %v3116
        %v3118 = vrot.slane %v2981, 7
        %v3119 = vrot.slane %v2982, 7
        %v3120 = vsel %vm1033, %v3118, %v3119
        %v3121 = vrot.slane %v2983, 7
        %v3122 = vsel %vm1033, %v3119, %v3121
        %v3123 = vrot.slane %v2985, 7
        %v3124 = vrot.slane %v2986, 7
        %v3125 = vsel %vm1033, %v3123, %v3124
        %v3126 = vrot.slane %v2987, 7
        %v3127 = vsel %vm1033, %v3124, %v3126
        %v3128 = vrot.slane %v2989, 7
        %v3129 = vrot.slane %v2990, 7
        %v3130 = vsel %vm1033, %v3128, %v3129
        %v3131 = vrot.slane %v2991, 7
        %v3132 = vsel %vm1033, %v3129, %v3131
        %v3133 = vrot.slane %v2993, 7
        %v3134 = vrot.slane %v2994, 7
        %v3135 = vsel %vm1033, %v3133, %v3134
        %v3136 = vrot.slane %v2995, 7
        %v3137 = vsel %vm1033, %v3134, %v3136
        %v3138 = vrot.slane %v2997, 7
        %v3139 = vrot.slane %v2998, 7
        %v3140 = vsel %vm1033, %v3138, %v3139
        %v3141 = vrot.slane %v2999, 7
        %v3142 = vsel %vm1033, %v3139, %v3141
        %v3143 = vrot.slane %v3001, 7
        %v3144 = vrot.slane %v3002, 7
        %v3145 = vsel %vm1033, %v3143, %v3144
        %v3146 = vrot.slane %v3003, 7
        %v3147 = vsel %vm1033, %v3144, %v3146
        %v3148 = vrot.slane %v3005, 7
        %v3149 = vrot.slane %v3006, 7
        %v3150 = vsel %vm1033, %v3148, %v3149
        %v3151 = vrot.slane %v3007, 7
        %v3152 = vsel %vm1033, %v3149, %v3151
        %v3153 = vrot.slane %v3009, 7
        %v3154 = vrot.slane %v3010, 7
        %v3155 = vsel %vm1033, %v3153, %v3154
        %v3156 = vrot.slane %v3011, 7
        %v3157 = vsel %vm1033, %v3154, %v3156
        %3190 = vmatprep.subr.mxu0 0.0
        %3191 = vmatpush1.msra.mxu0 %v3014
        %3192 = vmatprep.subr.mxu0 0.0
        %3193 = vmatpush1.msra.mxu0 %v3015
        %3194 = vmatprep.subr.mxu0 0.0
        %3195 = vmatpush1.msra.mxu0 %v3016
        %3196 = vmatprep.subr.mxu0 0.0
        %3197 = vmatpush1.msra.mxu0 %v3017
        %3198 = vmatprep.subr.mxu0 0.0
        %3199 = vmatpush1.msra.mxu0 %v3018
        %3200 = vmatprep.subr.mxu0 0.0
        %3201 = vmatpush1.msra.mxu0 %v3019
        %3202 = vmatprep.subr.mxu0 0.0
        %3203 = vmatpush1.msra.mxu0 %v3020
        %3204 = vmatprep.subr.mxu0 0.0
        %3205 = vmatpush1.msra.mxu0 %v3021
        %3206 = vmatprep.subr.mxu0 0.0
        %3207 = vmatpush1.msra.mxu0 %v3022
        %3208 = vmatprep.subr.mxu0 0.0
        %3209 = vmatpush1.msra.mxu0 %v3023
        %3210 = vmatprep.subr.mxu0 0.0
        %3211 = vmatpush1.msra.mxu0 %v3024
        %3212 = vmatprep.subr.mxu0 0.0
        %3213 = vmatpush1.msra.mxu0 %v3025
        %3214 = vmatprep.subr.mxu0 0.0
        %3215 = vmatpush1.msra.mxu0 %v3026
        %3216 = vmatprep.subr.mxu0 0.0
        %3217 = vmatpush1.msra.mxu0 %v3027
        %3218 = vmatprep.subr.mxu0 0.0
        %3219 = vmatpush1.msra.mxu0 %v3028
        %3220 = vmatprep.subr.mxu0 0.0
        %3221 = vmatpush1.msra.mxu0 %v3029
        %3222 = vmatprep.subr.mxu0 0.0
        %3223 = vmatpush1.msra.mxu0 0.0
        %3224 = vmatprep.subr.mxu0 0.0
        %3225 = vmatpush1.msra.mxu0 0.0
        %3226 = vmatprep.subr.mxu0 0.0
        %3227 = vmatpush1.msra.mxu0 0.0
        %3228 = vmatprep.subr.mxu0 0.0
        %3229 = vmatpush1.msra.mxu0 0.0
        %3230 = vmatprep.subr.mxu0 0.0
        %3231 = vmatpush1.msra.mxu0 0.0
        %3232 = vmatprep.subr.mxu0 0.0
        %3233 = vmatpush1.msra.mxu0 0.0
        %3234 = vmatprep.subr.mxu0 0.0
        %3235 = vmatpush1.msra.mxu0 0.0
        %3236 = vmatprep.subr.mxu0 0.0
        %3237 = vmatpush1.msra.mxu0 0.0
        %3238 = vmatprep.subr.mxu0 0.0
        %3239 = vmatpush1.msra.mxu0 0.0
        %3240 = vmatprep.subr.mxu0 0.0
        %3241 = vmatpush1.msra.mxu0 0.0
        %3242 = vmatprep.subr.mxu0 0.0
        %3243 = vmatpush1.msra.mxu0 0.0
        %3244 = vmatprep.subr.mxu0 0.0
        %3245 = vmatpush1.msra.mxu0 0.0
        %3246 = vmatprep.subr.mxu0 0.0
        %3247 = vmatpush1.msra.mxu0 0.0
        %3248 = vmatprep.subr.mxu0 0.0
        %3249 = vmatpush1.msra.mxu0 0.0
        %3250 = vmatprep.subr.mxu0 0.0
        %3251 = vmatpush1.msra.mxu0 0.0
        %3252 = vmatprep.subr.mxu0 0.0
        %3253 = vmatpush1.msra.mxu0 0.0
        %3254 = vmatprep.mubr.f32.mxu0 0.0
        %3255 = vmatmul.mubr.f32.gmra.mrb[0].mxu0 %v3080
        %v3256 = vpop.f32.mrb[0].mxu0
        %v3257 = vadd.f32 0.0, %v3256
        %v3258 = vpop.f32.mrb[0].mxu0
        %3259 = vmatprep.mubr.f32.mxu0 0.0
        %3260 = vmatmul.mubr.f32.gmra.mrb[0].mxu0 %v3082
        %v3261 = vpop.f32.mrb[0].mxu0
        %v3262 = vadd.f32 0.0, %v3261
        %v3263 = vpop.f32.mrb[0].mxu0
        %3264 = vmatprep.mubr.f32.mxu0 0.0
        %3265 = vmatmul.mubr.f32.gmra.mrb[0].mxu0 %v3085
        %v3266 = vpop.f32.mrb[0].mxu0
        %v3267 = vadd.f32 0.0, %v3266
        %v3268 = vpop.f32.mrb[0].mxu0
        %3269 = vmatprep.mubr.f32.mxu0 0.0
        %3270 = vmatmul.mubr.f32.gmra.mrb[0].mxu0 %v3087
        %v3271 = vpop.f32.mrb[0].mxu0
        %v3272 = vadd.f32 0.0, %v3271
        %v3273 = vpop.f32.mrb[0].mxu0
        %3274 = vmatprep.mubr.f32.mxu0 0.0
        %3275 = vmatmul.mubr.f32.gmra.mrb[0].mxu0 %v3090
        %v3276 = vpop.f32.mrb[0].mxu0
        %v3277 = vadd.f32 0.0, %v3276
        %v3278 = vpop.f32.mrb[0].mxu0
        %3279 = vmatprep.mubr.f32.mxu0 0.0
        %3280 = vmatmul.mubr.f32.gmra.mrb[0].mxu0 %v3092
        %v3281 = vpop.f32.mrb[0].mxu0
        %v3282 = vadd.f32 0.0, %v3281
        %v3283 = vpop.f32.mrb[0].mxu0
        %3284 = vmatprep.mubr.f32.mxu0 0.0
        %3285 = vmatmul.mubr.f32.gmra.mrb[0].mxu0 %v3095
        %v3286 = vpop.f32.mrb[0].mxu0
        %v3287 = vadd.f32 0.0, %v3286
        %v3288 = vpop.f32.mrb[0].mxu0
        %3289 = vmatprep.mubr.f32.mxu0 0.0
        %3290 = vmatmul.mubr.f32.gmra.mrb[0].mxu0 %v3097
        %v3291 = vpop.f32.mrb[0].mxu0
        %v3292 = vadd.f32 0.0, %v3291
        %v3293 = vpop.f32.mrb[0].mxu0
        %3294 = vmatprep.mubr.f32.mxu0 0.0
        %3295 = vmatmul.mubr.f32.gmra.mrb[0].mxu0 %v3100
        %v3296 = vpop.f32.mrb[0].mxu0
        %v3297 = vadd.f32 0.0, %v3296
        %v3298 = vpop.f32.mrb[0].mxu0
        %3299 = vmatprep.mubr.f32.mxu0 0.0
        %3300 = vmatmul.mubr.f32.gmra.mrb[0].mxu0 %v3102
        %v3301 = vpop.f32.mrb[0].mxu0
        %v3302 = vadd.f32 0.0, %v3301
        %v3303 = vpop.f32.mrb[0].mxu0
        %3304 = vmatprep.mubr.f32.mxu0 0.0
        %3305 = vmatmul.mubr.f32.gmra.mrb[0].mxu0 %v3105
        %v3306 = vpop.f32.mrb[0].mxu0
        %v3307 = vadd.f32 0.0, %v3306
        %v3308 = vpop.f32.mrb[0].mxu0
        %3309 = vmatprep.mubr.f32.mxu0 0.0
        %3310 = vmatmul.mubr.f32.gmra.mrb[0].mxu0 %v3107
        %v3311 = vpop.f32.mrb[0].mxu0
        %v3312 = vadd.f32 0.0, %v3311
        %v3313 = vpop.f32.mrb[0].mxu0
        %3314 = vmatprep.mubr.f32.mxu0 0.0
        %3315 = vmatmul.mubr.f32.gmra.mrb[0].mxu0 %v3110
        %v3316 = vpop.f32.mrb[0].mxu0
        %v3317 = vadd.f32 0.0, %v3316
        %v3318 = vpop.f32.mrb[0].mxu0
        %3319 = vmatprep.mubr.f32.mxu0 0.0
        %3320 = vmatmul.mubr.f32.gmra.mrb[0].mxu0 %v3112
        %v3321 = vpop.f32.mrb[0].mxu0
        %v3322 = vadd.f32 0.0, %v3321
        %v3323 = vpop.f32.mrb[0].mxu0
        %3324 = vmatprep.mubr.f32.mxu0 0.0
        %3325 = vmatmul.mubr.f32.gmra.mrb[0].mxu0 %v3115
        %v3326 = vpop.f32.mrb[0].mxu0
        %v3327 = vadd.f32 0.0, %v3326
        %v3328 = vpop.f32.mrb[0].mxu0
        %3329 = vmatprep.mubr.f32.mxu0 0.0
        %3330 = vmatmul.mubr.f32.gmra.mrb[0].mxu0 %v3117
        %v3331 = vpop.f32.mrb[0].mxu0
        %v3332 = vadd.f32 0.0, %v3331
        %v3333 = vpop.f32.mrb[0].mxu0
        %3334 = vmatprep.mubr.f32.mxu0 0.0
        %3335 = vmatmul.mubr.f32.gmra.mrb[0].mxu0 %v3120
        %v3336 = vpop.f32.mrb[0].mxu0
        %v3337 = vadd.f32 0.0, %v3336
        %v3338 = vpop.f32.mrb[0].mxu0
        %3339 = vmatprep.mubr.f32.mxu0 0.0
        %3340 = vmatmul.mubr.f32.gmra.mrb[0].mxu0 %v3122
        %v3341 = vpop.f32.mrb[0].mxu0
        %v3342 = vadd.f32 0.0, %v3341
        %v3343 = vpop.f32.mrb[0].mxu0
        %3344 = vmatprep.mubr.f32.mxu0 0.0
        %3345 = vmatmul.mubr.f32.gmra.mrb[0].mxu0 %v3125
        %v3346 = vpop.f32.mrb[0].mxu0
        %v3347 = vadd.f32 0.0, %v3346
        %v3348 = vpop.f32.mrb[0].mxu0
        %3349 = vmatprep.mubr.f32.mxu0 0.0
        %3350 = vmatmul.mubr.f32.gmra.mrb[0].mxu0 %v3127
        %v3351 = vpop.f32.mrb[0].mxu0
        %v3352 = vadd.f32 0.0, %v3351
        %v3353 = vpop.f32.mrb[0].mxu0
        %3354 = vmatprep.mubr.f32.mxu0 0.0
        %3355 = vmatmul.mubr.f32.gmra.mrb[0].mxu0 %v3130
        %v3356 = vpop.f32.mrb[0].mxu0
        %v3357 = vadd.f32 0.0, %v3356
        %v3358 = vpop.f32.mrb[0].mxu0
        %3359 = vmatprep.mubr.f32.mxu0 0.0
        %3360 = vmatmul.mubr.f32.gmra.mrb[0].mxu0 %v3132
        %v3361 = vpop.f32.mrb[0].mxu0
        %v3362 = vadd.f32 0.0, %v3361
        %v3363 = vpop.f32.mrb[0].mxu0
        %3364 = vmatprep.mubr.f32.mxu0 0.0
        %3365 = vmatmul.mubr.f32.gmra.mrb[0].mxu0 %v3135
        %v3366 = vpop.f32.mrb[0].mxu0
        %v3367 = vadd.f32 0.0, %v3366
        %v3368 = vpop.f32.mrb[0].mxu0
        %3369 = vmatprep.mubr.f32.mxu0 0.0
        %3370 = vmatmul.mubr.f32.gmra.mrb[0].mxu0 %v3137
        %v3371 = vpop.f32.mrb[0].mxu0
        %v3372 = vadd.f32 0.0, %v3371
        %v3373 = vpop.f32.mrb[0].mxu0
        %3374 = vmatprep.mubr.f32.mxu0 0.0
        %3375 = vmatmul.mubr.f32.gmra.mrb[0].mxu0 %v3140
        %v3376 = vpop.f32.mrb[0].mxu0
        %v3377 = vadd.f32 0.0, %v3376
        %v3378 = vpop.f32.mrb[0].mxu0
        %3379 = vmatprep.mubr.f32.mxu0 0.0
        %3380 = vmatmul.mubr.f32.gmra.mrb[0].mxu0 %v3142
        %v3381 = vpop.f32.mrb[0].mxu0
        %v3382 = vadd.f32 0.0, %v3381
        %v3383 = vpop.f32.mrb[0].mxu0
        %3384 = vmatprep.mubr.f32.mxu0 0.0
        %3385 = vmatmul.mubr.f32.gmra.mrb[0].mxu0 %v3145
        %v3386 = vpop.f32.mrb[0].mxu0
        %v3387 = vadd.f32 0.0, %v3386
        %v3388 = vpop.f32.mrb[0].mxu0
        %3389 = vmatprep.mubr.f32.mxu0 0.0
        %3390 = vmatmul.mubr.f32.gmra.mrb[0].mxu0 %v3147
        %v3391 = vpop.f32.mrb[0].mxu0
        %v3392 = vadd.f32 0.0, %v3391
        %v3393 = vpop.f32.mrb[0].mxu0
        %3394 = vmatprep.mubr.f32.mxu0 0.0
        %3395 = vmatmul.mubr.f32.gmra.mrb[0].mxu0 %v3150
        %v3396 = vpop.f32.mrb[0].mxu0
        %v3397 = vadd.f32 0.0, %v3396
        %v3398 = vpop.f32.mrb[0].mxu0
        %3399 = vmatprep.mubr.f32.mxu0 0.0
        %3400 = vmatmul.mubr.f32.gmra.mrb[0].mxu0 %v3152
        %v3401 = vpop.f32.mrb[0].mxu0
        %v3402 = vadd.f32 0.0, %v3401
        %v3403 = vpop.f32.mrb[0].mxu0
        %3404 = vmatprep.mubr.f32.mxu0 0.0
        %3405 = vmatmul.mubr.f32.gmra.mrb[0].mxu0 %v3155
        %v3406 = vpop.f32.mrb[0].mxu0
        %v3407 = vadd.f32 0.0, %v3406
        %v3408 = vpop.f32.mrb[0].mxu0
        %3409 = vmatprep.mubr.f32.mxu0 0.0
        %3410 = vmatmul.mubr.f32.gmra.mrb[0].mxu0 %v3157
        %v3411 = vpop.f32.mrb[0].mxu0
        %v3412 = vadd.f32 0.0, %v3411
        %v3413 = vpop.f32.mrb[0].mxu0
        %3414 = vdwg.mxu0
        %v3415 = vadd.f32 %v2916, %v3257
        %v3416 = vadd.f32 %v2917, %v3262
        %v3417 = vadd.f32 %v2918, %v3267
        %v3418 = vadd.f32 %v2919, %v3272
        %v3419 = vadd.f32 %v2920, %v3277
        %v3420 = vadd.f32 %v2921, %v3282
        %v3421 = vadd.f32 %v2922, %v3287
        %v3422 = vadd.f32 %v2923, %v3292
        %v3423 = vadd.f32 %v2924, %v3297
        %v3424 = vadd.f32 %v2925, %v3302
        %v3425 = vadd.f32 %v2926, %v3307
        %v3426 = vadd.f32 %v2927, %v3312
        %v3427 = vadd.f32 %v2928, %v3317
        %v3428 = vadd.f32 %v2929, %v3322
        %v3429 = vadd.f32 %v2930, %v3327
        %v3430 = vadd.f32 %v2931, %v3332
        %v3431 = vadd.f32 %v2932, %v3337
        %v3432 = vadd.f32 %v2933, %v3342
        %v3433 = vadd.f32 %v2934, %v3347
        %v3434 = vadd.f32 %v2935, %v3352
        %v3435 = vadd.f32 %v2936, %v3357
        %v3436 = vadd.f32 %v2937, %v3362
        %v3437 = vadd.f32 %v2938, %v3367
        %v3438 = vadd.f32 %v2939, %v3372
        %v3439 = vadd.f32 %v2940, %v3377
        %v3440 = vadd.f32 %v2941, %v3382
        %v3441 = vadd.f32 %v2942, %v3387
        %v3442 = vadd.f32 %v2943, %v3392
        %v3443 = vadd.f32 %v2944, %v3397
        %v3444 = vadd.f32 %v2945, %v3402
        %v3445 = vadd.f32 %v2946, %v3407
        %v3446 = vadd.f32 %v2947, %v3412
        %s3447 = scalar_lea.vmem %s2, 896
        %v3448 = vld [vmem:[%s3447] sm:$0xff]
        %v3449 = vld [vmem:[%s3447 + $0x8] sm:$0xff]
        %v3450 = vld [vmem:[%s3447 + $0x10] sm:$0xff]
        %v3451 = vld [vmem:[%s3447 + $0x18] sm:$0xff]
        %v3452 = vld [vmem:[%s3447 + $0x20] sm:$0xff]
        %v3453 = vld [vmem:[%s3447 + $0x28] sm:$0xff]
        %v3454 = vld [vmem:[%s3447 + $0x30] sm:$0xff]
        %v3455 = vld [vmem:[%s3447 + $0x38] sm:$0xff]
        %v3456 = vld [vmem:[%s3447 + $0x40] sm:$0xff]
        %v3457 = vld [vmem:[%s3447 + $0x48] sm:$0xff]
        %v3458 = vld [vmem:[%s3447 + $0x50] sm:$0xff]
        %v3459 = vld [vmem:[%s3447 + $0x58] sm:$0xff]
        %v3460 = vld [vmem:[%s3447 + $0x60] sm:$0xff]
        %v3461 = vld [vmem:[%s3447 + $0x68] sm:$0xff]
        %v3462 = vld [vmem:[%s3447 + $0x70] sm:$0xff]
        %v3463 = vld [vmem:[%s3447 + $0x78] sm:$0xff]
        %3464 = vmatprep.subr.mxu0 0.0
        %3465 = vmatpush1.msra.mxu0 %v3448
        %3466 = vmatprep.subr.mxu0 0.0
        %3467 = vmatpush1.msra.mxu0 %v3449
        %3468 = vmatprep.subr.mxu0 0.0
        %3469 = vmatpush1.msra.mxu0 %v3450
        %3470 = vmatprep.subr.mxu0 0.0
        %3471 = vmatpush1.msra.mxu0 %v3451
        %3472 = vmatprep.subr.mxu0 0.0
        %3473 = vmatpush1.msra.mxu0 %v3452
        %3474 = vmatprep.subr.mxu0 0.0
        %3475 = vmatpush1.msra.mxu0 %v3453
        %3476 = vmatprep.subr.mxu0 0.0
        %3477 = vmatpush1.msra.mxu0 %v3454
        %3478 = vmatprep.subr.mxu0 0.0
        %3479 = vmatpush1.msra.mxu0 %v3455
        %3480 = vmatprep.subr.mxu0 0.0
        %3481 = vmatpush1.msra.mxu0 %v3456
        %3482 = vmatprep.subr.mxu0 0.0
        %3483 = vmatpush1.msra.mxu0 %v3457
        %3484 = vmatprep.subr.mxu0 0.0
        %3485 = vmatpush1.msra.mxu0 %v3458
        %3486 = vmatprep.subr.mxu0 0.0
        %3487 = vmatpush1.msra.mxu0 %v3459
        %3488 = vmatprep.subr.mxu0 0.0
        %3489 = vmatpush1.msra.mxu0 %v3460
        %3490 = vmatprep.subr.mxu0 0.0
        %3491 = vmatpush1.msra.mxu0 %v3461
        %3492 = vmatprep.subr.mxu0 0.0
        %3493 = vmatpush1.msra.mxu0 %v3462
        %3494 = vmatprep.subr.mxu0 0.0
        %3495 = vmatpush1.msra.mxu0 %v3463
        %3496 = vmatprep.subr.mxu0 0.0
        %3497 = vmatpush1.msra.mxu0 0.0
        %3498 = vmatprep.subr.mxu0 0.0
        %3499 = vmatpush1.msra.mxu0 0.0
        %3500 = vmatprep.subr.mxu0 0.0
        %3501 = vmatpush1.msra.mxu0 0.0
        %3502 = vmatprep.subr.mxu0 0.0
        %3503 = vmatpush1.msra.mxu0 0.0
        %3504 = vmatprep.subr.mxu0 0.0
        %3505 = vmatpush1.msra.mxu0 0.0
        %3506 = vmatprep.subr.mxu0 0.0
        %3507 = vmatpush1.msra.mxu0 0.0
        %3508 = vmatprep.subr.mxu0 0.0
        %3509 = vmatpush1.msra.mxu0 0.0
        %3510 = vmatprep.subr.mxu0 0.0
        %3511 = vmatpush1.msra.mxu0 0.0
        %3512 = vmatprep.subr.mxu0 0.0
        %3513 = vmatpush1.msra.mxu0 0.0
        %3514 = vmatprep.subr.mxu0 0.0
        %3515 = vmatpush1.msra.mxu0 0.0
        %3516 = vmatprep.subr.mxu0 0.0
        %3517 = vmatpush1.msra.mxu0 0.0
        %3518 = vmatprep.subr.mxu0 0.0
        %3519 = vmatpush1.msra.mxu0 0.0
        %3520 = vmatprep.subr.mxu0 0.0
        %3521 = vmatpush1.msra.mxu0 0.0
        %3522 = vmatprep.subr.mxu0 0.0
        %3523 = vmatpush1.msra.mxu0 0.0
        %3524 = vmatprep.subr.mxu0 0.0
        %3525 = vmatpush1.msra.mxu0 0.0
        %3526 = vmatprep.subr.mxu0 0.0
        %3527 = vmatpush1.msra.mxu0 0.0
        %3528 = vmatprep.mubr.f32.mxu0 0.0
        %3529 = vmatmul.mubr.f32.gmra.mrb[0].mxu0 %v2950
        %v3530 = vpop.f32.mrb[0].mxu0
        %v3531 = vadd.f32 0.0, %v3530
        %v3532 = vpop.f32.mrb[0].mxu0
        %3533 = vmatprep.mubr.f32.mxu0 0.0
        %3534 = vmatmul.mubr.f32.gmra.mrb[0].mxu0 %v2951
        %v3535 = vpop.f32.mrb[0].mxu0
        %v3536 = vadd.f32 0.0, %v3535
        %v3537 = vpop.f32.mrb[0].mxu0
        %3538 = vmatprep.mubr.f32.mxu0 0.0
        %3539 = vmatmul.mubr.f32.gmra.mrb[0].mxu0 %v2954
        %v3540 = vpop.f32.mrb[0].mxu0
        %v3541 = vadd.f32 0.0, %v3540
        %v3542 = vpop.f32.mrb[0].mxu0
        %3543 = vmatprep.mubr.f32.mxu0 0.0
        %3544 = vmatmul.mubr.f32.gmra.mrb[0].mxu0 %v2955
        %v3545 = vpop.f32.mrb[0].mxu0
        %v3546 = vadd.f32 0.0, %v3545
        %v3547 = vpop.f32.mrb[0].mxu0
        %3548 = vmatprep.mubr.f32.mxu0 0.0
        %3549 = vmatmul.mubr.f32.gmra.mrb[0].mxu0 %v2958
        %v3550 = vpop.f32.mrb[0].mxu0
        %v3551 = vadd.f32 0.0, %v3550
        %v3552 = vpop.f32.mrb[0].mxu0
        %3553 = vmatprep.mubr.f32.mxu0 0.0
        %3554 = vmatmul.mubr.f32.gmra.mrb[0].mxu0 %v2959
        %v3555 = vpop.f32.mrb[0].mxu0
        %v3556 = vadd.f32 0.0, %v3555
        %v3557 = vpop.f32.mrb[0].mxu0
        %3558 = vmatprep.mubr.f32.mxu0 0.0
        %3559 = vmatmul.mubr.f32.gmra.mrb[0].mxu0 %v2962
        %v3560 = vpop.f32.mrb[0].mxu0
        %v3561 = vadd.f32 0.0, %v3560
        %v3562 = vpop.f32.mrb[0].mxu0
        %3563 = vmatprep.mubr.f32.mxu0 0.0
        %3564 = vmatmul.mubr.f32.gmra.mrb[0].mxu0 %v2963
        %v3565 = vpop.f32.mrb[0].mxu0
        %v3566 = vadd.f32 0.0, %v3565
        %v3567 = vpop.f32.mrb[0].mxu0
        %3568 = vmatprep.mubr.f32.mxu0 0.0
        %3569 = vmatmul.mubr.f32.gmra.mrb[0].mxu0 %v2966
        %v3570 = vpop.f32.mrb[0].mxu0
        %v3571 = vadd.f32 0.0, %v3570
        %v3572 = vpop.f32.mrb[0].mxu0
        %3573 = vmatprep.mubr.f32.mxu0 0.0
        %3574 = vmatmul.mubr.f32.gmra.mrb[0].mxu0 %v2967
        %v3575 = vpop.f32.mrb[0].mxu0
        %v3576 = vadd.f32 0.0, %v3575
        %v3577 = vpop.f32.mrb[0].mxu0
        %3578 = vmatprep.mubr.f32.mxu0 0.0
        %3579 = vmatmul.mubr.f32.gmra.mrb[0].mxu0 %v2970
        %v3580 = vpop.f32.mrb[0].mxu0
        %v3581 = vadd.f32 0.0, %v3580
        %v3582 = vpop.f32.mrb[0].mxu0
        %3583 = vmatprep.mubr.f32.mxu0 0.0
        %3584 = vmatmul.mubr.f32.gmra.mrb[0].mxu0 %v2971
        %v3585 = vpop.f32.mrb[0].mxu0
        %v3586 = vadd.f32 0.0, %v3585
        %v3587 = vpop.f32.mrb[0].mxu0
        %3588 = vmatprep.mubr.f32.mxu0 0.0
        %3589 = vmatmul.mubr.f32.gmra.mrb[0].mxu0 %v2974
        %v3590 = vpop.f32.mrb[0].mxu0
        %v3591 = vadd.f32 0.0, %v3590
        %v3592 = vpop.f32.mrb[0].mxu0
        %3593 = vmatprep.mubr.f32.mxu0 0.0
        %3594 = vmatmul.mubr.f32.gmra.mrb[0].mxu0 %v2975
        %v3595 = vpop.f32.mrb[0].mxu0
        %v3596 = vadd.f32 0.0, %v3595
        %v3597 = vpop.f32.mrb[0].mxu0
        %3598 = vmatprep.mubr.f32.mxu0 0.0
        %3599 = vmatmul.mubr.f32.gmra.mrb[0].mxu0 %v2978
        %v3600 = vpop.f32.mrb[0].mxu0
        %v3601 = vadd.f32 0.0, %v3600
        %v3602 = vpop.f32.mrb[0].mxu0
        %3603 = vmatprep.mubr.f32.mxu0 0.0
        %3604 = vmatmul.mubr.f32.gmra.mrb[0].mxu0 %v2979
        %v3605 = vpop.f32.mrb[0].mxu0
        %v3606 = vadd.f32 0.0, %v3605
        %v3607 = vpop.f32.mrb[0].mxu0
        %3608 = vmatprep.mubr.f32.mxu0 0.0
        %3609 = vmatmul.mubr.f32.gmra.mrb[0].mxu0 %v2982
        %v3610 = vpop.f32.mrb[0].mxu0
        %v3611 = vadd.f32 0.0, %v3610
        %v3612 = vpop.f32.mrb[0].mxu0
        %3613 = vmatprep.mubr.f32.mxu0 0.0
        %3614 = vmatmul.mubr.f32.gmra.mrb[0].mxu0 %v2983
        %v3615 = vpop.f32.mrb[0].mxu0
        %v3616 = vadd.f32 0.0, %v3615
        %v3617 = vpop.f32.mrb[0].mxu0
        %3618 = vmatprep.mubr.f32.mxu0 0.0
        %3619 = vmatmul.mubr.f32.gmra.mrb[0].mxu0 %v2986
        %v3620 = vpop.f32.mrb[0].mxu0
        %v3621 = vadd.f32 0.0, %v3620
        %v3622 = vpop.f32.mrb[0].mxu0
        %3623 = vmatprep.mubr.f32.mxu0 0.0
        %3624 = vmatmul.mubr.f32.gmra.mrb[0].mxu0 %v2987
        %v3625 = vpop.f32.mrb[0].mxu0
        %v3626 = vadd.f32 0.0, %v3625
        %v3627 = vpop.f32.mrb[0].mxu0
        %3628 = vmatprep.mubr.f32.mxu0 0.0
        %3629 = vmatmul.mubr.f32.gmra.mrb[0].mxu0 %v2990
        %v3630 = vpop.f32.mrb[0].mxu0
        %v3631 = vadd.f32 0.0, %v3630
        %v3632 = vpop.f32.mrb[0].mxu0
        %3633 = vmatprep.mubr.f32.mxu0 0.0
        %3634 = vmatmul.mubr.f32.gmra.mrb[0].mxu0 %v2991
        %v3635 = vpop.f32.mrb[0].mxu0
        %v3636 = vadd.f32 0.0, %v3635
        %v3637 = vpop.f32.mrb[0].mxu0
        %3638 = vmatprep.mubr.f32.mxu0 0.0
        %3639 = vmatmul.mubr.f32.gmra.mrb[0].mxu0 %v2994
        %v3640 = vpop.f32.mrb[0].mxu0
        %v3641 = vadd.f32 0.0, %v3640
        %v3642 = vpop.f32.mrb[0].mxu0
        %3643 = vmatprep.mubr.f32.mxu0 0.0
        %3644 = vmatmul.mubr.f32.gmra.mrb[0].mxu0 %v2995
        %v3645 = vpop.f32.mrb[0].mxu0
        %v3646 = vadd.f32 0.0, %v3645
        %v3647 = vpop.f32.mrb[0].mxu0
        %3648 = vmatprep.mubr.f32.mxu0 0.0
        %3649 = vmatmul.mubr.f32.gmra.mrb[0].mxu0 %v2998
        %v3650 = vpop.f32.mrb[0].mxu0
        %v3651 = vadd.f32 0.0, %v3650
        %v3652 = vpop.f32.mrb[0].mxu0
        %3653 = vmatprep.mubr.f32.mxu0 0.0
        %3654 = vmatmul.mubr.f32.gmra.mrb[0].mxu0 %v2999
        %v3655 = vpop.f32.mrb[0].mxu0
        %v3656 = vadd.f32 0.0, %v3655
        %v3657 = vpop.f32.mrb[0].mxu0
        %3658 = vmatprep.mubr.f32.mxu0 0.0
        %3659 = vmatmul.mubr.f32.gmra.mrb[0].mxu0 %v3002
        %v3660 = vpop.f32.mrb[0].mxu0
        %v3661 = vadd.f32 0.0, %v3660
        %v3662 = vpop.f32.mrb[0].mxu0
        %3663 = vmatprep.mubr.f32.mxu0 0.0
        %3664 = vmatmul.mubr.f32.gmra.mrb[0].mxu0 %v3003
        %v3665 = vpop.f32.mrb[0].mxu0
        %v3666 = vadd.f32 0.0, %v3665
        %v3667 = vpop.f32.mrb[0].mxu0
        %3668 = vmatprep.mubr.f32.mxu0 0.0
        %3669 = vmatmul.mubr.f32.gmra.mrb[0].mxu0 %v3006
        %v3670 = vpop.f32.mrb[0].mxu0
        %v3671 = vadd.f32 0.0, %v3670
        %v3672 = vpop.f32.mrb[0].mxu0
        %3673 = vmatprep.mubr.f32.mxu0 0.0
        %3674 = vmatmul.mubr.f32.gmra.mrb[0].mxu0 %v3007
        %v3675 = vpop.f32.mrb[0].mxu0
        %v3676 = vadd.f32 0.0, %v3675
        %v3677 = vpop.f32.mrb[0].mxu0
        %3678 = vmatprep.mubr.f32.mxu0 0.0
        %3679 = vmatmul.mubr.f32.gmra.mrb[0].mxu0 %v3010
        %v3680 = vpop.f32.mrb[0].mxu0
        %v3681 = vadd.f32 0.0, %v3680
        %v3682 = vpop.f32.mrb[0].mxu0
        %3683 = vmatprep.mubr.f32.mxu0 0.0
        %3684 = vmatmul.mubr.f32.gmra.mrb[0].mxu0 %v3011
        %v3685 = vpop.f32.mrb[0].mxu0
        %v3686 = vadd.f32 0.0, %v3685
        %v3687 = vpop.f32.mrb[0].mxu0
        %3688 = vdwg.mxu0
        %v3689 = vadd.f32 %v3415, %v3531
        %v3690 = vadd.f32 %v3416, %v3536
        %v3691 = vadd.f32 %v3417, %v3541
        %v3692 = vadd.f32 %v3418, %v3546
        %v3693 = vadd.f32 %v3419, %v3551
        %v3694 = vadd.f32 %v3420, %v3556
        %v3695 = vadd.f32 %v3421, %v3561
        %v3696 = vadd.f32 %v3422, %v3566
        %v3697 = vadd.f32 %v3423, %v3571
        %v3698 = vadd.f32 %v3424, %v3576
        %v3699 = vadd.f32 %v3425, %v3581
        %v3700 = vadd.f32 %v3426, %v3586
        %v3701 = vadd.f32 %v3427, %v3591
        %v3702 = vadd.f32 %v3428, %v3596
        %v3703 = vadd.f32 %v3429, %v3601
        %v3704 = vadd.f32 %v3430, %v3606
        %v3705 = vadd.f32 %v3431, %v3611
        %v3706 = vadd.f32 %v3432, %v3616
        %v3707 = vadd.f32 %v3433, %v3621
        %v3708 = vadd.f32 %v3434, %v3626
        %v3709 = vadd.f32 %v3435, %v3631
        %v3710 = vadd.f32 %v3436, %v3636
        %v3711 = vadd.f32 %v3437, %v3641
        %v3712 = vadd.f32 %v3438, %v3646
        %v3713 = vadd.f32 %v3439, %v3651
        %v3714 = vadd.f32 %v3440, %v3656
        %v3715 = vadd.f32 %v3441, %v3661
        %v3716 = vadd.f32 %v3442, %v3666
        %v3717 = vadd.f32 %v3443, %v3671
        %v3718 = vadd.f32 %v3444, %v3676
        %v3719 = vadd.f32 %v3445, %v3681
        %v3720 = vadd.f32 %v3446, %v3686
        %s3721 = scalar_lea.vmem %s2, 1024
        %v3722 = vld [vmem:[%s3721] sm:$0xff]
        %v3723 = vld [vmem:[%s3721 + $0x8] sm:$0xff]
        %v3724 = vld [vmem:[%s3721 + $0x10] sm:$0xff]
        %v3725 = vld [vmem:[%s3721 + $0x18] sm:$0xff]
        %v3726 = vld [vmem:[%s3721 + $0x20] sm:$0xff]
        %v3727 = vld [vmem:[%s3721 + $0x28] sm:$0xff]
        %v3728 = vld [vmem:[%s3721 + $0x30] sm:$0xff]
        %v3729 = vld [vmem:[%s3721 + $0x38] sm:$0xff]
        %v3730 = vld [vmem:[%s3721 + $0x40] sm:$0xff]
        %v3731 = vld [vmem:[%s3721 + $0x48] sm:$0xff]
        %v3732 = vld [vmem:[%s3721 + $0x50] sm:$0xff]
        %v3733 = vld [vmem:[%s3721 + $0x58] sm:$0xff]
        %v3734 = vld [vmem:[%s3721 + $0x60] sm:$0xff]
        %v3735 = vld [vmem:[%s3721 + $0x68] sm:$0xff]
        %v3736 = vld [vmem:[%s3721 + $0x70] sm:$0xff]
        %v3737 = vld [vmem:[%s3721 + $0x78] sm:$0xff]
        %v3754 = vrot.slane %v2950, 1
        %v3755 = vrot.slane %v2951, 1
        %v3756 = vsel %vm1404, %v3754, %v3755
        %v3757 = vrot.slane %v2952, 1
        %v3758 = vsel %vm1404, %v3755, %v3757
        %v3759 = vrot.slane %v2954, 1
        %v3760 = vrot.slane %v2955, 1
        %v3761 = vsel %vm1404, %v3759, %v3760
        %v3762 = vrot.slane %v2956, 1
        %v3763 = vsel %vm1404, %v3760, %v3762
        %v3764 = vrot.slane %v2958, 1
        %v3765 = vrot.slane %v2959, 1
        %v3766 = vsel %vm1404, %v3764, %v3765
        %v3767 = vrot.slane %v2960, 1
        %v3768 = vsel %vm1404, %v3765, %v3767
        %v3769 = vrot.slane %v2962, 1
        %v3770 = vrot.slane %v2963, 1
        %v3771 = vsel %vm1404, %v3769, %v3770
        %v3772 = vrot.slane %v2964, 1
        %v3773 = vsel %vm1404, %v3770, %v3772
        %v3774 = vrot.slane %v2966, 1
        %v3775 = vrot.slane %v2967, 1
        %v3776 = vsel %vm1404, %v3774, %v3775
        %v3777 = vrot.slane %v2968, 1
        %v3778 = vsel %vm1404, %v3775, %v3777
        %v3779 = vrot.slane %v2970, 1
        %v3780 = vrot.slane %v2971, 1
        %v3781 = vsel %vm1404, %v3779, %v3780
        %v3782 = vrot.slane %v2972, 1
        %v3783 = vsel %vm1404, %v3780, %v3782
        %v3784 = vrot.slane %v2974, 1
        %v3785 = vrot.slane %v2975, 1
        %v3786 = vsel %vm1404, %v3784, %v3785
        %v3787 = vrot.slane %v2976, 1
        %v3788 = vsel %vm1404, %v3785, %v3787
        %v3789 = vrot.slane %v2978, 1
        %v3790 = vrot.slane %v2979, 1
        %v3791 = vsel %vm1404, %v3789, %v3790
        %v3792 = vrot.slane %v2980, 1
        %v3793 = vsel %vm1404, %v3790, %v3792
        %v3794 = vrot.slane %v2982, 1
        %v3795 = vrot.slane %v2983, 1
        %v3796 = vsel %vm1404, %v3794, %v3795
        %v3797 = vrot.slane %v2984, 1
        %v3798 = vsel %vm1404, %v3795, %v3797
        %v3799 = vrot.slane %v2986, 1
        %v3800 = vrot.slane %v2987, 1
        %v3801 = vsel %vm1404, %v3799, %v3800
        %v3802 = vrot.slane %v2988, 1
        %v3803 = vsel %vm1404, %v3800, %v3802
        %v3804 = vrot.slane %v2990, 1
        %v3805 = vrot.slane %v2991, 1
        %v3806 = vsel %vm1404, %v3804, %v3805
        %v3807 = vrot.slane %v2992, 1
        %v3808 = vsel %vm1404, %v3805, %v3807
        %v3809 = vrot.slane %v2994, 1
        %v3810 = vrot.slane %v2995, 1
        %v3811 = vsel %vm1404, %v3809, %v3810
        %v3812 = vrot.slane %v2996, 1
        %v3813 = vsel %vm1404, %v3810, %v3812
        %v3814 = vrot.slane %v2998, 1
        %v3815 = vrot.slane %v2999, 1
        %v3816 = vsel %vm1404, %v3814, %v3815
        %v3817 = vrot.slane %v3000, 1
        %v3818 = vsel %vm1404, %v3815, %v3817
        %v3819 = vrot.slane %v3002, 1
        %v3820 = vrot.slane %v3003, 1
        %v3821 = vsel %vm1404, %v3819, %v3820
        %v3822 = vrot.slane %v3004, 1
        %v3823 = vsel %vm1404, %v3820, %v3822
        %v3824 = vrot.slane %v3006, 1
        %v3825 = vrot.slane %v3007, 1
        %v3826 = vsel %vm1404, %v3824, %v3825
        %v3827 = vrot.slane %v3008, 1
        %v3828 = vsel %vm1404, %v3825, %v3827
        %v3829 = vrot.slane %v3010, 1
        %v3830 = vrot.slane %v3011, 1
        %v3831 = vsel %vm1404, %v3829, %v3830
        %v3832 = vrot.slane %v3012, 1
        %v3833 = vsel %vm1404, %v3830, %v3832
        %3866 = vmatprep.subr.mxu0 0.0
        %3867 = vmatpush1.msra.mxu0 %v3722
        %3868 = vmatprep.subr.mxu0 0.0
        %3869 = vmatpush1.msra.mxu0 %v3723
        %3870 = vmatprep.subr.mxu0 0.0
        %3871 = vmatpush1.msra.mxu0 %v3724
        %3872 = vmatprep.subr.mxu0 0.0
        %3873 = vmatpush1.msra.mxu0 %v3725
        %3874 = vmatprep.subr.mxu0 0.0
        %3875 = vmatpush1.msra.mxu0 %v3726
        %3876 = vmatprep.subr.mxu0 0.0
        %3877 = vmatpush1.msra.mxu0 %v3727
        %3878 = vmatprep.subr.mxu0 0.0
        %3879 = vmatpush1.msra.mxu0 %v3728
        %3880 = vmatprep.subr.mxu0 0.0
        %3881 = vmatpush1.msra.mxu0 %v3729
        %3882 = vmatprep.subr.mxu0 0.0
        %3883 = vmatpush1.msra.mxu0 %v3730
        %3884 = vmatprep.subr.mxu0 0.0
        %3885 = vmatpush1.msra.mxu0 %v3731
        %3886 = vmatprep.subr.mxu0 0.0
        %3887 = vmatpush1.msra.mxu0 %v3732
        %3888 = vmatprep.subr.mxu0 0.0
        %3889 = vmatpush1.msra.mxu0 %v3733
        %3890 = vmatprep.subr.mxu0 0.0
        %3891 = vmatpush1.msra.mxu0 %v3734
        %3892 = vmatprep.subr.mxu0 0.0
        %3893 = vmatpush1.msra.mxu0 %v3735
        %3894 = vmatprep.subr.mxu0 0.0
        %3895 = vmatpush1.msra.mxu0 %v3736
        %3896 = vmatprep.subr.mxu0 0.0
        %3897 = vmatpush1.msra.mxu0 %v3737
        %3898 = vmatprep.subr.mxu0 0.0
        %3899 = vmatpush1.msra.mxu0 0.0
        %3900 = vmatprep.subr.mxu0 0.0
        %3901 = vmatpush1.msra.mxu0 0.0
        %3902 = vmatprep.subr.mxu0 0.0
        %3903 = vmatpush1.msra.mxu0 0.0
        %3904 = vmatprep.subr.mxu0 0.0
        %3905 = vmatpush1.msra.mxu0 0.0
        %3906 = vmatprep.subr.mxu0 0.0
        %3907 = vmatpush1.msra.mxu0 0.0
        %3908 = vmatprep.subr.mxu0 0.0
        %3909 = vmatpush1.msra.mxu0 0.0
        %3910 = vmatprep.subr.mxu0 0.0
        %3911 = vmatpush1.msra.mxu0 0.0
        %3912 = vmatprep.subr.mxu0 0.0
        %3913 = vmatpush1.msra.mxu0 0.0
        %3914 = vmatprep.subr.mxu0 0.0
        %3915 = vmatpush1.msra.mxu0 0.0
        %3916 = vmatprep.subr.mxu0 0.0
        %3917 = vmatpush1.msra.mxu0 0.0
        %3918 = vmatprep.subr.mxu0 0.0
        %3919 = vmatpush1.msra.mxu0 0.0
        %3920 = vmatprep.subr.mxu0 0.0
        %3921 = vmatpush1.msra.mxu0 0.0
        %3922 = vmatprep.subr.mxu0 0.0
        %3923 = vmatpush1.msra.mxu0 0.0
        %3924 = vmatprep.subr.mxu0 0.0
        %3925 = vmatpush1.msra.mxu0 0.0
        %3926 = vmatprep.subr.mxu0 0.0
        %3927 = vmatpush1.msra.mxu0 0.0
        %3928 = vmatprep.subr.mxu0 0.0
        %3929 = vmatpush1.msra.mxu0 0.0
        %3930 = vmatprep.mubr.f32.mxu0 0.0
        %3931 = vmatmul.mubr.f32.gmra.mrb[0].mxu0 %v3756
        %v3932 = vpop.f32.mrb[0].mxu0
        %v3933 = vadd.f32 0.0, %v3932
        %v3934 = vpop.f32.mrb[0].mxu0
        %3935 = vmatprep.mubr.f32.mxu0 0.0
        %3936 = vmatmul.mubr.f32.gmra.mrb[0].mxu0 %v3758
        %v3937 = vpop.f32.mrb[0].mxu0
        %v3938 = vadd.f32 0.0, %v3937
        %v3939 = vpop.f32.mrb[0].mxu0
        %3940 = vmatprep.mubr.f32.mxu0 0.0
        %3941 = vmatmul.mubr.f32.gmra.mrb[0].mxu0 %v3761
        %v3942 = vpop.f32.mrb[0].mxu0
        %v3943 = vadd.f32 0.0, %v3942
        %v3944 = vpop.f32.mrb[0].mxu0
        %3945 = vmatprep.mubr.f32.mxu0 0.0
        %3946 = vmatmul.mubr.f32.gmra.mrb[0].mxu0 %v3763
        %v3947 = vpop.f32.mrb[0].mxu0
        %v3948 = vadd.f32 0.0, %v3947
        %v3949 = vpop.f32.mrb[0].mxu0
        %3950 = vmatprep.mubr.f32.mxu0 0.0
        %3951 = vmatmul.mubr.f32.gmra.mrb[0].mxu0 %v3766
        %v3952 = vpop.f32.mrb[0].mxu0
        %v3953 = vadd.f32 0.0, %v3952
        %v3954 = vpop.f32.mrb[0].mxu0
        %3955 = vmatprep.mubr.f32.mxu0 0.0
        %3956 = vmatmul.mubr.f32.gmra.mrb[0].mxu0 %v3768
        %v3957 = vpop.f32.mrb[0].mxu0
        %v3958 = vadd.f32 0.0, %v3957
        %v3959 = vpop.f32.mrb[0].mxu0
        %3960 = vmatprep.mubr.f32.mxu0 0.0
        %3961 = vmatmul.mubr.f32.gmra.mrb[0].mxu0 %v3771
        %v3962 = vpop.f32.mrb[0].mxu0
        %v3963 = vadd.f32 0.0, %v3962
        %v3964 = vpop.f32.mrb[0].mxu0
        %3965 = vmatprep.mubr.f32.mxu0 0.0
        %3966 = vmatmul.mubr.f32.gmra.mrb[0].mxu0 %v3773
        %v3967 = vpop.f32.mrb[0].mxu0
        %v3968 = vadd.f32 0.0, %v3967
        %v3969 = vpop.f32.mrb[0].mxu0
        %3970 = vmatprep.mubr.f32.mxu0 0.0
        %3971 = vmatmul.mubr.f32.gmra.mrb[0].mxu0 %v3776
        %v3972 = vpop.f32.mrb[0].mxu0
        %v3973 = vadd.f32 0.0, %v3972
        %v3974 = vpop.f32.mrb[0].mxu0
        %3975 = vmatprep.mubr.f32.mxu0 0.0
        %3976 = vmatmul.mubr.f32.gmra.mrb[0].mxu0 %v3778
        %v3977 = vpop.f32.mrb[0].mxu0
        %v3978 = vadd.f32 0.0, %v3977
        %v3979 = vpop.f32.mrb[0].mxu0
        %3980 = vmatprep.mubr.f32.mxu0 0.0
        %3981 = vmatmul.mubr.f32.gmra.mrb[0].mxu0 %v3781
        %v3982 = vpop.f32.mrb[0].mxu0
        %v3983 = vadd.f32 0.0, %v3982
        %v3984 = vpop.f32.mrb[0].mxu0
        %3985 = vmatprep.mubr.f32.mxu0 0.0
        %3986 = vmatmul.mubr.f32.gmra.mrb[0].mxu0 %v3783
        %v3987 = vpop.f32.mrb[0].mxu0
        %v3988 = vadd.f32 0.0, %v3987
        %v3989 = vpop.f32.mrb[0].mxu0
        %3990 = vmatprep.mubr.f32.mxu0 0.0
        %3991 = vmatmul.mubr.f32.gmra.mrb[0].mxu0 %v3786
        %v3992 = vpop.f32.mrb[0].mxu0
        %v3993 = vadd.f32 0.0, %v3992
        %v3994 = vpop.f32.mrb[0].mxu0
        %3995 = vmatprep.mubr.f32.mxu0 0.0
        %3996 = vmatmul.mubr.f32.gmra.mrb[0].mxu0 %v3788
        %v3997 = vpop.f32.mrb[0].mxu0
        %v3998 = vadd.f32 0.0, %v3997
        %v3999 = vpop.f32.mrb[0].mxu0
        %4000 = vmatprep.mubr.f32.mxu0 0.0
        %4001 = vmatmul.mubr.f32.gmra.mrb[0].mxu0 %v3791
        %v4002 = vpop.f32.mrb[0].mxu0
        %v4003 = vadd.f32 0.0, %v4002
        %v4004 = vpop.f32.mrb[0].mxu0
        %4005 = vmatprep.mubr.f32.mxu0 0.0
        %4006 = vmatmul.mubr.f32.gmra.mrb[0].mxu0 %v3793
        %v4007 = vpop.f32.mrb[0].mxu0
        %v4008 = vadd.f32 0.0, %v4007
        %v4009 = vpop.f32.mrb[0].mxu0
        %4010 = vmatprep.mubr.f32.mxu0 0.0
        %4011 = vmatmul.mubr.f32.gmra.mrb[0].mxu0 %v3796
        %v4012 = vpop.f32.mrb[0].mxu0
        %v4013 = vadd.f32 0.0, %v4012
        %v4014 = vpop.f32.mrb[0].mxu0
        %4015 = vmatprep.mubr.f32.mxu0 0.0
        %4016 = vmatmul.mubr.f32.gmra.mrb[0].mxu0 %v3798
        %v4017 = vpop.f32.mrb[0].mxu0
        %v4018 = vadd.f32 0.0, %v4017
        %v4019 = vpop.f32.mrb[0].mxu0
        %4020 = vmatprep.mubr.f32.mxu0 0.0
        %4021 = vmatmul.mubr.f32.gmra.mrb[0].mxu0 %v3801
        %v4022 = vpop.f32.mrb[0].mxu0
        %v4023 = vadd.f32 0.0, %v4022
        %v4024 = vpop.f32.mrb[0].mxu0
        %4025 = vmatprep.mubr.f32.mxu0 0.0
        %4026 = vmatmul.mubr.f32.gmra.mrb[0].mxu0 %v3803
        %v4027 = vpop.f32.mrb[0].mxu0
        %v4028 = vadd.f32 0.0, %v4027
        %v4029 = vpop.f32.mrb[0].mxu0
        %4030 = vmatprep.mubr.f32.mxu0 0.0
        %4031 = vmatmul.mubr.f32.gmra.mrb[0].mxu0 %v3806
        %v4032 = vpop.f32.mrb[0].mxu0
        %v4033 = vadd.f32 0.0, %v4032
        %v4034 = vpop.f32.mrb[0].mxu0
        %4035 = vmatprep.mubr.f32.mxu0 0.0
        %4036 = vmatmul.mubr.f32.gmra.mrb[0].mxu0 %v3808
        %v4037 = vpop.f32.mrb[0].mxu0
        %v4038 = vadd.f32 0.0, %v4037
        %v4039 = vpop.f32.mrb[0].mxu0
        %4040 = vmatprep.mubr.f32.mxu0 0.0
        %4041 = vmatmul.mubr.f32.gmra.mrb[0].mxu0 %v3811
        %v4042 = vpop.f32.mrb[0].mxu0
        %v4043 = vadd.f32 0.0, %v4042
        %v4044 = vpop.f32.mrb[0].mxu0
        %4045 = vmatprep.mubr.f32.mxu0 0.0
        %4046 = vmatmul.mubr.f32.gmra.mrb[0].mxu0 %v3813
        %v4047 = vpop.f32.mrb[0].mxu0
        %v4048 = vadd.f32 0.0, %v4047
        %v4049 = vpop.f32.mrb[0].mxu0
        %4050 = vmatprep.mubr.f32.mxu0 0.0
        %4051 = vmatmul.mubr.f32.gmra.mrb[0].mxu0 %v3816
        %v4052 = vpop.f32.mrb[0].mxu0
        %v4053 = vadd.f32 0.0, %v4052
        %v4054 = vpop.f32.mrb[0].mxu0
        %4055 = vmatprep.mubr.f32.mxu0 0.0
        %4056 = vmatmul.mubr.f32.gmra.mrb[0].mxu0 %v3818
        %v4057 = vpop.f32.mrb[0].mxu0
        %v4058 = vadd.f32 0.0, %v4057
        %v4059 = vpop.f32.mrb[0].mxu0
        %4060 = vmatprep.mubr.f32.mxu0 0.0
        %4061 = vmatmul.mubr.f32.gmra.mrb[0].mxu0 %v3821
        %v4062 = vpop.f32.mrb[0].mxu0
        %v4063 = vadd.f32 0.0, %v4062
        %v4064 = vpop.f32.mrb[0].mxu0
        %4065 = vmatprep.mubr.f32.mxu0 0.0
        %4066 = vmatmul.mubr.f32.gmra.mrb[0].mxu0 %v3823
        %v4067 = vpop.f32.mrb[0].mxu0
        %v4068 = vadd.f32 0.0, %v4067
        %v4069 = vpop.f32.mrb[0].mxu0
        %4070 = vmatprep.mubr.f32.mxu0 0.0
        %4071 = vmatmul.mubr.f32.gmra.mrb[0].mxu0 %v3826
        %v4072 = vpop.f32.mrb[0].mxu0
        %v4073 = vadd.f32 0.0, %v4072
        %v4074 = vpop.f32.mrb[0].mxu0
        %4075 = vmatprep.mubr.f32.mxu0 0.0
        %4076 = vmatmul.mubr.f32.gmra.mrb[0].mxu0 %v3828
        %v4077 = vpop.f32.mrb[0].mxu0
        %v4078 = vadd.f32 0.0, %v4077
        %v4079 = vpop.f32.mrb[0].mxu0
        %4080 = vmatprep.mubr.f32.mxu0 0.0
        %4081 = vmatmul.mubr.f32.gmra.mrb[0].mxu0 %v3831
        %v4082 = vpop.f32.mrb[0].mxu0
        %v4083 = vadd.f32 0.0, %v4082
        %v4084 = vpop.f32.mrb[0].mxu0
        %4085 = vmatprep.mubr.f32.mxu0 0.0
        %4086 = vmatmul.mubr.f32.gmra.mrb[0].mxu0 %v3833
        %v4087 = vpop.f32.mrb[0].mxu0
        %v4088 = vadd.f32 0.0, %v4087
        %v4089 = vpop.f32.mrb[0].mxu0
        %4090 = vdwg.mxu0
        %v4091 = vadd.f32 %v3689, %v3933
        %v4092 = vadd.f32 %v3690, %v3938
        %v4093 = vadd.f32 %v3691, %v3943
        %v4094 = vadd.f32 %v3692, %v3948
        %v4095 = vadd.f32 %v3693, %v3953
        %v4096 = vadd.f32 %v3694, %v3958
        %v4097 = vadd.f32 %v3695, %v3963
        %v4098 = vadd.f32 %v3696, %v3968
        %v4099 = vadd.f32 %v3697, %v3973
        %v4100 = vadd.f32 %v3698, %v3978
        %v4101 = vadd.f32 %v3699, %v3983
        %v4102 = vadd.f32 %v3700, %v3988
        %v4103 = vadd.f32 %v3701, %v3993
        %v4104 = vadd.f32 %v3702, %v3998
        %v4105 = vadd.f32 %v3703, %v4003
        %v4106 = vadd.f32 %v3704, %v4008
        %v4107 = vadd.f32 %v3705, %v4013
        %v4108 = vadd.f32 %v3706, %v4018
        %v4109 = vadd.f32 %v3707, %v4023
        %v4110 = vadd.f32 %v3708, %v4028
        %v4111 = vadd.f32 %v3709, %v4033
        %v4112 = vadd.f32 %v3710, %v4038
        %v4113 = vadd.f32 %v3711, %v4043
        %v4114 = vadd.f32 %v3712, %v4048
        %v4115 = vadd.f32 %v3713, %v4053
        %v4116 = vadd.f32 %v3714, %v4058
        %v4117 = vadd.f32 %v3715, %v4063
        %v4118 = vadd.f32 %v3716, %v4068
        %v4119 = vadd.f32 %v3717, %v4073
        %v4120 = vadd.f32 %v3718, %v4078
        %v4121 = vadd.f32 %v3719, %v4083
        %v4122 = vadd.f32 %v3720, %v4088
        %v4123 = vld [vmem:[%s5] sm:$0x1]
        %v4125 = vlaneseq
        %v4126 = vshrl.u32 %v4125, 7
        %v4127 = vsub.s32 0, %v4126
        %v4128 = vrot.slane %v4123, %v4127
        %v4130 = vadd.f32 %v4091, %v4128
        %v4131 = vadd.f32 %v4092, %v4128
        %v4132 = vadd.f32 %v4093, %v4128
        %v4133 = vadd.f32 %v4094, %v4128
        %v4134 = vadd.f32 %v4095, %v4128
        %v4135 = vadd.f32 %v4096, %v4128
        %v4136 = vadd.f32 %v4097, %v4128
        %v4137 = vadd.f32 %v4098, %v4128
        %v4138 = vadd.f32 %v4099, %v4128
        %v4139 = vadd.f32 %v4100, %v4128
        %v4140 = vadd.f32 %v4101, %v4128
        %v4141 = vadd.f32 %v4102, %v4128
        %v4142 = vadd.f32 %v4103, %v4128
        %v4143 = vadd.f32 %v4104, %v4128
        %v4144 = vadd.f32 %v4105, %v4128
        %v4145 = vadd.f32 %v4106, %v4128
        %v4146 = vadd.f32 %v4107, %v4128
        %v4147 = vadd.f32 %v4108, %v4128
        %v4148 = vadd.f32 %v4109, %v4128
        %v4149 = vadd.f32 %v4110, %v4128
        %v4150 = vadd.f32 %v4111, %v4128
        %v4151 = vadd.f32 %v4112, %v4128
        %v4152 = vadd.f32 %v4113, %v4128
        %v4153 = vadd.f32 %v4114, %v4128
        %v4154 = vadd.f32 %v4115, %v4128
        %v4155 = vadd.f32 %v4116, %v4128
        %v4156 = vadd.f32 %v4117, %v4128
        %v4157 = vadd.f32 %v4118, %v4128
        %v4158 = vadd.f32 %v4119, %v4128
        %v4159 = vadd.f32 %v4120, %v4128
        %v4160 = vadd.f32 %v4121, %v4128
        %v4161 = vadd.f32 %v4122, %v4128
        %v4162 = vmax.f32 %v4130, 0.0
        %v4163 = vmax.f32 %v4131, 0.0
        %v4164 = vmax.f32 %v4132, 0.0
        %v4165 = vmax.f32 %v4133, 0.0
        %v4166 = vmax.f32 %v4134, 0.0
        %v4167 = vmax.f32 %v4135, 0.0
        %v4168 = vmax.f32 %v4136, 0.0
        %v4169 = vmax.f32 %v4137, 0.0
        %v4170 = vmax.f32 %v4138, 0.0
        %v4171 = vmax.f32 %v4139, 0.0
        %v4172 = vmax.f32 %v4140, 0.0
        %v4173 = vmax.f32 %v4141, 0.0
        %v4174 = vmax.f32 %v4142, 0.0
        %v4175 = vmax.f32 %v4143, 0.0
        %v4176 = vmax.f32 %v4144, 0.0
        %v4177 = vmax.f32 %v4145, 0.0
        %v4178 = vmax.f32 %v4146, 0.0
        %v4179 = vmax.f32 %v4147, 0.0
        %v4180 = vmax.f32 %v4148, 0.0
        %v4181 = vmax.f32 %v4149, 0.0
        %v4182 = vmax.f32 %v4150, 0.0
        %v4183 = vmax.f32 %v4151, 0.0
        %v4184 = vmax.f32 %v4152, 0.0
        %v4185 = vmax.f32 %v4153, 0.0
        %v4186 = vmax.f32 %v4154, 0.0
        %v4187 = vmax.f32 %v4155, 0.0
        %v4188 = vmax.f32 %v4156, 0.0
        %v4189 = vmax.f32 %v4157, 0.0
        %v4190 = vmax.f32 %v4158, 0.0
        %v4191 = vmax.f32 %v4159, 0.0
        %v4192 = vmax.f32 %v4160, 0.0
        %v4193 = vmax.f32 %v4161, 0.0
        %v4194 = vld [vmem:[%s3] sm:$0xff]
        %v4195 = vld [vmem:[%s3 + $0x8] sm:$0xff]
        %v4196 = vld [vmem:[%s3 + $0x10] sm:$0xff]
        %v4197 = vld [vmem:[%s3 + $0x18] sm:$0xff]
        %v4198 = vld [vmem:[%s3 + $0x20] sm:$0xff]
        %v4199 = vld [vmem:[%s3 + $0x28] sm:$0xff]
        %v4200 = vld [vmem:[%s3 + $0x30] sm:$0xff]
        %v4201 = vld [vmem:[%s3 + $0x38] sm:$0xff]
        %v4202 = vld [vmem:[%s3 + $0x40] sm:$0xff]
        %v4203 = vld [vmem:[%s3 + $0x48] sm:$0xff]
        %v4204 = vld [vmem:[%s3 + $0x50] sm:$0xff]
        %v4205 = vld [vmem:[%s3 + $0x58] sm:$0xff]
        %v4206 = vld [vmem:[%s3 + $0x60] sm:$0xff]
        %v4207 = vld [vmem:[%s3 + $0x68] sm:$0xff]
        %v4208 = vld [vmem:[%s3 + $0x70] sm:$0xff]
        %v4209 = vld [vmem:[%s3 + $0x78] sm:$0xff]
        %v4210 = vld [vmem:[%s6] sm:$0x1]
        %v4212 = vlaneseq
        %v4213 = vshrl.u32 %v4212, 7
        %v4214 = vsub.s32 0, %v4213
        %v4215 = vrot.slane %v4210, %v4214
        %4217 = vmatprep.subr.mxu0 0.0
        %4218 = vmatpush1.msra.mxu0 %v4194
        %4219 = vmatprep.subr.mxu0 0.0
        %4220 = vmatpush1.msra.mxu0 %v4195
        %4221 = vmatprep.subr.mxu0 0.0
        %4222 = vmatpush1.msra.mxu0 %v4196
        %4223 = vmatprep.subr.mxu0 0.0
        %4224 = vmatpush1.msra.mxu0 %v4197
        %4225 = vmatprep.subr.mxu0 0.0
        %4226 = vmatpush1.msra.mxu0 %v4198
        %4227 = vmatprep.subr.mxu0 0.0
        %4228 = vmatpush1.msra.mxu0 %v4199
        %4229 = vmatprep.subr.mxu0 0.0
        %4230 = vmatpush1.msra.mxu0 %v4200
        %4231 = vmatprep.subr.mxu0 0.0
        %4232 = vmatpush1.msra.mxu0 %v4201
        %4233 = vmatprep.subr.mxu0 0.0
        %4234 = vmatpush1.msra.mxu0 %v4202
        %4235 = vmatprep.subr.mxu0 0.0
        %4236 = vmatpush1.msra.mxu0 %v4203
        %4237 = vmatprep.subr.mxu0 0.0
        %4238 = vmatpush1.msra.mxu0 %v4204
        %4239 = vmatprep.subr.mxu0 0.0
        %4240 = vmatpush1.msra.mxu0 %v4205
        %4241 = vmatprep.subr.mxu0 0.0
        %4242 = vmatpush1.msra.mxu0 %v4206
        %4243 = vmatprep.subr.mxu0 0.0
        %4244 = vmatpush1.msra.mxu0 %v4207
        %4245 = vmatprep.subr.mxu0 0.0
        %4246 = vmatpush1.msra.mxu0 %v4208
        %4247 = vmatprep.subr.mxu0 0.0
        %4248 = vmatpush1.msra.mxu0 %v4209
        %4249 = vmatprep.subr.mxu0 0.0
        %4250 = vmatpush1.msra.mxu0 0.0
        %4251 = vmatprep.subr.mxu0 0.0
        %4252 = vmatpush1.msra.mxu0 0.0
        %4253 = vmatprep.subr.mxu0 0.0
        %4254 = vmatpush1.msra.mxu0 0.0
        %4255 = vmatprep.subr.mxu0 0.0
        %4256 = vmatpush1.msra.mxu0 0.0
        %4257 = vmatprep.subr.mxu0 0.0
        %4258 = vmatpush1.msra.mxu0 0.0
        %4259 = vmatprep.subr.mxu0 0.0
        %4260 = vmatpush1.msra.mxu0 0.0
        %4261 = vmatprep.subr.mxu0 0.0
        %4262 = vmatpush1.msra.mxu0 0.0
        %4263 = vmatprep.subr.mxu0 0.0
        %4264 = vmatpush1.msra.mxu0 0.0
        %4265 = vmatprep.subr.mxu0 0.0
        %4266 = vmatpush1.msra.mxu0 0.0
        %4267 = vmatprep.subr.mxu0 0.0
        %4268 = vmatpush1.msra.mxu0 0.0
        %4269 = vmatprep.subr.mxu0 0.0
        %4270 = vmatpush1.msra.mxu0 0.0
        %4271 = vmatprep.subr.mxu0 0.0
        %4272 = vmatpush1.msra.mxu0 0.0
        %4273 = vmatprep.subr.mxu0 0.0
        %4274 = vmatpush1.msra.mxu0 0.0
        %4275 = vmatprep.subr.mxu0 0.0
        %4276 = vmatpush1.msra.mxu0 0.0
        %4277 = vmatprep.subr.mxu0 0.0
        %4278 = vmatpush1.msra.mxu0 0.0
        %4279 = vmatprep.subr.mxu0 0.0
        %4280 = vmatpush1.msra.mxu0 0.0
        %4281 = vmatprep.mubr.f32.mxu0 0.0
        %4282 = vmatmul.mubr.f32.gmra.mrb[0].mxu0 %v4162
        %v4283 = vpop.f32.mrb[0].mxu0
        %v4284 = vadd.f32 %v4215, %v4283
        %v4285 = vpop.f32.mrb[0].mxu0
        %4286 = vmatprep.mubr.f32.mxu0 0.0
        %4287 = vmatmul.mubr.f32.gmra.mrb[0].mxu0 %v4163
        %v4288 = vpop.f32.mrb[0].mxu0
        %v4289 = vadd.f32 %v4215, %v4288
        %v4290 = vpop.f32.mrb[0].mxu0
        %4291 = vmatprep.mubr.f32.mxu0 0.0
        %4292 = vmatmul.mubr.f32.gmra.mrb[0].mxu0 %v4164
        %v4293 = vpop.f32.mrb[0].mxu0
        %v4294 = vadd.f32 %v4215, %v4293
        %v4295 = vpop.f32.mrb[0].mxu0
        %4296 = vmatprep.mubr.f32.mxu0 0.0
        %4297 = vmatmul.mubr.f32.gmra.mrb[0].mxu0 %v4165
        %v4298 = vpop.f32.mrb[0].mxu0
        %v4299 = vadd.f32 %v4215, %v4298
        %v4300 = vpop.f32.mrb[0].mxu0
        %4301 = vmatprep.mubr.f32.mxu0 0.0
        %4302 = vmatmul.mubr.f32.gmra.mrb[0].mxu0 %v4166
        %v4303 = vpop.f32.mrb[0].mxu0
        %v4304 = vadd.f32 %v4215, %v4303
        %v4305 = vpop.f32.mrb[0].mxu0
        %4306 = vmatprep.mubr.f32.mxu0 0.0
        %4307 = vmatmul.mubr.f32.gmra.mrb[0].mxu0 %v4167
        %v4308 = vpop.f32.mrb[0].mxu0
        %v4309 = vadd.f32 %v4215, %v4308
        %v4310 = vpop.f32.mrb[0].mxu0
        %4311 = vmatprep.mubr.f32.mxu0 0.0
        %4312 = vmatmul.mubr.f32.gmra.mrb[0].mxu0 %v4168
        %v4313 = vpop.f32.mrb[0].mxu0
        %v4314 = vadd.f32 %v4215, %v4313
        %v4315 = vpop.f32.mrb[0].mxu0
        %4316 = vmatprep.mubr.f32.mxu0 0.0
        %4317 = vmatmul.mubr.f32.gmra.mrb[0].mxu0 %v4169
        %v4318 = vpop.f32.mrb[0].mxu0
        %v4319 = vadd.f32 %v4215, %v4318
        %v4320 = vpop.f32.mrb[0].mxu0
        %4321 = vmatprep.mubr.f32.mxu0 0.0
        %4322 = vmatmul.mubr.f32.gmra.mrb[0].mxu0 %v4170
        %v4323 = vpop.f32.mrb[0].mxu0
        %v4324 = vadd.f32 %v4215, %v4323
        %v4325 = vpop.f32.mrb[0].mxu0
        %4326 = vmatprep.mubr.f32.mxu0 0.0
        %4327 = vmatmul.mubr.f32.gmra.mrb[0].mxu0 %v4171
        %v4328 = vpop.f32.mrb[0].mxu0
        %v4329 = vadd.f32 %v4215, %v4328
        %v4330 = vpop.f32.mrb[0].mxu0
        %4331 = vmatprep.mubr.f32.mxu0 0.0
        %4332 = vmatmul.mubr.f32.gmra.mrb[0].mxu0 %v4172
        %v4333 = vpop.f32.mrb[0].mxu0
        %v4334 = vadd.f32 %v4215, %v4333
        %v4335 = vpop.f32.mrb[0].mxu0
        %4336 = vmatprep.mubr.f32.mxu0 0.0
        %4337 = vmatmul.mubr.f32.gmra.mrb[0].mxu0 %v4173
        %v4338 = vpop.f32.mrb[0].mxu0
        %v4339 = vadd.f32 %v4215, %v4338
        %v4340 = vpop.f32.mrb[0].mxu0
        %4341 = vmatprep.mubr.f32.mxu0 0.0
        %4342 = vmatmul.mubr.f32.gmra.mrb[0].mxu0 %v4174
        %v4343 = vpop.f32.mrb[0].mxu0
        %v4344 = vadd.f32 %v4215, %v4343
        %v4345 = vpop.f32.mrb[0].mxu0
        %4346 = vmatprep.mubr.f32.mxu0 0.0
        %4347 = vmatmul.mubr.f32.gmra.mrb[0].mxu0 %v4175
        %v4348 = vpop.f32.mrb[0].mxu0
        %v4349 = vadd.f32 %v4215, %v4348
        %v4350 = vpop.f32.mrb[0].mxu0
        %4351 = vmatprep.mubr.f32.mxu0 0.0
        %4352 = vmatmul.mubr.f32.gmra.mrb[0].mxu0 %v4176
        %v4353 = vpop.f32.mrb[0].mxu0
        %v4354 = vadd.f32 %v4215, %v4353
        %v4355 = vpop.f32.mrb[0].mxu0
        %4356 = vmatprep.mubr.f32.mxu0 0.0
        %4357 = vmatmul.mubr.f32.gmra.mrb[0].mxu0 %v4177
        %v4358 = vpop.f32.mrb[0].mxu0
        %v4359 = vadd.f32 %v4215, %v4358
        %v4360 = vpop.f32.mrb[0].mxu0
        %4361 = vmatprep.mubr.f32.mxu0 0.0
        %4362 = vmatmul.mubr.f32.gmra.mrb[0].mxu0 %v4178
        %v4363 = vpop.f32.mrb[0].mxu0
        %v4364 = vadd.f32 %v4215, %v4363
        %v4365 = vpop.f32.mrb[0].mxu0
        %4366 = vmatprep.mubr.f32.mxu0 0.0
        %4367 = vmatmul.mubr.f32.gmra.mrb[0].mxu0 %v4179
        %v4368 = vpop.f32.mrb[0].mxu0
        %v4369 = vadd.f32 %v4215, %v4368
        %v4370 = vpop.f32.mrb[0].mxu0
        %4371 = vmatprep.mubr.f32.mxu0 0.0
        %4372 = vmatmul.mubr.f32.gmra.mrb[0].mxu0 %v4180
        %v4373 = vpop.f32.mrb[0].mxu0
        %v4374 = vadd.f32 %v4215, %v4373
        %v4375 = vpop.f32.mrb[0].mxu0
        %4376 = vmatprep.mubr.f32.mxu0 0.0
        %4377 = vmatmul.mubr.f32.gmra.mrb[0].mxu0 %v4181
        %v4378 = vpop.f32.mrb[0].mxu0
        %v4379 = vadd.f32 %v4215, %v4378
        %v4380 = vpop.f32.mrb[0].mxu0
        %4381 = vmatprep.mubr.f32.mxu0 0.0
        %4382 = vmatmul.mubr.f32.gmra.mrb[0].mxu0 %v4182
        %v4383 = vpop.f32.mrb[0].mxu0
        %v4384 = vadd.f32 %v4215, %v4383
        %v4385 = vpop.f32.mrb[0].mxu0
        %4386 = vmatprep.mubr.f32.mxu0 0.0
        %4387 = vmatmul.mubr.f32.gmra.mrb[0].mxu0 %v4183
        %v4388 = vpop.f32.mrb[0].mxu0
        %v4389 = vadd.f32 %v4215, %v4388
        %v4390 = vpop.f32.mrb[0].mxu0
        %4391 = vmatprep.mubr.f32.mxu0 0.0
        %4392 = vmatmul.mubr.f32.gmra.mrb[0].mxu0 %v4184
        %v4393 = vpop.f32.mrb[0].mxu0
        %v4394 = vadd.f32 %v4215, %v4393
        %v4395 = vpop.f32.mrb[0].mxu0
        %4396 = vmatprep.mubr.f32.mxu0 0.0
        %4397 = vmatmul.mubr.f32.gmra.mrb[0].mxu0 %v4185
        %v4398 = vpop.f32.mrb[0].mxu0
        %v4399 = vadd.f32 %v4215, %v4398
        %v4400 = vpop.f32.mrb[0].mxu0
        %4401 = vmatprep.mubr.f32.mxu0 0.0
        %4402 = vmatmul.mubr.f32.gmra.mrb[0].mxu0 %v4186
        %v4403 = vpop.f32.mrb[0].mxu0
        %v4404 = vadd.f32 %v4215, %v4403
        %v4405 = vpop.f32.mrb[0].mxu0
        %4406 = vmatprep.mubr.f32.mxu0 0.0
        %4407 = vmatmul.mubr.f32.gmra.mrb[0].mxu0 %v4187
        %v4408 = vpop.f32.mrb[0].mxu0
        %v4409 = vadd.f32 %v4215, %v4408
        %v4410 = vpop.f32.mrb[0].mxu0
        %4411 = vmatprep.mubr.f32.mxu0 0.0
        %4412 = vmatmul.mubr.f32.gmra.mrb[0].mxu0 %v4188
        %v4413 = vpop.f32.mrb[0].mxu0
        %v4414 = vadd.f32 %v4215, %v4413
        %v4415 = vpop.f32.mrb[0].mxu0
        %4416 = vmatprep.mubr.f32.mxu0 0.0
        %4417 = vmatmul.mubr.f32.gmra.mrb[0].mxu0 %v4189
        %v4418 = vpop.f32.mrb[0].mxu0
        %v4419 = vadd.f32 %v4215, %v4418
        %v4420 = vpop.f32.mrb[0].mxu0
        %4421 = vmatprep.mubr.f32.mxu0 0.0
        %4422 = vmatmul.mubr.f32.gmra.mrb[0].mxu0 %v4190
        %v4423 = vpop.f32.mrb[0].mxu0
        %v4424 = vadd.f32 %v4215, %v4423
        %v4425 = vpop.f32.mrb[0].mxu0
        %4426 = vmatprep.mubr.f32.mxu0 0.0
        %4427 = vmatmul.mubr.f32.gmra.mrb[0].mxu0 %v4191
        %v4428 = vpop.f32.mrb[0].mxu0
        %v4429 = vadd.f32 %v4215, %v4428
        %v4430 = vpop.f32.mrb[0].mxu0
        %4431 = vmatprep.mubr.f32.mxu0 0.0
        %4432 = vmatmul.mubr.f32.gmra.mrb[0].mxu0 %v4192
        %v4433 = vpop.f32.mrb[0].mxu0
        %v4434 = vadd.f32 %v4215, %v4433
        %v4435 = vpop.f32.mrb[0].mxu0
        %4436 = vmatprep.mubr.f32.mxu0 0.0
        %4437 = vmatmul.mubr.f32.gmra.mrb[0].mxu0 %v4193
        %v4438 = vpop.f32.mrb[0].mxu0
        %v4439 = vadd.f32 %v4215, %v4438
        %v4440 = vpop.f32.mrb[0].mxu0
        %4441 = vdwg.mxu0
        %v4442 = vld [vmem:[%s276] sm:$0xff]
        %v4443 = vld [vmem:[%s276 + $0x8] sm:$0xff]
        %v4444 = vld [vmem:[%s276 + $0x10] sm:$0xff]
        %v4445 = vld [vmem:[%s276 + $0x18] sm:$0xff]
        %v4446 = vld [vmem:[%s276 + $0x20] sm:$0xff]
        %v4447 = vld [vmem:[%s276 + $0x28] sm:$0xff]
        %v4448 = vld [vmem:[%s276 + $0x30] sm:$0xff]
        %v4449 = vld [vmem:[%s276 + $0x38] sm:$0xff]
        %v4450 = vld [vmem:[%s276 + $0x40] sm:$0xff]
        %v4451 = vld [vmem:[%s276 + $0x48] sm:$0xff]
        %v4452 = vld [vmem:[%s276 + $0x50] sm:$0xff]
        %v4453 = vld [vmem:[%s276 + $0x58] sm:$0xff]
        %v4454 = vld [vmem:[%s276 + $0x60] sm:$0xff]
        %v4455 = vld [vmem:[%s276 + $0x68] sm:$0xff]
        %v4456 = vld [vmem:[%s276 + $0x70] sm:$0xff]
        %v4457 = vld [vmem:[%s276 + $0x78] sm:$0xff]
        %v4458 = vld [vmem:[%s276 + $0x80] sm:$0xff]
        %v4459 = vld [vmem:[%s276 + $0x88] sm:$0xff]
        %v4460 = vld [vmem:[%s276 + $0x90] sm:$0xff]
        %v4461 = vld [vmem:[%s276 + $0x98] sm:$0xff]
        %v4462 = vld [vmem:[%s276 + $0xa0] sm:$0xff]
        %v4463 = vld [vmem:[%s276 + $0xa8] sm:$0xff]
        %v4464 = vld [vmem:[%s276 + $0xb0] sm:$0xff]
        %v4465 = vld [vmem:[%s276 + $0xb8] sm:$0xff]
        %v4466 = vld [vmem:[%s276 + $0xc0] sm:$0xff]
        %v4467 = vld [vmem:[%s276 + $0xc8] sm:$0xff]
        %v4468 = vld [vmem:[%s276 + $0xd0] sm:$0xff]
        %v4469 = vld [vmem:[%s276 + $0xd8] sm:$0xff]
        %v4470 = vld [vmem:[%s276 + $0xe0] sm:$0xff]
        %v4471 = vld [vmem:[%s276 + $0xe8] sm:$0xff]
        %v4472 = vld [vmem:[%s276 + $0xf0] sm:$0xff]
        %v4473 = vld [vmem:[%s276 + $0xf8] sm:$0xff]
        %v4474 = vadd.f32 %v4284, %v4442
        %v4475 = vadd.f32 %v4289, %v4443
        %v4476 = vadd.f32 %v4294, %v4444
        %v4477 = vadd.f32 %v4299, %v4445
        %v4478 = vadd.f32 %v4304, %v4446
        %v4479 = vadd.f32 %v4309, %v4447
        %v4480 = vadd.f32 %v4314, %v4448
        %v4481 = vadd.f32 %v4319, %v4449
        %v4482 = vadd.f32 %v4324, %v4450
        %v4483 = vadd.f32 %v4329, %v4451
        %v4484 = vadd.f32 %v4334, %v4452
        %v4485 = vadd.f32 %v4339, %v4453
        %v4486 = vadd.f32 %v4344, %v4454
        %v4487 = vadd.f32 %v4349, %v4455
        %v4488 = vadd.f32 %v4354, %v4456
        %v4489 = vadd.f32 %v4359, %v4457
        %v4490 = vadd.f32 %v4364, %v4458
        %v4491 = vadd.f32 %v4369, %v4459
        %v4492 = vadd.f32 %v4374, %v4460
        %v4493 = vadd.f32 %v4379, %v4461
        %v4494 = vadd.f32 %v4384, %v4462
        %v4495 = vadd.f32 %v4389, %v4463
        %v4496 = vadd.f32 %v4394, %v4464
        %v4497 = vadd.f32 %v4399, %v4465
        %v4498 = vadd.f32 %v4404, %v4466
        %v4499 = vadd.f32 %v4409, %v4467
        %v4500 = vadd.f32 %v4414, %v4468
        %v4501 = vadd.f32 %v4419, %v4469
        %v4502 = vadd.f32 %v4424, %v4470
        %v4503 = vadd.f32 %v4429, %v4471
        %v4504 = vadd.f32 %v4434, %v4472
        %v4505 = vadd.f32 %v4439, %v4473
        %v4506 = vmax.f32 %v4474, 0.0
        %v4507 = vmax.f32 %v4475, 0.0
        %v4508 = vmax.f32 %v4476, 0.0
        %v4509 = vmax.f32 %v4477, 0.0
        %v4510 = vmax.f32 %v4478, 0.0
        %v4511 = vmax.f32 %v4479, 0.0
        %v4512 = vmax.f32 %v4480, 0.0
        %v4513 = vmax.f32 %v4481, 0.0
        %v4514 = vmax.f32 %v4482, 0.0
        %v4515 = vmax.f32 %v4483, 0.0
        %v4516 = vmax.f32 %v4484, 0.0
        %v4517 = vmax.f32 %v4485, 0.0
        %v4518 = vmax.f32 %v4486, 0.0
        %v4519 = vmax.f32 %v4487, 0.0
        %v4520 = vmax.f32 %v4488, 0.0
        %v4521 = vmax.f32 %v4489, 0.0
        %v4522 = vmax.f32 %v4490, 0.0
        %v4523 = vmax.f32 %v4491, 0.0
        %v4524 = vmax.f32 %v4492, 0.0
        %v4525 = vmax.f32 %v4493, 0.0
        %v4526 = vmax.f32 %v4494, 0.0
        %v4527 = vmax.f32 %v4495, 0.0
        %v4528 = vmax.f32 %v4496, 0.0
        %v4529 = vmax.f32 %v4497, 0.0
        %v4530 = vmax.f32 %v4498, 0.0
        %v4531 = vmax.f32 %v4499, 0.0
        %v4532 = vmax.f32 %v4500, 0.0
        %v4533 = vmax.f32 %v4501, 0.0
        %v4534 = vmax.f32 %v4502, 0.0
        %v4535 = vmax.f32 %v4503, 0.0
        %v4536 = vmax.f32 %v4504, 0.0
        %v4537 = vmax.f32 %v4505, 0.0
        %4538 = vst [vmem:[%s271] sm:$0xff] %v4506
        %4539 = vst [vmem:[%s271 + $0x8] sm:$0xff] %v4507
        %4540 = vst [vmem:[%s271 + $0x10] sm:$0xff] %v4508
        %4541 = vst [vmem:[%s271 + $0x18] sm:$0xff] %v4509
        %4542 = vst [vmem:[%s271 + $0x20] sm:$0xff] %v4510
        %4543 = vst [vmem:[%s271 + $0x28] sm:$0xff] %v4511
        %4544 = vst [vmem:[%s271 + $0x30] sm:$0xff] %v4512
        %4545 = vst [vmem:[%s271 + $0x38] sm:$0xff] %v4513
        %4546 = vst [vmem:[%s271 + $0x40] sm:$0xff] %v4514
        %4547 = vst [vmem:[%s271 + $0x48] sm:$0xff] %v4515
        %4548 = vst [vmem:[%s271 + $0x50] sm:$0xff] %v4516
        %4549 = vst [vmem:[%s271 + $0x58] sm:$0xff] %v4517
        %4550 = vst [vmem:[%s271 + $0x60] sm:$0xff] %v4518
        %4551 = vst [vmem:[%s271 + $0x68] sm:$0xff] %v4519
        %4552 = vst [vmem:[%s271 + $0x70] sm:$0xff] %v4520
        %4553 = vst [vmem:[%s271 + $0x78] sm:$0xff] %v4521
        %4554 = vst [vmem:[%s271 + $0x80] sm:$0xff] %v4522
        %4555 = vst [vmem:[%s271 + $0x88] sm:$0xff] %v4523
        %4556 = vst [vmem:[%s271 + $0x90] sm:$0xff] %v4524
        %4557 = vst [vmem:[%s271 + $0x98] sm:$0xff] %v4525
        %4558 = vst [vmem:[%s271 + $0xa0] sm:$0xff] %v4526
        %4559 = vst [vmem:[%s271 + $0xa8] sm:$0xff] %v4527
        %4560 = vst [vmem:[%s271 + $0xb0] sm:$0xff] %v4528
        %4561 = vst [vmem:[%s271 + $0xb8] sm:$0xff] %v4529
        %4562 = vst [vmem:[%s271 + $0xc0] sm:$0xff] %v4530
        %4563 = vst [vmem:[%s271 + $0xc8] sm:$0xff] %v4531
        %4564 = vst [vmem:[%s271 + $0xd0] sm:$0xff] %v4532
        %4565 = vst [vmem:[%s271 + $0xd8] sm:$0xff] %v4533
        %4566 = vst [vmem:[%s271 + $0xe0] sm:$0xff] %v4534
        %4567 = vst [vmem:[%s271 + $0xe8] sm:$0xff] %v4535
        %4568 = vst [vmem:[%s271 + $0xf0] sm:$0xff] %v4536
        %4569 = vst [vmem:[%s271 + $0xf8] sm:$0xff] %v4537
        %s4570 = sand.u32 %s181, 1
        %s4571 = scalar_lea.sflag [#allocation4], %s4570
        %s4572 = sand.u32 %s181, 1
        %s4573 = smul.addr %s4572, 256
        %s4574 = scalar_lea.vmem [#allocation3], %s4573
        // Predicated region
        $region49: #{bottleneck_pallas.1} parent=47 // pred_check
          %p4575 = pneg %p191
        $region50: #{bottleneck_pallas.1} parent=47 // pred_check_branch
          %4577 = sbr.rel (%p4575) target = $region52
        $region51: #{bottleneck_pallas.1} parent=47 // pred_region
          %s4579 = ssub.s32 4096, 4096
          %4580 = vsyncadd %s4571, %s4579
          %s4581 = smul.addr %s21, 32
          %s4582 = smul.addr %s4581, 128
          %s4583 = scalar_lea.hbm %s7, %s4582
          %s4584 = sshll.u32 %s4574, 4
          %s4585 = int_to_ptr.vmem [resolvable:$true] %s4584
          %4590 = dma.vmem_to_hbm [thread:$0]  %s4585, 4096, %s4583, %s4571, 128, 128, 8
        $region52: #{bottleneck_pallas.1} parent=47 // pred_fallthru
          _
      $region48: #{bottleneck_pallas.1} parent=5 // pred_fallthru
        _
      %p4591 = scmp.le.s32.totalorder 2, %s16
      // Predicated region
      $region53: #{bottleneck_pallas.1} parent=5 // pred_check
        %p4592 = pneg %p4591
      $region54: #{bottleneck_pallas.1} parent=5 // pred_check_branch
        %4594 = sbr.rel (%p4592) target = $region56
      $region55: #{bottleneck_pallas.1} parent=5 // pred_region
        %s4595 = ssub.s32 %s16, 2
        // Predicated region
        $region57: #{bottleneck_pallas.1} parent=55 // pred_check
          %p4596 = pneg %p197
        $region58: #{bottleneck_pallas.1} parent=55 // pred_check_branch
          %4598 = sbr.rel (%p4596) target = $region60
        $region59: #{bottleneck_pallas.1} parent=55 // pred_region
          %s4599 = sand.u32 %s182, 1
          %s4600 = scalar_lea.sflag [#allocation4], %s4599
          %s4601 = sand.u32 %s182, 1
          %s4602 = smul.addr %s4601, 256
          %s4603 = scalar_lea.vmem [#allocation3], %s4602
          %4604 = dma.done %s4600, 4096
        $region60: #{bottleneck_pallas.1} parent=55 // pred_fallthru
          _
      $region56: #{bottleneck_pallas.1} parent=5 // pred_fallthru
        _
    $region6: #{bottleneck_pallas.1} parent=1 // loop_footer
      %s20 = sadd.s32 1, %s16
    $region7: #{bottleneck_pallas.1} parent=1 // loop_footer_branch
      %15 = sbr.rel target = $region3
    $region8: #{bottleneck_pallas.1} parent=1 // loop_exit
      _
    %4605 = vsyncpa [#allocation4], 1
    %s4606 = scalar_lea.sflag [#allocation4], 1
    %4607 = vsyncpa %s4606, 1

</llo_original>
